<compile_context>
chip_gen: v7x
topology: tpu7x:2x2x1
jax: 0.10.0
libtpu: 0.0.40
codegen_flags: <defaults>
</compile_context>

<pallas_src>
import functools

import jax
import jax.numpy as jnp
import numpy as np
from jax import lax
from jax.experimental import pallas as pl
from jax.experimental.pallas import tpu as pltpu

EPS = 1e-5            # PyTorch BatchNorm2d / LayerNorm default eps
LANE = 128            # channel dims padded to a multiple of the TPU lane width
MAX_ROW_TILE = 16     # feature-map rows per conv grid step; sweep {16,32,64} at production sizes
NUM_HEADS = 8


def _round_up(x, m):
    return (x + m - 1) // m * m


def _row_tile(h):
    """Largest divisor of h that is <= MAX_ROW_TILE.

    TODO(synk): replace the largest-divisor rule with cdiv + last-tile masking so a prime H
    does not silently degrade to 1-row tiles.
    """
    if h <= MAX_ROW_TILE:
        return h
    t = MAX_ROW_TILE
    while h % t != 0:
        t -= 1
    return t


# ============================================================================
# Shared (backend-agnostic) BatchNorm finalize math
# ============================================================================
def _bn_scale_shift(s1, s2, gamma, beta, count):
    """Training-mode BN affine from per-channel sum / sum-of-squares."""
    mean = s1 / count
    # TODO(synk): E[x^2]-E[x]^2 can cancel catastrophically at production activation scales;
    # a Welford/two-pass reduction would be more robust.
    var = jnp.maximum(s2 / count - mean * mean, 0.0)
    inv = lax.rsqrt(var + EPS)
    scale = gamma * inv
    shift = beta - mean * scale
    return scale, shift


# ============================================================================
# Pallas kernels
# ============================================================================
def _conv3x3_kernel(x_ref, sc_ref, sh_ref, w_ref, y_ref, s_ref, *,
                    th, wd, cin, cout, tiles_per_img, apply_in_affine):
    """3x3 SAME conv on one halo'd NHWC row-tile + per-channel sum / sum-of-squares.

    x_ref : (1, th+2, wd+2, cin)  bf16  halo'd input tile (channels lane-padded)
    sc_ref: (1, cin) f32, sh_ref: (1, cin) f32
            per-channel affine (training-mode BN of the *previous* conv), applied to the input
            tile + ReLU when apply_in_affine=True; image-border halo is masked to zero so SAME
            padding acts on the post-BN/ReLU activation.
    w_ref : (3, 3*cin, cout) bf16   per-dy weights with the 3 dx taps folded into K
    y_ref : (1, th, wd, cout) bf16  raw (pre-BN) conv output cache
    s_ref : (1, 2, cout) f32        row 0: sum, row 1: sum of squares over this tile
    """
    x = x_ref[0]
    if apply_in_affine:
        a = x.astype(jnp.float32) * sc_ref[0] + sh_ref[0]
        a = jnp.maximum(a, 0.0)
        r = pl.program_id(0) % tiles_per_img          # row-tile index within the image
        rows = lax.broadcasted_iota(jnp.int32, (th + 2, wd + 2), 0)
        cols = lax.broadcasted_iota(jnp.int32, (th + 2, wd + 2), 1)
        keep = (cols >= 1) & (cols <= wd)             # left/right halo is always image border
        keep = keep & jnp.logical_or(rows >= 1, r != 0)
        keep = keep & jnp.logical_or(rows <= th, r != tiles_per_img - 1)
        x = jnp.where(keep[:, :, None], a, 0.0).astype(jnp.bfloat16)

    # 3 fat contractions (K = 3*cin): fold the dx taps by concatenating shifted slices.
    acc = jnp.zeros((th * wd, cout), jnp.float32)
    for dy in range(3):
        band = x[dy:dy + th]                                          # (th, wd+2, cin)
        patch = jnp.concatenate(
            [band[:, 0:wd, :], band[:, 1:wd + 1, :], band[:, 2:wd + 2, :]],
            axis=-1).reshape(th * wd, 3 * cin)
        acc = acc + jnp.dot(patch, w_ref[dy], preferred_element_type=jnp.float32)

    y_ref[0] = acc.reshape(th, wd, cout).astype(jnp.bfloat16)         # bf16 cache (half traffic)
    s_ref[0, 0:1, :] = jnp.sum(acc, axis=0, keepdims=True)
    s_ref[0, 1:2, :] = jnp.sum(acc * acc, axis=0, keepdims=True)


def _bn_relu_kernel(y_ref, sc_ref, sh_ref, o_ref):
    """Training-mode BN apply (scale/shift) + ReLU on a bf16 conv cache tile."""
    z = jnp.maximum(y_ref[0].astype(jnp.float32) * sc_ref[0] + sh_ref[0], 0.0)
    o_ref[0] = z.astype(jnp.bfloat16)


def _bn_relu_pool_kernel(y_ref, sc_ref, sh_ref, o_ref, p_ref, *, th, wd):
    """BN apply + ReLU, emitting the full-res tile and the fused 2x2 max-pooled tile."""
    z = jnp.maximum(y_ref[0].astype(jnp.float32) * sc_ref[0] + sh_ref[0], 0.0)
    z = z.astype(jnp.bfloat16)
    o_ref[0] = z
    c = z.shape[-1]
    zr = z.reshape(th // 2, 2, wd, c)
    zr = jnp.maximum(zr[:, 0], zr[:, 1])              # pool rows
    zc = zr.reshape(th // 2, wd // 2, 2, c)
    p_ref[0] = jnp.maximum(zc[:, :, 0, :], zc[:, :, 1, :])   # pool cols


def _matmul_kernel(x_ref, w_ref, b_ref, o_ref, *, act):
    """Tiled (TM,K)x(K,N) matmul + bias (+ optional GELU), bf16 operands, f32 accumulation."""
    y = jnp.dot(x_ref[...], w_ref[...], preferred_element_type=jnp.float32) + b_ref[...]
    if act == "gelu":
        # TODO(synk): PyTorch nn.GELU defaults to the exact erf form; tanh approximation here.
        y = jax.nn.gelu(y, approximate=True)
    o_ref[...] = y.astype(o_ref.dtype)


def _layernorm_kernel(x_ref, g_ref, b_ref, o_ref, *, eps):
    x = x_ref[...]
    mu = jnp.mean(x, axis=-1, keepdims=True)
    xc = x - mu
    var = jnp.mean(xc * xc, axis=-1, keepdims=True)
    o_ref[...] = xc * lax.rsqrt(var + eps) * g_ref[...] + b_ref[...]


def _attn_kernel(q_ref, k_ref, v_ref, o_ref, *, num_heads, dh, scale):
    """Multi-head softmax attention for one batch element; lane-dense (1, S, E) blocks.

    Heads are looped with static lane slices; head outputs are concatenated so the final store
    is a single lane-dense (S, E) write.
    TODO(synk): for realistic sequence lengths this must become a KV-tiled online-softmax
    (flash) kernel; at the 2x2 bottleneck a single block per batch element suffices.
    TODO(synk): on hardware use pl.reciprocal(approx=True) for the softmax denominator (EUP).
    """
    outs = []
    for hd in range(num_heads):
        lo = hd * dh
        q = q_ref[0, :, lo:lo + dh] * scale
        k = k_ref[0, :, lo:lo + dh]
        v = v_ref[0, :, lo:lo + dh]
        s = lax.dot_general(q, k, dimension_numbers=(((1,), (1,)), ((), ())),
                            preferred_element_type=jnp.float32)       # (S, S)
        s = s - jnp.max(s, axis=-1, keepdims=True)
        p = jnp.exp(s)
        p = p / jnp.sum(p, axis=-1, keepdims=True)
        outs.append(jnp.dot(p, v, preferred_element_type=jnp.float32))
    o_ref[0] = jnp.concatenate(outs, axis=-1)


# ============================================================================
# Pallas-backed ops (wrappers)
# ============================================================================
def conv3x3_raw(x, w_hwio, in_scale=None, in_shift=None):
    """One 3x3 SAME conv producing the raw (pre-BN) bf16 output cache + per-tile BN stats.

    x: (N, H, W, Cx) with Cx >= Cin(weights); channels beyond Cin(weights) must be zero
    (lets channel-padded caches feed the next conv without a slice/re-pad round-trip).
    If in_scale/in_shift are given (shape (1, Cx_padded)), the previous conv's training-mode BN
    affine + ReLU is fused into this kernel's input load.
    """
    n, h, wd, cx = x.shape
    kh, kw, ci, co = w_hwio.shape
    assert kh == 3 and kw == 3
    cxp = _round_up(max(cx, ci), LANE)
    cop = _round_up(co, LANE)
    th = _row_tile(h)
    t = h // th
    g = n * t

    xq = x.astype(jnp.bfloat16)
    xp = jnp.pad(xq, ((0, 0), (1, 1), (1, 1), (0, cxp - cx)))
    # TODO(synk): keep xp in HBM (memory_space=pl.ANY) and DMA overlapping (th+2)-row windows
    # manually to avoid materializing the (th+2)/th halo-duplicated copy below.
    if t == 1:
        xt = xp[:, None]
    else:
        xt = jnp.stack([xp[:, i * th: i * th + th + 2] for i in range(t)], axis=1)
    xt = xt.reshape(g, th + 2, wd + 2, cxp)

    wq = jnp.pad(w_hwio, ((0, 0), (0, 0), (0, cxp - ci), (0, cop - co)))
    wq = wq.reshape(3, 3 * cxp, cop).astype(jnp.bfloat16)     # per-dy, dx folded into K

    apply_aff = in_scale is not None
    if apply_aff:
        assert in_scale.shape == (1, cxp) and in_shift.shape == (1, cxp)
    else:
        in_scale = jnp.zeros((1, cxp), jnp.float32)
        in_shift = jnp.zeros((1, cxp), jnp.float32)

    kern = functools.partial(_conv3x3_kernel, th=th, wd=wd, cin=cxp, cout=cop,
                             tiles_per_img=t, apply_in_affine=apply_aff)
    flops = 2 * g * th * wd * 9 * cxp * cop
    bytes_acc = xt.size * 2 + wq.size * 2 + g * th * wd * cop * 2 + g * 2 * cop * 4

    # NOTE: block sizes fit the default scoped-VMEM budget at these shapes; for production tile
    # sizes set pltpu.CompilerParams(vmem_limit_bytes=...) and re-derive th for v7x's 64 MiB.
    y, stats = pl.pallas_call(
        kern,
        grid=(g,),
        in_specs=[
            pl.BlockSpec((1, th + 2, wd + 2, cxp), lambda i: (i, 0, 0, 0)),
            pl.BlockSpec((1, cxp), lambda i: (0, 0)),
            pl.BlockSpec((1, cxp), lambda i: (0, 0)),
            pl.BlockSpec((3, 3 * cxp, cop), lambda i: (0, 0, 0)),
        ],
        out_specs=(
            pl.BlockSpec((1, th, wd, cop), lambda i: (i, 0, 0, 0)),
            pl.BlockSpec((1, 2, cop), lambda i: (i, 0, 0)),
        ),
        out_shape=(
            jax.ShapeDtypeStruct((g, th, wd, cop), jnp.bfloat16),
            jax.ShapeDtypeStruct((g, 2, cop), jnp.float32),
        ),
        compiler_params=pltpu.CompilerParams(dimension_semantics=("parallel",)),
        cost_estimate=pl.CostEstimate(flops=int(flops), transcendentals=0,
                                      bytes_accessed=int(bytes_acc)),
    )(xt, in_scale, in_shift, wq)

    return y.reshape(n, h, wd, cop), stats


def finalize_bn_padded(stats, gamma, beta, count):
    """Reduce per-tile sums -> per-channel (scale, shift), zero-padded to the lane width."""
    cop = stats.shape[-1]
    gp = jnp.pad(gamma, (0, cop - gamma.shape[0]))
    bp = jnp.pad(beta, (0, cop - beta.shape[0]))
    scale, shift = _bn_scale_shift(jnp.sum(stats[:, 0, :], axis=0),
                                   jnp.sum(stats[:, 1, :], axis=0), gp, bp, count)
    return (scale.reshape(1, cop).astype(jnp.float32),
            shift.reshape(1, cop).astype(jnp.float32))


def bn_relu_apply(y, scale, shift, pool):
    """Apply training-mode BN affine + ReLU to a bf16 conv cache; optionally emit the fused
    2x2 max-pooled tensor from the same VMEM tile."""
    n, h, wd, cop = y.shape
    th = _row_tile(h)
    t = h // th
    g = n * t
    yt = y.reshape(g, th, wd, cop)
    cp = pltpu.CompilerParams(dimension_semantics=("parallel",))
    in_specs = [pl.BlockSpec((1, th, wd, cop), lambda i: (i, 0, 0, 0)),
                pl.BlockSpec((1, cop), lambda i: (0, 0)),
                pl.BlockSpec((1, cop), lambda i: (0, 0))]
    if pool:
        assert th % 2 == 0 and wd % 2 == 0
        out, pooled = pl.pallas_call(
            functools.partial(_bn_relu_pool_kernel, th=th, wd=wd),
            grid=(g,),
            in_specs=in_specs,
            out_specs=(pl.BlockSpec((1, th, wd, cop), lambda i: (i, 0, 0, 0)),
                       pl.BlockSpec((1, th // 2, wd // 2, cop), lambda i: (i, 0, 0, 0))),
            out_shape=(jax.ShapeDtypeStruct((g, th, wd, cop), jnp.bfloat16),
                       jax.ShapeDtypeStruct((g, th // 2, wd // 2, cop), jnp.bfloat16)),
            compiler_params=cp,
        )(yt, scale, shift)
        return (out.reshape(n, h, wd, cop),
                pooled.reshape(n, h // 2, wd // 2, cop))
    out = pl.pallas_call(
        _bn_relu_kernel,
        grid=(g,),
        in_specs=in_specs,
        out_specs=pl.BlockSpec((1, th, wd, cop), lambda i: (i, 0, 0, 0)),
        out_shape=jax.ShapeDtypeStruct((g, th, wd, cop), jnp.bfloat16),
        compiler_params=cp,
    )(yt, scale, shift)
    return out.reshape(n, h, wd, cop), None


def vgg_block_pallas(x, p, pool):
    """VGGBlock: conv-BN-ReLU twice.  BN1+ReLU is fused into conv2's input load; BN2+ReLU
    (and the encoder 2x2 max-pool) are applied by a single tiled kernel on the bf16 cache."""
    n, h, wd, _ = x.shape
    count = float(n * h * wd)
    co = p["w2"].shape[-1]
    y1, s1 = conv3x3_raw(x, p["w1"])
    sc1, sh1 = finalize_bn_padded(s1, p["g1"], p["beta1"], count)
    y2, s2 = conv3x3_raw(y1, p["w2"], sc1, sh1)
    sc2, sh2 = finalize_bn_padded(s2, p["g2"], p["beta2"], count)
    full, pooled = bn_relu_apply(y2, sc2, sh2, pool)
    # full-res output sliced to real channels (skips / transformer / final); the pooled tensor
    # keeps its zero channel-padding and feeds the next block's conv directly (no re-pad).
    return full[..., :co], pooled


def linear(x, w, b, act="none", out_dtype=jnp.float32, tm_cap=256):
    """y = act(x @ w + b); pads to lane-dense shapes only when not already aligned."""
    m, k = x.shape
    nf = w.shape[1]
    kp = _round_up(k, LANE)
    np_ = _round_up(nf, LANE)
    tm = tm_cap if m >= tm_cap else _round_up(m, 8)
    mp = _round_up(m, tm)

    xq = x.astype(jnp.bfloat16)
    if (mp, kp) != (m, k):
        xq = jnp.pad(xq, ((0, mp - m), (0, kp - k)))
    wq = w.astype(jnp.bfloat16)
    if (kp, np_) != (k, nf):
        wq = jnp.pad(wq, ((0, kp - k), (0, np_ - nf)))
    bq = jnp.pad(b, (0, np_ - nf)).reshape(1, np_).astype(jnp.float32)

    out = pl.pallas_call(
        functools.partial(_matmul_kernel, act=act),
        grid=(mp // tm,),
        in_specs=[
            pl.BlockSpec((tm, kp), lambda i: (i, 0)),
            pl.BlockSpec((kp, np_), lambda i: (0, 0)),
            pl.BlockSpec((1, np_), lambda i: (0, 0)),
        ],
        out_specs=pl.BlockSpec((tm, np_), lambda i: (i, 0)),
        out_shape=jax.ShapeDtypeStruct((mp, np_), out_dtype),
        compiler_params=pltpu.CompilerParams(dimension_semantics=("parallel",)),
        cost_estimate=pl.CostEstimate(flops=int(2 * mp * kp * np_), transcendentals=0,
                                      bytes_accessed=int(xq.size * 2 + wq.size * 2 +
                                                         mp * np_ * 4)),
    )(xq, wq, bq)
    if (mp, np_) != (m, nf):
        out = out[:m, :nf]
    return out


def layernorm(x, g, b, tm_cap=256):
    """Row-wise LayerNorm over the channel axis.  x: (M, C) f32."""
    m, c = x.shape
    tm = tm_cap if m >= tm_cap else _round_up(m, 8)
    mp = _round_up(m, tm)
    xq = x.astype(jnp.float32)
    if mp != m:
        xq = jnp.pad(xq, ((0, mp - m), (0, 0)))
    out = pl.pallas_call(
        functools.partial(_layernorm_kernel, eps=EPS),
        grid=(mp // tm,),
        in_specs=[
            pl.BlockSpec((tm, c), lambda i: (i, 0)),
            pl.BlockSpec((1, c), lambda i: (0, 0)),
            pl.BlockSpec((1, c), lambda i: (0, 0)),
        ],
        out_specs=pl.BlockSpec((tm, c), lambda i: (i, 0)),
        out_shape=jax.ShapeDtypeStruct((mp, c), jnp.float32),
        compiler_params=pltpu.CompilerParams(dimension_semantics=("parallel",)),
    )(xq, g.reshape(1, c).astype(jnp.float32), b.reshape(1, c).astype(jnp.float32))
    return out[:m] if mp != m else out


def attention(q, k, v, num_heads):
    """Multi-head softmax attention with lane-dense (1, S, E) blocks.  q,k,v: (B, S, E) f32."""
    bsz, s, e = q.shape
    dh = e // num_heads
    return pl.pallas_call(
        functools.partial(_attn_kernel, num_heads=num_heads, dh=dh,
                          scale=1.0 / float(np.sqrt(dh))),
        grid=(bsz,),
        in_specs=[pl.BlockSpec((1, s, e), lambda i: (i, 0, 0))] * 3,
        out_specs=pl.BlockSpec((1, s, e), lambda i: (i, 0, 0)),
        out_shape=jax.ShapeDtypeStruct((bsz, s, e), jnp.float32),
        compiler_params=pltpu.CompilerParams(dimension_semantics=("parallel",)),
    )(q, k, v)


PALLAS_OPS = dict(vgg_block=vgg_block_pallas, linear=linear,
                  layernorm=layernorm, attention=attention)


# ============================================================================
# Pure-JAX reference ops (same quantization points & BN formula -> tight comparison)
# ============================================================================
def ref_vgg_block(x, p, pool):
    n, h, w_, _ = x.shape
    count = float(n * h * w_)

    def conv(z, wgt):
        return lax.conv_general_dilated(
            z.astype(jnp.bfloat16), wgt.astype(jnp.bfloat16), (1, 1), "SAME",
            dimension_numbers=("NHWC", "HWIO", "NHWC"), preferred_element_type=jnp.float32)

    def bn_relu(y, gamma, beta):
        scale, shift = _bn_scale_shift(jnp.sum(y, axis=(0, 1, 2)),
                                       jnp.sum(y * y, axis=(0, 1, 2)), gamma, beta, count)
        yq = y.astype(jnp.bfloat16).astype(jnp.float32)     # mirror the bf16 conv cache
        return jnp.maximum(yq * scale + shift, 0.0)

    z1 = bn_relu(conv(x, p["w1"]), p["g1"], p["beta1"])
    z2 = bn_relu(conv(z1, p["w2"]), p["g2"], p["beta2"]).astype(jnp.bfloat16)
    if pool:
        pooled = z2.reshape(n, h // 2, 2, w_ // 2, 2, z2.shape[-1]).max(axis=(2, 4))
        return z2, pooled
    return z2, None


def ref_linear(x, w, b, act="none"):
    y = jnp.dot(x.astype(jnp.bfloat16), w.astype(jnp.bfloat16),
                preferred_element_type=jnp.float32) + b
    if act == "gelu":
        y = jax.nn.gelu(y, approximate=True)
    return y


def ref_layernorm(x, g, b):
    mu = jnp.mean(x, axis=-1, keepdims=True)
    xc = x - mu
    var = jnp.mean(xc * xc, axis=-1, keepdims=True)
    return xc * lax.rsqrt(var + EPS) * g + b


def ref_attention(q, k, v, num_heads):
    bsz, s, e = q.shape
    dh = e // num_heads

    def split(t):
        return t.reshape(bsz, s, num_heads, dh).transpose(0, 2, 1, 3)

    qh, kh, vh = split(q), split(k), split(v)
    scores = jnp.einsum("bhqd,bhkd->bhqk", qh * (1.0 / np.sqrt(dh)), kh)
    p = jax.nn.softmax(scores, axis=-1)
    o = jnp.einsum("bhqk,bhkd->bhqd", p, vh)
    return o.transpose(0, 2, 1, 3).reshape(bsz, s, e)


REF_OPS = dict(vgg_block=ref_vgg_block, linear=ref_linear,
               layernorm=ref_layernorm, attention=ref_attention)


# ============================================================================
# Shared structure (backend selected via `ops`)
# ============================================================================
def _upconv(x, p, lin):
    """ConvTranspose2d(k=2, s=2) as a matmul + pixel shuffle."""
    n, h, w, ci = x.shape
    co = p["w"].shape[1]
    wmat = jnp.transpose(p["w"], (0, 2, 3, 1)).reshape(ci, 4 * co)   # (ci, dy*dx*co)
    bmat = jnp.tile(p["b"], 4)
    y = lin(x.reshape(n * h * w, ci), wmat, bmat)
    y = y.reshape(n, h, w, 2, 2, co).transpose(0, 1, 3, 2, 4, 5).reshape(n, 2 * h, 2 * w, co)
    return y.astype(jnp.bfloat16)


def _transformer_block(x, p, lin, ln, attn, num_heads=NUM_HEADS):
    n, h, w, c = x.shape
    m = n * h * w
    xf = x.reshape(m, c).astype(jnp.float32)
    qkv = lin(xf, p["w_qkv"], p["b_qkv"])
    q = qkv[:, :c].reshape(n, h * w, c)
    k = qkv[:, c:2 * c].reshape(n, h * w, c)
    v = qkv[:, 2 * c:].reshape(n, h * w, c)
    a = attn(q, k, v, num_heads).reshape(m, c)
    a = lin(a, p["w_out"], p["b_out"])
    x1 = ln(xf + a, p["ln1_g"], p["ln1_b"])
    hdn = lin(x1, p["w_ffn1"], p["b_ffn1"], act="gelu")     # 1x1 conv + GELU
    f = lin(hdn, p["w_ffn2"], p["b_ffn2"])                  # 1x1 conv
    x2 = ln(x1 + f, p["ln2_g"], p["ln2_b"])
    return x2.reshape(n, h, w, c)


def transunet_forward(x_nchw, params, ops):
    vgg = ops["vgg_block"]
    lin = ops["linear"]
    ln = ops["layernorm"]
    attn = ops["attention"]

    # NCHW -> NHWC once at network entry.
    x = jnp.transpose(x_nchw, (0, 2, 3, 1)).astype(jnp.float32)

    x0, p0 = vgg(x, params["conv0_0"], True)       # encoder: pool fused into the BN apply
    x1, p1 = vgg(p0, params["conv1_0"], True)
    x2, p2 = vgg(p1, params["conv2_0"], True)
    x3, p3 = vgg(p2, params["conv3_0"], True)
    x4, _ = vgg(p3, params["conv4_0"], False)
    x4 = _transformer_block(x4, params["transformer"], lin, ln, attn)

    def dec(skip, up_in, up_p, conv_p):
        u = _upconv(up_in, up_p, lin)
        # TODO(synk): feed skip/upsampled as two conv-kernel inputs (split weight slabs) to
        # avoid materializing the channel concat in HBM.
        cat = jnp.concatenate([skip.astype(jnp.bfloat16), u], axis=-1)
        out, _ = vgg(cat, conv_p, False)
        return out

    d3 = dec(x3, x4, params["up4"], params["conv3_1"])
    d2 = dec(x2, d3, params["up3"], params["conv2_1"])
    d1 = dec(x1, d2, params["up2"], params["conv1_1"])
    d0 = dec(x0, d1, params["up1"], params["conv0_1"])

    n, h, w, c = d0.shape
    out = lin(d0.reshape(n * h * w, c).astype(jnp.float32),
              params["final"]["w"], params["final"]["b"])
    out = out.reshape(n, h, w, -1)
    return jnp.transpose(out, (0, 3, 1, 2))        # NHWC -> NCHW once at network exit


# ============================================================================
# Deterministic synthetic parameters (no checkpoint load)
# ============================================================================
class _KeyGen:
    def __init__(self, key):
        self._key = key
        self._i = 0

    def __call__(self):
        self._i += 1
        return jax.random.fold_in(self._key, self._i)


def make_params(key, in_ch, num_classes, nb=(32, 64, 128, 256, 512), ff=1024):
    kg = _KeyGen(key)

    def w_init(shape, fan_in):
        return jax.random.normal(kg(), shape, jnp.float32) * (0.5 / np.sqrt(fan_in))

    def vec(n, base=0.0, scale=0.1):
        return base + scale * jax.random.normal(kg(), (n,), jnp.float32)

    def vgg(ci, cm, co):
        # Conv biases omitted: they cancel exactly under training-mode BatchNorm.
        return dict(w1=w_init((3, 3, ci, cm), 9 * ci), g1=vec(cm, 1.0), beta1=vec(cm),
                    w2=w_init((3, 3, cm, co), 9 * cm), g2=vec(co, 1.0), beta2=vec(co))

    def up(ci, co):
        return dict(w=w_init((ci, co, 2, 2), ci), b=vec(co))

    e = nb[4]
    return dict(
        conv0_0=vgg(in_ch, nb[0], nb[0]),
        conv1_0=vgg(nb[0], nb[1], nb[1]),
        conv2_0=vgg(nb[1], nb[2], nb[2]),
        conv3_0=vgg(nb[2], nb[3], nb[3]),
        conv4_0=vgg(nb[3], nb[4], nb[4]),
        transformer=dict(
            w_qkv=w_init((e, 3 * e), e), b_qkv=vec(3 * e),
            w_out=w_init((e, e), e), b_out=vec(e),
            ln1_g=vec(e, 1.0), ln1_b=vec(e),
            w_ffn1=w_init((e, ff), e), b_ffn1=vec(ff),
            w_ffn2=w_init((ff, e), ff), b_ffn2=vec(e),
            ln2_g=vec(e, 1.0), ln2_b=vec(e)),
        up4=up(nb[4], nb[4]),
        conv3_1=vgg(nb[4] + nb[3], nb[3], nb[3]),
        up3=up(nb[3], nb[3]),
        conv2_1=vgg(nb[3] + nb[2], nb[2], nb[2]),
        up2=up(nb[2], nb[2]),
        conv1_1=vgg(nb[2] + nb[1], nb[1], nb[1]),
        up1=up(nb[1], nb[1]),
        conv0_1=vgg(nb[1] + nb[0], nb[0], nb[0]),
        final=dict(w=w_init((nb[0], num_classes), nb[0]), b=vec(num_classes)),
    )


if __name__ == "__main__":
    key = jax.random.PRNGKey(0)
    k_x, k_p = jax.random.split(key)

    batch, in_ch, hw, num_classes = 2, 3, 32, 2   # 4 pool levels -> 2x2 transformer bottleneck
    x = jax.random.normal(k_x, (batch, in_ch, hw, hw), jnp.float32)   # NCHW like PyTorch
    params = make_params(k_p, in_ch, num_classes)

    out = jax.block_until_ready(transunet_forward(x, params, PALLAS_OPS))
    ref = jax.block_until_ready(transunet_forward(x, params, REF_OPS))

    assert out.shape == (batch, num_classes, hw, hw), out.shape
    out_np = np.asarray(out)
    ref_np = np.asarray(ref)
    assert np.all(np.isfinite(out_np))
    # Both paths share the same BN formula and bf16 rounding points; the residual difference is
    # bf16 matmul accumulation-order drift across ~18 conv layers, hence the 5e-2 tolerance.
    np.testing.assert_allclose(out_np, ref_np, rtol=5e-2, atol=5e-2)

    print("KERNEL_OK")
</pallas_src>

<mosaic_0001>
module attributes {stable_mosaic.version = 11 : i64} {
  func.func @_conv3x3_kernel(%arg0: i32, %arg1: memref<1x18x34x128xbf16, #tpu.memory_space<vmem>>, %arg2: memref<1x128xf32, #tpu.memory_space<vmem>>, %arg3: memref<1x128xf32, #tpu.memory_space<vmem>>, %arg4: memref<3x384x128xbf16, #tpu.memory_space<vmem>>, %arg5: memref<1x16x32x128xbf16, #tpu.memory_space<vmem>>, %arg6: memref<1x2x128xf32, #tpu.memory_space<vmem>>) attributes {dimension_semantics = [#tpu.dimension_semantics<parallel>], iteration_bounds = array<i64: 4>, scalar_prefetch = 0 : i64, scratch_operands = 0 : i64, tpu.core_type = #tpu.core_type<tc>, window_params = [{transform_indices = @transform_0, window_bounds = array<i64: 1, 18, 34, 128>}, {pipeline_mode = #tpu.pipeline_mode<synchronous>, transform_indices = @transform_1, window_bounds = array<i64: 1, 128>}, {pipeline_mode = #tpu.pipeline_mode<synchronous>, transform_indices = @transform_2, window_bounds = array<i64: 1, 128>}, {pipeline_mode = #tpu.pipeline_mode<synchronous>, transform_indices = @transform_3, window_bounds = array<i64: 3, 384, 128>}, {transform_indices = @transform_4, window_bounds = array<i64: 1, 16, 32, 128>}, {transform_indices = @transform_5, window_bounds = array<i64: 1, 2, 128>}]} {
    %c0 = arith.constant 0 : index
    %c0_0 = arith.constant 0 : index
    %c0_1 = arith.constant 0 : index
    %c0_2 = arith.constant 0 : index
    %0 = vector.load %arg1[%c0, %c0_0, %c0_1, %c0_2] : memref<1x18x34x128xbf16, #tpu.memory_space<vmem>>, vector<1x18x34x128xbf16>
    %1 = vector.shape_cast %0 : vector<1x18x34x128xbf16> to vector<18x34x128xbf16>
    %cst = arith.constant 0.000000e+00 : f32
    %2 = vector.broadcast %cst : f32 to vector<512x128xf32>
    %3 = vector.extract_strided_slice %1 {offsets = [0, 0, 0], sizes = [16, 34, 128], strides = [1, 1, 1]} : vector<18x34x128xbf16> to vector<16x34x128xbf16>
    %4 = vector.extract_strided_slice %3 {offsets = [0, 0, 0], sizes = [16, 32, 128], strides = [1, 1, 1]} : vector<16x34x128xbf16> to vector<16x32x128xbf16>
    %5 = vector.extract_strided_slice %3 {offsets = [0, 1, 0], sizes = [16, 32, 128], strides = [1, 1, 1]} : vector<16x34x128xbf16> to vector<16x32x128xbf16>
    %6 = vector.extract_strided_slice %3 {offsets = [0, 2, 0], sizes = [16, 32, 128], strides = [1, 1, 1]} : vector<16x34x128xbf16> to vector<16x32x128xbf16>
    %7 = tpu.concatenate %4, %5, %6 in 2 : vector<16x32x128xbf16>, vector<16x32x128xbf16>, vector<16x32x128xbf16> -> vector<16x32x384xbf16>
    %8 = vector.shape_cast %7 : vector<16x32x384xbf16> to vector<512x384xbf16>
    %c0_3 = arith.constant 0 : index
    %c0_4 = arith.constant 0 : index
    %c0_5 = arith.constant 0 : index
    %9 = vector.load %arg4[%c0_3, %c0_4, %c0_5] : memref<3x384x128xbf16, #tpu.memory_space<vmem>>, vector<1x384x128xbf16>
    %10 = vector.shape_cast %9 : vector<1x384x128xbf16> to vector<384x128xbf16>
    %cst_6 = arith.constant dense<0.000000e+00> : vector<512x128xf32>
    %11 = tpu.matmul %8, %10, %cst_6 {dimension_numbers = #tpu.dot_dimension_numbers<[1], [0], [0], [1], [0, 0, 1, 1], [], []>} : vector<512x384xbf16>, vector<384x128xbf16>, vector<512x128xf32> -> vector<512x128xf32>
    %12 = arith.addf %2, %11 : vector<512x128xf32>
    %13 = vector.extract_strided_slice %1 {offsets = [1, 0, 0], sizes = [16, 34, 128], strides = [1, 1, 1]} : vector<18x34x128xbf16> to vector<16x34x128xbf16>
    %14 = vector.extract_strided_slice %13 {offsets = [0, 0, 0], sizes = [16, 32, 128], strides = [1, 1, 1]} : vector<16x34x128xbf16> to vector<16x32x128xbf16>
    %15 = vector.extract_strided_slice %13 {offsets = [0, 1, 0], sizes = [16, 32, 128], strides = [1, 1, 1]} : vector<16x34x128xbf16> to vector<16x32x128xbf16>
    %16 = vector.extract_strided_slice %13 {offsets = [0, 2, 0], sizes = [16, 32, 128], strides = [1, 1, 1]} : vector<16x34x128xbf16> to vector<16x32x128xbf16>
    %17 = tpu.concatenate %14, %15, %16 in 2 : vector<16x32x128xbf16>, vector<16x32x128xbf16>, vector<16x32x128xbf16> -> vector<16x32x384xbf16>
    %18 = vector.shape_cast %17 : vector<16x32x384xbf16> to vector<512x384xbf16>
    %c1 = arith.constant 1 : index
    %c0_7 = arith.constant 0 : index
    %c0_8 = arith.constant 0 : index
    %19 = vector.load %arg4[%c1, %c0_7, %c0_8] : memref<3x384x128xbf16, #tpu.memory_space<vmem>>, vector<1x384x128xbf16>
    %20 = vector.shape_cast %19 : vector<1x384x128xbf16> to vector<384x128xbf16>
    %cst_9 = arith.constant dense<0.000000e+00> : vector<512x128xf32>
    %21 = tpu.matmul %18, %20, %cst_9 {dimension_numbers = #tpu.dot_dimension_numbers<[1], [0], [0], [1], [0, 0, 1, 1], [], []>} : vector<512x384xbf16>, vector<384x128xbf16>, vector<512x128xf32> -> vector<512x128xf32>
    %22 = arith.addf %12, %21 : vector<512x128xf32>
    %23 = vector.extract_strided_slice %1 {offsets = [2, 0, 0], sizes = [16, 34, 128], strides = [1, 1, 1]} : vector<18x34x128xbf16> to vector<16x34x128xbf16>
    %24 = vector.extract_strided_slice %23 {offsets = [0, 0, 0], sizes = [16, 32, 128], strides = [1, 1, 1]} : vector<16x34x128xbf16> to vector<16x32x128xbf16>
    %25 = vector.extract_strided_slice %23 {offsets = [0, 1, 0], sizes = [16, 32, 128], strides = [1, 1, 1]} : vector<16x34x128xbf16> to vector<16x32x128xbf16>
    %26 = vector.extract_strided_slice %23 {offsets = [0, 2, 0], sizes = [16, 32, 128], strides = [1, 1, 1]} : vector<16x34x128xbf16> to vector<16x32x128xbf16>
    %27 = tpu.concatenate %24, %25, %26 in 2 : vector<16x32x128xbf16>, vector<16x32x128xbf16>, vector<16x32x128xbf16> -> vector<16x32x384xbf16>
    %28 = vector.shape_cast %27 : vector<16x32x384xbf16> to vector<512x384xbf16>
    %c2 = arith.constant 2 : index
    %c0_10 = arith.constant 0 : index
    %c0_11 = arith.constant 0 : index
    %29 = vector.load %arg4[%c2, %c0_10, %c0_11] : memref<3x384x128xbf16, #tpu.memory_space<vmem>>, vector<1x384x128xbf16>
    %30 = vector.shape_cast %29 : vector<1x384x128xbf16> to vector<384x128xbf16>
    %cst_12 = arith.constant dense<0.000000e+00> : vector<512x128xf32>
    %31 = tpu.matmul %28, %30, %cst_12 {dimension_numbers = #tpu.dot_dimension_numbers<[1], [0], [0], [1], [0, 0, 1, 1], [], []>} : vector<512x384xbf16>, vector<384x128xbf16>, vector<512x128xf32> -> vector<512x128xf32>
    %32 = arith.addf %22, %31 : vector<512x128xf32>
    %33 = vector.shape_cast %32 : vector<512x128xf32> to vector<16x32x128xf32>
    %34 = arith.truncf %33 : vector<16x32x128xf32> to vector<16x32x128xbf16>
    %c0_13 = arith.constant 0 : index
    %c0_14 = arith.constant 0 : index
    %c0_15 = arith.constant 0 : index
    %c0_16 = arith.constant 0 : index
    %35 = vector.load %arg5[%c0_13, %c0_14, %c0_15, %c0_16] : memref<1x16x32x128xbf16, #tpu.memory_space<vmem>>, vector<1x16x32x128xbf16>
    %36 = vector.shape_cast %35 : vector<1x16x32x128xbf16> to vector<16x32x128xbf16>
    %37 = vector.shape_cast %34 : vector<16x32x128xbf16> to vector<1x16x32x128xbf16>
    tpu.vector_store %arg5[%c0_13, %c0_14, %c0_15, %c0_16], %37 {strides = array<i32>} : memref<1x16x32x128xbf16, #tpu.memory_space<vmem>>, vector<1x16x32x128xbf16>,
    %cst_17 = arith.constant dense<0.000000e+00> : vector<128xf32>
    %38 = vector.multi_reduction <add>, %32, %cst_17 [0] : vector<512x128xf32> to vector<128xf32>
    %39 = vector.shape_cast %38 : vector<128xf32> to vector<1x128xf32>
    %c0_18 = arith.constant 0 : index
    %c0_19 = arith.constant 0 : index
    %c0_20 = arith.constant 0 : index
    %40 = vector.load %arg6[%c0_18, %c0_19, %c0_20] : memref<1x2x128xf32, #tpu.memory_space<vmem>>, vector<1x1x128xf32>
    %41 = vector.shape_cast %40 : vector<1x1x128xf32> to vector<1x128xf32>
    %42 = vector.shape_cast %39 : vector<1x128xf32> to vector<1x1x128xf32>
    tpu.vector_store %arg6[%c0_18, %c0_19, %c0_20], %42 {strides = array<i32>} : memref<1x2x128xf32, #tpu.memory_space<vmem>>, vector<1x1x128xf32>,
    %43 = arith.mulf %32, %32 : vector<512x128xf32>
    %cst_21 = arith.constant dense<0.000000e+00> : vector<128xf32>
    %44 = vector.multi_reduction <add>, %43, %cst_21 [0] : vector<512x128xf32> to vector<128xf32>
    %45 = vector.shape_cast %44 : vector<128xf32> to vector<1x128xf32>
    %c0_22 = arith.constant 0 : index
    %c1_23 = arith.constant 1 : index
    %c0_24 = arith.constant 0 : index
    %46 = vector.load %arg6[%c0_22, %c1_23, %c0_24] : memref<1x2x128xf32, #tpu.memory_space<vmem>>, vector<1x1x128xf32>
    %47 = vector.shape_cast %46 : vector<1x1x128xf32> to vector<1x128xf32>
    %48 = vector.shape_cast %45 : vector<1x128xf32> to vector<1x1x128xf32>
    tpu.vector_store %arg6[%c0_22, %c1_23, %c0_24], %48 {strides = array<i32>} : memref<1x2x128xf32, #tpu.memory_space<vmem>>, vector<1x1x128xf32>,
    return
  }
  func.func @transform_0(%arg0: i32) -> (i32, i32, i32, i32) {
    %c0_i32 = arith.constant 0 : i32
    %c0_i32_0 = arith.constant 0 : i32
    %c0_i32_1 = arith.constant 0 : i32
    %c0_i32_2 = arith.constant 0 : i32
    return %arg0, %c0_i32, %c0_i32_0, %c0_i32_1 : i32, i32, i32, i32
  }
  func.func @transform_1(%arg0: i32) -> (i32, i32) {
    %c0_i32 = arith.constant 0 : i32
    %c0_i32_0 = arith.constant 0 : i32
    %c0_i32_1 = arith.constant 0 : i32
    return %c0_i32, %c0_i32_0 : i32, i32
  }
  func.func @transform_2(%arg0: i32) -> (i32, i32) {
    %c0_i32 = arith.constant 0 : i32
    %c0_i32_0 = arith.constant 0 : i32
    %c0_i32_1 = arith.constant 0 : i32
    return %c0_i32, %c0_i32_0 : i32, i32
  }
  func.func @transform_3(%arg0: i32) -> (i32, i32, i32) {
    %c0_i32 = arith.constant 0 : i32
    %c0_i32_0 = arith.constant 0 : i32
    %c0_i32_1 = arith.constant 0 : i32
    %c0_i32_2 = arith.constant 0 : i32
    return %c0_i32, %c0_i32_0, %c0_i32_1 : i32, i32, i32
  }
  func.func @transform_4(%arg0: i32) -> (i32, i32, i32, i32) {
    %c0_i32 = arith.constant 0 : i32
    %c0_i32_0 = arith.constant 0 : i32
    %c0_i32_1 = arith.constant 0 : i32
    %c0_i32_2 = arith.constant 0 : i32
    return %arg0, %c0_i32, %c0_i32_0, %c0_i32_1 : i32, i32, i32, i32
  }
  func.func @transform_5(%arg0: i32) -> (i32, i32, i32) {
    %c0_i32 = arith.constant 0 : i32
    %c0_i32_0 = arith.constant 0 : i32
    %c0_i32_1 = arith.constant 0 : i32
    return %arg0, %c0_i32, %c0_i32_0 : i32, i32, i32
  }
}

</mosaic_0001>

<llo_original>
// kernel: tpu_custom_call.1
$region0: #{tpu_custom_call.1}
  #allocation0 [shape = 'u32[]', space=smem, size = 0x4, offset = 0x4, fixed_abs, tag = 'smem constant byte address 0x4 - core index']
  #allocation1 [shape = 'u32[144,128]{1,0:T(1,128)}', space=vmem, size = 0x12000, scoped, tag = 'internal scratch']
  %s0 = inlined_call_operand.vmem [shape: bf16[4,18,34,128], index: 0, kind: input, shape index: {}]
  %s1 = inlined_call_operand.vmem [shape: f32[1,128], index: 1, kind: input, shape index: {}]
  %s2 = inlined_call_operand.vmem [shape: f32[1,128], index: 2, kind: input, shape index: {}]
  %s3 = inlined_call_operand.vmem [shape: bf16[3,384,128], index: 3, kind: input, shape index: {}]
  %s4 = inlined_call_operand.hbm [shape: bf16[4,16,32,128], index: 4, kind: output, shape index: {0}]
  %s5 = inlined_call_operand.hbm [shape: f32[4,2,128], index: 5, kind: output, shape index: {1}]
  %6 = xla_tuple %s4, %s5
  %s7 = sld [smem:[#allocation0]]
  $region57: #{tpu_custom_call.1} parent=0
    _
  %s9 = ssub.s32 1, %s7
  %s10 = scalar_select 0, %s9, %s7
  $region1: #{tpu_custom_call.1} parent=0
    #allocation2 [shape = 'u8[262144]{0}', space=vmem, size = 0x40000, scoped, tag = 'output window, operand 0']
    #allocation3 [shape = 's32[2]{0}', space=sflag, size = 0x8, scoped, tag = 'scoped memory for tpu_custom_call.1']
    #allocation4 [shape = 'u8[2048]{0}', space=vmem, size = 0x800, scoped, tag = 'output window, operand 1']
    #allocation5 [shape = 's32[2]{0}', space=sflag, size = 0x8, scoped, tag = 'scoped memory for tpu_custom_call.1']
    %11 = vsyncpa [#allocation3], 0
    %s12 = scalar_lea.sflag [#allocation3], 1
    %13 = vsyncpa %s12, 0
    %14 = vsyncpa [#allocation5], 0
    %s15 = scalar_lea.sflag [#allocation5], 1
    %16 = vsyncpa %s15, 0
    loop: start=0, step=1, limit=6
    $region2: #{tpu_custom_call.1} parent=1 // loop_pre_header
      _
    $region3: #{tpu_custom_call.1} parent=1 // loop_header
      %s18 = sphi 0, %s22
      %p19 = scmp.ge.s32.totalorder %s18, 6
      %s28 = sphi 0, %s30
      %s31 = sphi 0, %s28
      %s32 = sphi 0, %s31
      %s48 = sphi 0, %s32
      %s52 = sphi 0, %s52
      %s54 = sphi 0, %s52
      %s55 = sphi 0, %s54
      %s69 = sphi 0, %s55
      %s73 = sphi 0, %s73
      %s75 = sphi 0, %s73
      %s76 = sphi 0, %s75
      %s90 = sphi 0, %s76
      %s94 = sphi 0, %s94
      %s96 = sphi 0, %s94
      %s97 = sphi 0, %s96
      %s111 = sphi 0, %s97
      %s117 = sphi 0, %s119
      %s120 = sphi 0, %s117
      %s121 = sphi 0, %s120
      %s137 = sphi 0, %s121
      %s143 = sphi 0, %s145
      %s146 = sphi 0, %s143
      %s147 = sphi 0, %s146
      %s163 = sphi 0, %s147
    $region4: #{tpu_custom_call.1} parent=1 // loop_header_branch
      %21 = sbr.rel (%p19) target = $region8
    $region5: #{tpu_custom_call.1} parent=1 // loop_body
      %s23 = ssub.s32 %s18, 1
      %s24 = ssub.s32 %s18, 2
      %s25 = sadd.s32 %s18, 1
      %s26 = ssub.s32 %s18, %s25
      %p27 = scmp.eq.s32.totalorder %s26, 0
      %s29 = sadd.s32 %s28, 1
      %s30 = scalar_select %p27, %s28, %s29
      %p33 = pneg %p27
      %p34 = scmp.eq.s32.totalorder %s18, 3
      %p35 = por %p33, %p34
      %p36 = scmp.ne.s32.totalorder %s28, %s31
      %p37 = scmp.eq.s32.totalorder %s18, 0
      %p38 = por %p36, %p37
      %p39 = scmp.ne.s32.totalorder %s28, %s31
      %p40 = scmp.eq.s32.totalorder %s23, 3
      %p41 = por %p39, %p40
      %p42 = scmp.ne.s32.totalorder %s31, %s32
      %p43 = scmp.eq.s32.totalorder %s23, 0
      %p44 = por %p42, %p43
      %p45 = scmp.ne.s32.totalorder %s31, %s32
      %p46 = scmp.eq.s32.totalorder %s24, 3
      %p47 = por %p45, %p46
      %p49 = scmp.ne.s32.totalorder %s32, %s48
      %p50 = scmp.eq.s32.totalorder %s24, 0
      %p51 = por %p49, %p50
      %s53 = sadd.s32 %s52, 1
      %p56 = scmp.eq.s32.totalorder %s18, 3
      %p57 = scmp.ne.s32.totalorder %s52, %s54
      %p58 = scmp.eq.s32.totalorder %s18, 0
      %p59 = por %p57, %p58
      %p60 = scmp.ne.s32.totalorder %s52, %s54
      %p61 = scmp.eq.s32.totalorder %s23, 3
      %p62 = por %p60, %p61
      %p63 = scmp.ne.s32.totalorder %s54, %s55
      %p64 = scmp.eq.s32.totalorder %s23, 0
      %p65 = por %p63, %p64
      %p66 = scmp.ne.s32.totalorder %s54, %s55
      %p67 = scmp.eq.s32.totalorder %s24, 3
      %p68 = por %p66, %p67
      %p70 = scmp.ne.s32.totalorder %s55, %s69
      %p71 = scmp.eq.s32.totalorder %s24, 0
      %p72 = por %p70, %p71
      %s74 = sadd.s32 %s73, 1
      %p77 = scmp.eq.s32.totalorder %s18, 3
      %p78 = scmp.ne.s32.totalorder %s73, %s75
      %p79 = scmp.eq.s32.totalorder %s18, 0
      %p80 = por %p78, %p79
      %p81 = scmp.ne.s32.totalorder %s73, %s75
      %p82 = scmp.eq.s32.totalorder %s23, 3
      %p83 = por %p81, %p82
      %p84 = scmp.ne.s32.totalorder %s75, %s76
      %p85 = scmp.eq.s32.totalorder %s23, 0
      %p86 = por %p84, %p85
      %p87 = scmp.ne.s32.totalorder %s75, %s76
      %p88 = scmp.eq.s32.totalorder %s24, 3
      %p89 = por %p87, %p88
      %p91 = scmp.ne.s32.totalorder %s76, %s90
      %p92 = scmp.eq.s32.totalorder %s24, 0
      %p93 = por %p91, %p92
      %s95 = sadd.s32 %s94, 1
      %p98 = scmp.eq.s32.totalorder %s18, 3
      %p99 = scmp.ne.s32.totalorder %s94, %s96
      %p100 = scmp.eq.s32.totalorder %s18, 0
      %p101 = por %p99, %p100
      %p102 = scmp.ne.s32.totalorder %s94, %s96
      %p103 = scmp.eq.s32.totalorder %s23, 3
      %p104 = por %p102, %p103
      %p105 = scmp.ne.s32.totalorder %s96, %s97
      %p106 = scmp.eq.s32.totalorder %s23, 0
      %p107 = por %p105, %p106
      %p108 = scmp.ne.s32.totalorder %s96, %s97
      %p109 = scmp.eq.s32.totalorder %s24, 3
      %p110 = por %p108, %p109
      %p112 = scmp.ne.s32.totalorder %s97, %s111
      %p113 = scmp.eq.s32.totalorder %s24, 0
      %p114 = por %p112, %p113
      %s115 = ssub.s32 %s18, %s25
      %p116 = scmp.eq.s32.totalorder %s115, 0
      %s118 = sadd.s32 %s117, 1
      %s119 = scalar_select %p116, %s117, %s118
      %p122 = pneg %p116
      %p123 = scmp.eq.s32.totalorder %s18, 3
      %p124 = por %p122, %p123
      %p125 = scmp.ne.s32.totalorder %s117, %s120
      %p126 = scmp.eq.s32.totalorder %s18, 0
      %p127 = por %p125, %p126
      %p128 = scmp.ne.s32.totalorder %s117, %s120
      %p129 = scmp.eq.s32.totalorder %s23, 3
      %p130 = por %p128, %p129
      %p131 = scmp.ne.s32.totalorder %s120, %s121
      %p132 = scmp.eq.s32.totalorder %s23, 0
      %p133 = por %p131, %p132
      %p134 = scmp.ne.s32.totalorder %s120, %s121
      %p135 = scmp.eq.s32.totalorder %s24, 3
      %p136 = por %p134, %p135
      %p138 = scmp.ne.s32.totalorder %s121, %s137
      %p139 = scmp.eq.s32.totalorder %s24, 0
      %p140 = por %p138, %p139
      %s141 = ssub.s32 %s18, %s25
      %p142 = scmp.eq.s32.totalorder %s141, 0
      %s144 = sadd.s32 %s143, 1
      %s145 = scalar_select %p142, %s143, %s144
      %p148 = pneg %p142
      %p149 = scmp.eq.s32.totalorder %s18, 3
      %p150 = por %p148, %p149
      %p151 = scmp.ne.s32.totalorder %s143, %s146
      %p152 = scmp.eq.s32.totalorder %s18, 0
      %p153 = por %p151, %p152
      %p154 = scmp.ne.s32.totalorder %s143, %s146
      %p155 = scmp.eq.s32.totalorder %s23, 3
      %p156 = por %p154, %p155
      %p157 = scmp.ne.s32.totalorder %s146, %s147
      %p158 = scmp.eq.s32.totalorder %s23, 0
      %p159 = por %p157, %p158
      %p160 = scmp.ne.s32.totalorder %s146, %s147
      %p161 = scmp.eq.s32.totalorder %s24, 3
      %p162 = por %p160, %p161
      %p164 = scmp.ne.s32.totalorder %s147, %s163
      %p165 = scmp.eq.s32.totalorder %s24, 0
      %p166 = por %p164, %p165
      %p167 = scmp.le.s32.totalorder 1, %s18
      %p168 = scmp.lt.s32.totalorder %s18, 5
      %p169 = pnand %p167, %p168
      %p170 = pneg %p169
      // Predicated region
      $region9: #{tpu_custom_call.1} parent=5 // pred_check
        _
      $region10: #{tpu_custom_call.1} parent=5 // pred_check_branch
        %172 = sbr.rel (%p169) target = $region12
      $region11: #{tpu_custom_call.1} parent=5 // pred_region
        %s173 = ssub.s32 %s18, 1
        // Predicated region
        $region13: #{tpu_custom_call.1} parent=11 // pred_check
          %p174 = pneg %p65
        $region14: #{tpu_custom_call.1} parent=11 // pred_check_branch
          %176 = sbr.rel (%p174) target = $region16
        $region15: #{tpu_custom_call.1} parent=11 // pred_region
          _
        $region16: #{tpu_custom_call.1} parent=11 // pred_fallthru
          _
        // Predicated region
        $region17: #{tpu_custom_call.1} parent=11 // pred_check
          %p177 = pneg %p86
        $region18: #{tpu_custom_call.1} parent=11 // pred_check_branch
          %179 = sbr.rel (%p177) target = $region20
        $region19: #{tpu_custom_call.1} parent=11 // pred_region
          _
        $region20: #{tpu_custom_call.1} parent=11 // pred_fallthru
          _
        // Predicated region
        $region21: #{tpu_custom_call.1} parent=11 // pred_check
          %p180 = pneg %p107
        $region22: #{tpu_custom_call.1} parent=11 // pred_check_branch
          %182 = sbr.rel (%p180) target = $region24
        $region23: #{tpu_custom_call.1} parent=11 // pred_region
          _
        $region24: #{tpu_custom_call.1} parent=11 // pred_fallthru
          _
      $region12: #{tpu_custom_call.1} parent=5 // pred_fallthru
        _
      %p183 = scmp.lt.s32.totalorder %s18, 4
      // Predicated region
      $region25: #{tpu_custom_call.1} parent=5 // pred_check
        %p184 = pneg %p183
      $region26: #{tpu_custom_call.1} parent=5 // pred_check_branch
        %186 = sbr.rel (%p184) target = $region28
      $region27: #{tpu_custom_call.1} parent=5 // pred_region
        // Predicated region
        $region29: #{tpu_custom_call.1} parent=27 // pred_check
          %p187 = pneg %p38
        $region30: #{tpu_custom_call.1} parent=27 // pred_check_branch
          %189 = sbr.rel (%p187) target = $region32
        $region31: #{tpu_custom_call.1} parent=27 // pred_region
          %p190 = scmp.lt.s32.totalorder %s18, 3
          %s191 = scalar_select %p190, %s18, 3
          %s192 = smul.addr %s191, 90
          %s193 = smul.addr %s192, 4
          %s194 = scalar_lea.vmem %s0, %s193
        $region32: #{tpu_custom_call.1} parent=27 // pred_fallthru
          _
      $region28: #{tpu_custom_call.1} parent=5 // pred_fallthru
        _
      %p195 = scmp.le.s32.totalorder 1, %s18
      %p196 = scmp.lt.s32.totalorder %s18, 5
      %p197 = pnand %p195, %p196
      %p198 = pneg %p197
      // Predicated region
      $region33: #{tpu_custom_call.1} parent=5 // pred_check
        _
      $region34: #{tpu_custom_call.1} parent=5 // pred_check_branch
        %200 = sbr.rel (%p197) target = $region36
      $region35: #{tpu_custom_call.1} parent=5 // pred_region
        %s201 = ssub.s32 %s18, 1
        %p202 = scmp.lt.s32.totalorder %s23, 3
        %s203 = scalar_select %p202, %s23, 3
        %s204 = smul.addr %s203, 90
        %s205 = smul.addr %s204, 4
        %s206 = scalar_lea.vmem %s0, %s205
        %p207 = pneg %p44
        %p208 = pneg %p41
        %p209 = pneg %p65
        %p210 = pneg %p62
        %p211 = pneg %p86
        %p212 = pneg %p83
        %p213 = pneg %p107
        %p214 = pneg %p104
        %p215 = pneg %p133
        %p216 = pneg %p130
        %s217 = sand.u32 %s120, 1
        %s218 = scalar_lea.sflag [#allocation3], %s217
        %s219 = sand.u32 %s120, 1
        %s220 = smul.addr %s219, 256
        %s221 = scalar_lea.vmem [#allocation2], %s220
        %p222 = pneg %p159
        %p223 = pneg %p156
        %s224 = sand.u32 %s146, 1
        %s225 = scalar_lea.sflag [#allocation5], %s224
        %s226 = sand.u32 %s146, 1
        %s227 = smul.addr %s226, 2
        %s228 = scalar_lea.vmem [#allocation4], %s227
        %p229 = scmp.lt.s32.totalorder %s23, 3
        %s230 = scalar_select %p229, %s23, 3
        %s231 = smul.addr %s230, 90
        %s232 = smul.addr %s231, 4
        %s233 = scalar_lea.vmem %s0, %s232
        %v235 = vld [vmem:[%s233] sm:$0xf]
        %v236 = vld [vmem:[%s233 + $0x4] sm:$0xf]
        %v237 = vld [vmem:[%s233 + $0x8] sm:$0xf]
        %v238 = vld [vmem:[%s233 + $0xc] sm:$0xf]
        %v239 = vld [vmem:[%s233 + $0x10] sm:$0x1]
        %v240 = vld [vmem:[%s233 + $0x14] sm:$0xf]
        %v241 = vld [vmem:[%s233 + $0x18] sm:$0xf]
        %v242 = vld [vmem:[%s233 + $0x1c] sm:$0xf]
        %v243 = vld [vmem:[%s233 + $0x20] sm:$0xf]
        %v244 = vld [vmem:[%s233 + $0x24] sm:$0x1]
        %v245 = vld [vmem:[%s233 + $0x28] sm:$0xf]
        %v246 = vld [vmem:[%s233 + $0x2c] sm:$0xf]
        %v247 = vld [vmem:[%s233 + $0x30] sm:$0xf]
        %v248 = vld [vmem:[%s233 + $0x34] sm:$0xf]
        %v249 = vld [vmem:[%s233 + $0x38] sm:$0x1]
        %v250 = vld [vmem:[%s233 + $0x3c] sm:$0xf]
        %v251 = vld [vmem:[%s233 + $0x40] sm:$0xf]
        %v252 = vld [vmem:[%s233 + $0x44] sm:$0xf]
        %v253 = vld [vmem:[%s233 + $0x48] sm:$0xf]
        %v254 = vld [vmem:[%s233 + $0x4c] sm:$0x1]
        %v255 = vld [vmem:[%s233 + $0x50] sm:$0xf]
        %v256 = vld [vmem:[%s233 + $0x54] sm:$0xf]
        %v257 = vld [vmem:[%s233 + $0x58] sm:$0xf]
        %v258 = vld [vmem:[%s233 + $0x5c] sm:$0xf]
        %v259 = vld [vmem:[%s233 + $0x60] sm:$0x1]
        %v260 = vld [vmem:[%s233 + $0x64] sm:$0xf]
        %v261 = vld [vmem:[%s233 + $0x68] sm:$0xf]
        %v262 = vld [vmem:[%s233 + $0x6c] sm:$0xf]
        %v263 = vld [vmem:[%s233 + $0x70] sm:$0xf]
        %v264 = vld [vmem:[%s233 + $0x74] sm:$0x1]
        %v265 = vld [vmem:[%s233 + $0x78] sm:$0xf]
        %v266 = vld [vmem:[%s233 + $0x7c] sm:$0xf]
        %v267 = vld [vmem:[%s233 + $0x80] sm:$0xf]
        %v268 = vld [vmem:[%s233 + $0x84] sm:$0xf]
        %v269 = vld [vmem:[%s233 + $0x88] sm:$0x1]
        %v270 = vld [vmem:[%s233 + $0x8c] sm:$0xf]
        %v271 = vld [vmem:[%s233 + $0x90] sm:$0xf]
        %v272 = vld [vmem:[%s233 + $0x94] sm:$0xf]
        %v273 = vld [vmem:[%s233 + $0x98] sm:$0xf]
        %v274 = vld [vmem:[%s233 + $0x9c] sm:$0x1]
        %v275 = vld [vmem:[%s233 + $0xa0] sm:$0xf]
        %v276 = vld [vmem:[%s233 + $0xa4] sm:$0xf]
        %v277 = vld [vmem:[%s233 + $0xa8] sm:$0xf]
        %v278 = vld [vmem:[%s233 + $0xac] sm:$0xf]
        %v279 = vld [vmem:[%s233 + $0xb0] sm:$0x1]
        %v280 = vld [vmem:[%s233 + $0xb4] sm:$0xf]
        %v281 = vld [vmem:[%s233 + $0xb8] sm:$0xf]
        %v282 = vld [vmem:[%s233 + $0xbc] sm:$0xf]
        %v283 = vld [vmem:[%s233 + $0xc0] sm:$0xf]
        %v284 = vld [vmem:[%s233 + $0xc4] sm:$0x1]
        %v285 = vld [vmem:[%s233 + $0xc8] sm:$0xf]
        %v286 = vld [vmem:[%s233 + $0xcc] sm:$0xf]
        %v287 = vld [vmem:[%s233 + $0xd0] sm:$0xf]
        %v288 = vld [vmem:[%s233 + $0xd4] sm:$0xf]
        %v289 = vld [vmem:[%s233 + $0xd8] sm:$0x1]
        %v290 = vld [vmem:[%s233 + $0xdc] sm:$0xf]
        %v291 = vld [vmem:[%s233 + $0xe0] sm:$0xf]
        %v292 = vld [vmem:[%s233 + $0xe4] sm:$0xf]
        %v293 = vld [vmem:[%s233 + $0xe8] sm:$0xf]
        %v294 = vld [vmem:[%s233 + $0xec] sm:$0x1]
        %v295 = vld [vmem:[%s233 + $0xf0] sm:$0xf]
        %v296 = vld [vmem:[%s233 + $0xf4] sm:$0xf]
        %v297 = vld [vmem:[%s233 + $0xf8] sm:$0xf]
        %v298 = vld [vmem:[%s233 + $0xfc] sm:$0xf]
        %v299 = vld [vmem:[%s233 + $0x100] sm:$0x1]
        %v300 = vld [vmem:[%s233 + $0x104] sm:$0xf]
        %v301 = vld [vmem:[%s233 + $0x108] sm:$0xf]
        %v302 = vld [vmem:[%s233 + $0x10c] sm:$0xf]
        %v303 = vld [vmem:[%s233 + $0x110] sm:$0xf]
        %v304 = vld [vmem:[%s233 + $0x114] sm:$0x1]
        %v305 = vld [vmem:[%s233 + $0x118] sm:$0xf]
        %v306 = vld [vmem:[%s233 + $0x11c] sm:$0xf]
        %v307 = vld [vmem:[%s233 + $0x120] sm:$0xf]
        %v308 = vld [vmem:[%s233 + $0x124] sm:$0xf]
        %v309 = vld [vmem:[%s233 + $0x128] sm:$0x1]
        %v310 = vld [vmem:[%s233 + $0x12c] sm:$0xf]
        %v311 = vld [vmem:[%s233 + $0x130] sm:$0xf]
        %v312 = vld [vmem:[%s233 + $0x134] sm:$0xf]
        %v313 = vld [vmem:[%s233 + $0x138] sm:$0xf]
        %v314 = vld [vmem:[%s233 + $0x13c] sm:$0x1]
        %v315 = vld [vmem:[%s233 + $0x140] sm:$0xf]
        %v316 = vld [vmem:[%s233 + $0x144] sm:$0xf]
        %v317 = vld [vmem:[%s233 + $0x148] sm:$0xf]
        %v318 = vld [vmem:[%s233 + $0x14c] sm:$0xf]
        %v319 = vld [vmem:[%s233 + $0x150] sm:$0x1]
        %v320 = vld [vmem:[%s233 + $0x154] sm:$0xf]
        %v321 = vld [vmem:[%s233 + $0x158] sm:$0xf]
        %v322 = vld [vmem:[%s233 + $0x15c] sm:$0xf]
        %v323 = vld [vmem:[%s233 + $0x160] sm:$0xf]
        %v324 = vld [vmem:[%s233 + $0x164] sm:$0x1]
        %v389 = vunpack.c.l.b16 %v235
        %v390 = vunpack.c.l.b16 %v236
        %v391 = vunpack.c.l.b16 %v237
        %v392 = vunpack.c.l.b16 %v238
        %v393 = vunpack.c.l.b16 %v240
        %v394 = vunpack.c.l.b16 %v241
        %v395 = vunpack.c.l.b16 %v242
        %v396 = vunpack.c.l.b16 %v243
        %v397 = vunpack.c.l.b16 %v245
        %v398 = vunpack.c.l.b16 %v246
        %v399 = vunpack.c.l.b16 %v247
        %v400 = vunpack.c.l.b16 %v248
        %v401 = vunpack.c.l.b16 %v250
        %v402 = vunpack.c.l.b16 %v251
        %v403 = vunpack.c.l.b16 %v252
        %v404 = vunpack.c.l.b16 %v253
        %v405 = vunpack.c.l.b16 %v255
        %v406 = vunpack.c.l.b16 %v256
        %v407 = vunpack.c.l.b16 %v257
        %v408 = vunpack.c.l.b16 %v258
        %v409 = vunpack.c.l.b16 %v260
        %v410 = vunpack.c.l.b16 %v261
        %v411 = vunpack.c.l.b16 %v262
        %v412 = vunpack.c.l.b16 %v263
        %v413 = vunpack.c.l.b16 %v265
        %v414 = vunpack.c.l.b16 %v266
        %v415 = vunpack.c.l.b16 %v267
        %v416 = vunpack.c.l.b16 %v268
        %v417 = vunpack.c.l.b16 %v270
        %v418 = vunpack.c.l.b16 %v271
        %v419 = vunpack.c.l.b16 %v272
        %v420 = vunpack.c.l.b16 %v273
        %v421 = vunpack.c.l.b16 %v275
        %v422 = vunpack.c.l.b16 %v276
        %v423 = vunpack.c.l.b16 %v277
        %v424 = vunpack.c.l.b16 %v278
        %v425 = vunpack.c.l.b16 %v280
        %v426 = vunpack.c.l.b16 %v281
        %v427 = vunpack.c.l.b16 %v282
        %v428 = vunpack.c.l.b16 %v283
        %v429 = vunpack.c.l.b16 %v285
        %v430 = vunpack.c.l.b16 %v286
        %v431 = vunpack.c.l.b16 %v287
        %v432 = vunpack.c.l.b16 %v288
        %v433 = vunpack.c.l.b16 %v290
        %v434 = vunpack.c.l.b16 %v291
        %v435 = vunpack.c.l.b16 %v292
        %v436 = vunpack.c.l.b16 %v293
        %v437 = vunpack.c.l.b16 %v295
        %v438 = vunpack.c.l.b16 %v296
        %v439 = vunpack.c.l.b16 %v297
        %v440 = vunpack.c.l.b16 %v298
        %v441 = vunpack.c.l.b16 %v300
        %v442 = vunpack.c.l.b16 %v301
        %v443 = vunpack.c.l.b16 %v302
        %v444 = vunpack.c.l.b16 %v303
        %v445 = vunpack.c.l.b16 %v305
        %v446 = vunpack.c.l.b16 %v306
        %v447 = vunpack.c.l.b16 %v307
        %v448 = vunpack.c.l.b16 %v308
        %v449 = vunpack.c.l.b16 %v310
        %v450 = vunpack.c.l.b16 %v311
        %v451 = vunpack.c.l.b16 %v312
        %v452 = vunpack.c.l.b16 %v313
        %v453 = vpack.c.b16 %v390, %v389
        %v454 = vpack.c.b16 %v392, %v391
        %v455 = vpack.c.b16 %v394, %v393
        %v456 = vpack.c.b16 %v396, %v395
        %v457 = vpack.c.b16 %v398, %v397
        %v458 = vpack.c.b16 %v400, %v399
        %v459 = vpack.c.b16 %v402, %v401
        %v460 = vpack.c.b16 %v404, %v403
        %v461 = vpack.c.b16 %v406, %v405
        %v462 = vpack.c.b16 %v408, %v407
        %v463 = vpack.c.b16 %v410, %v409
        %v464 = vpack.c.b16 %v412, %v411
        %v465 = vpack.c.b16 %v414, %v413
        %v466 = vpack.c.b16 %v416, %v415
        %v467 = vpack.c.b16 %v418, %v417
        %v468 = vpack.c.b16 %v420, %v419
        %v469 = vpack.c.b16 %v422, %v421
        %v470 = vpack.c.b16 %v424, %v423
        %v471 = vpack.c.b16 %v426, %v425
        %v472 = vpack.c.b16 %v428, %v427
        %v473 = vpack.c.b16 %v430, %v429
        %v474 = vpack.c.b16 %v432, %v431
        %v475 = vpack.c.b16 %v434, %v433
        %v476 = vpack.c.b16 %v436, %v435
        %v477 = vpack.c.b16 %v438, %v437
        %v478 = vpack.c.b16 %v440, %v439
        %v479 = vpack.c.b16 %v442, %v441
        %v480 = vpack.c.b16 %v444, %v443
        %v481 = vpack.c.b16 %v446, %v445
        %v482 = vpack.c.b16 %v448, %v447
        %v483 = vpack.c.b16 %v450, %v449
        %v484 = vpack.c.b16 %v452, %v451
        %v533 = vunpack.c.l.b16 %v239
        %v534 = vunpack.c.l.b16 %v244
        %v535 = vunpack.c.l.b16 %v249
        %v536 = vunpack.c.l.b16 %v254
        %v537 = vunpack.c.l.b16 %v259
        %v538 = vunpack.c.l.b16 %v264
        %v539 = vunpack.c.l.b16 %v269
        %v540 = vunpack.c.l.b16 %v274
        %v541 = vunpack.c.l.b16 %v279
        %v542 = vunpack.c.l.b16 %v284
        %v543 = vunpack.c.l.b16 %v289
        %v544 = vunpack.c.l.b16 %v294
        %v545 = vunpack.c.l.b16 %v299
        %v546 = vunpack.c.l.b16 %v304
        %v547 = vunpack.c.l.b16 %v309
        %v548 = vunpack.c.l.b16 %v314
        %v549 = vpack.c.b16 %v533, %v533
        %v550 = vpack.c.b16 %v534, %v534
        %v551 = vpack.c.b16 %v535, %v535
        %v552 = vpack.c.b16 %v536, %v536
        %v553 = vpack.c.b16 %v537, %v537
        %v554 = vpack.c.b16 %v538, %v538
        %v555 = vpack.c.b16 %v539, %v539
        %v556 = vpack.c.b16 %v540, %v540
        %v557 = vpack.c.b16 %v541, %v541
        %v558 = vpack.c.b16 %v542, %v542
        %v559 = vpack.c.b16 %v543, %v543
        %v560 = vpack.c.b16 %v544, %v544
        %v561 = vpack.c.b16 %v545, %v545
        %v562 = vpack.c.b16 %v546, %v546
        %v563 = vpack.c.b16 %v547, %v547
        %v564 = vpack.c.b16 %v548, %v548
        %vm565 = vsmask.f32 7424
        %v567 = vshrl.u32 %v453, 16
        %v569 = vshll.u32 %v453, 16
        %v571 = vrot.slane %v569, 1
        %v572 = vor.u32 %v567, %v571
        %v574 = vshll.u32 %v454, 16
        %v576 = vrot.slane %v574, 1
        %v577 = vsel %vm565, %v572, %v576
        %v578 = vshrl.u32 %v454, 16
        %v580 = vor.u32 %v578, %v576
        %v582 = vshll.u32 %v549, 16
        %v584 = vrot.slane %v582, 1
        %v585 = vsel %vm565, %v580, %v584
        %v587 = vshrl.u32 %v455, 16
        %v589 = vshll.u32 %v455, 16
        %v591 = vrot.slane %v589, 1
        %v592 = vor.u32 %v587, %v591
        %v594 = vshll.u32 %v456, 16
        %v596 = vrot.slane %v594, 1
        %v597 = vsel %vm565, %v592, %v596
        %v598 = vshrl.u32 %v456, 16
        %v600 = vor.u32 %v598, %v596
        %v602 = vshll.u32 %v550, 16
        %v604 = vrot.slane %v602, 1
        %v605 = vsel %vm565, %v600, %v604
        %v607 = vshrl.u32 %v457, 16
        %v609 = vshll.u32 %v457, 16
        %v611 = vrot.slane %v609, 1
        %v612 = vor.u32 %v607, %v611
        %v614 = vshll.u32 %v458, 16
        %v616 = vrot.slane %v614, 1
        %v617 = vsel %vm565, %v612, %v616
        %v618 = vshrl.u32 %v458, 16
        %v620 = vor.u32 %v618, %v616
        %v622 = vshll.u32 %v551, 16
        %v624 = vrot.slane %v622, 1
        %v625 = vsel %vm565, %v620, %v624
        %v627 = vshrl.u32 %v459, 16
        %v629 = vshll.u32 %v459, 16
        %v631 = vrot.slane %v629, 1
        %v632 = vor.u32 %v627, %v631
        %v634 = vshll.u32 %v460, 16
        %v636 = vrot.slane %v634, 1
        %v637 = vsel %vm565, %v632, %v636
        %v638 = vshrl.u32 %v460, 16
        %v640 = vor.u32 %v638, %v636
        %v642 = vshll.u32 %v552, 16
        %v644 = vrot.slane %v642, 1
        %v645 = vsel %vm565, %v640, %v644
        %v647 = vshrl.u32 %v461, 16
        %v649 = vshll.u32 %v461, 16
        %v651 = vrot.slane %v649, 1
        %v652 = vor.u32 %v647, %v651
        %v654 = vshll.u32 %v462, 16
        %v656 = vrot.slane %v654, 1
        %v657 = vsel %vm565, %v652, %v656
        %v658 = vshrl.u32 %v462, 16
        %v660 = vor.u32 %v658, %v656
        %v662 = vshll.u32 %v553, 16
        %v664 = vrot.slane %v662, 1
        %v665 = vsel %vm565, %v660, %v664
        %v667 = vshrl.u32 %v463, 16
        %v669 = vshll.u32 %v463, 16
        %v671 = vrot.slane %v669, 1
        %v672 = vor.u32 %v667, %v671
        %v674 = vshll.u32 %v464, 16
        %v676 = vrot.slane %v674, 1
        %v677 = vsel %vm565, %v672, %v676
        %v678 = vshrl.u32 %v464, 16
        %v680 = vor.u32 %v678, %v676
        %v682 = vshll.u32 %v554, 16
        %v684 = vrot.slane %v682, 1
        %v685 = vsel %vm565, %v680, %v684
        %v687 = vshrl.u32 %v465, 16
        %v689 = vshll.u32 %v465, 16
        %v691 = vrot.slane %v689, 1
        %v692 = vor.u32 %v687, %v691
        %v694 = vshll.u32 %v466, 16
        %v696 = vrot.slane %v694, 1
        %v697 = vsel %vm565, %v692, %v696
        %v698 = vshrl.u32 %v466, 16
        %v700 = vor.u32 %v698, %v696
        %v702 = vshll.u32 %v555, 16
        %v704 = vrot.slane %v702, 1
        %v705 = vsel %vm565, %v700, %v704
        %v707 = vshrl.u32 %v467, 16
        %v709 = vshll.u32 %v467, 16
        %v711 = vrot.slane %v709, 1
        %v712 = vor.u32 %v707, %v711
        %v714 = vshll.u32 %v468, 16
        %v716 = vrot.slane %v714, 1
        %v717 = vsel %vm565, %v712, %v716
        %v718 = vshrl.u32 %v468, 16
        %v720 = vor.u32 %v718, %v716
        %v722 = vshll.u32 %v556, 16
        %v724 = vrot.slane %v722, 1
        %v725 = vsel %vm565, %v720, %v724
        %v727 = vshrl.u32 %v469, 16
        %v729 = vshll.u32 %v469, 16
        %v731 = vrot.slane %v729, 1
        %v732 = vor.u32 %v727, %v731
        %v734 = vshll.u32 %v470, 16
        %v736 = vrot.slane %v734, 1
        %v737 = vsel %vm565, %v732, %v736
        %v738 = vshrl.u32 %v470, 16
        %v740 = vor.u32 %v738, %v736
        %v742 = vshll.u32 %v557, 16
        %v744 = vrot.slane %v742, 1
        %v745 = vsel %vm565, %v740, %v744
        %v747 = vshrl.u32 %v471, 16
        %v749 = vshll.u32 %v471, 16
        %v751 = vrot.slane %v749, 1
        %v752 = vor.u32 %v747, %v751
        %v754 = vshll.u32 %v472, 16
        %v756 = vrot.slane %v754, 1
        %v757 = vsel %vm565, %v752, %v756
        %v758 = vshrl.u32 %v472, 16
        %v760 = vor.u32 %v758, %v756
        %v762 = vshll.u32 %v558, 16
        %v764 = vrot.slane %v762, 1
        %v765 = vsel %vm565, %v760, %v764
        %v767 = vshrl.u32 %v473, 16
        %v769 = vshll.u32 %v473, 16
        %v771 = vrot.slane %v769, 1
        %v772 = vor.u32 %v767, %v771
        %v774 = vshll.u32 %v474, 16
        %v776 = vrot.slane %v774, 1
        %v777 = vsel %vm565, %v772, %v776
        %v778 = vshrl.u32 %v474, 16
        %v780 = vor.u32 %v778, %v776
        %v782 = vshll.u32 %v559, 16
        %v784 = vrot.slane %v782, 1
        %v785 = vsel %vm565, %v780, %v784
        %v787 = vshrl.u32 %v475, 16
        %v789 = vshll.u32 %v475, 16
        %v791 = vrot.slane %v789, 1
        %v792 = vor.u32 %v787, %v791
        %v794 = vshll.u32 %v476, 16
        %v796 = vrot.slane %v794, 1
        %v797 = vsel %vm565, %v792, %v796
        %v798 = vshrl.u32 %v476, 16
        %v800 = vor.u32 %v798, %v796
        %v802 = vshll.u32 %v560, 16
        %v804 = vrot.slane %v802, 1
        %v805 = vsel %vm565, %v800, %v804
        %v807 = vshrl.u32 %v477, 16
        %v809 = vshll.u32 %v477, 16
        %v811 = vrot.slane %v809, 1
        %v812 = vor.u32 %v807, %v811
        %v814 = vshll.u32 %v478, 16
        %v816 = vrot.slane %v814, 1
        %v817 = vsel %vm565, %v812, %v816
        %v818 = vshrl.u32 %v478, 16
        %v820 = vor.u32 %v818, %v816
        %v822 = vshll.u32 %v561, 16
        %v824 = vrot.slane %v822, 1
        %v825 = vsel %vm565, %v820, %v824
        %v827 = vshrl.u32 %v479, 16
        %v829 = vshll.u32 %v479, 16
        %v831 = vrot.slane %v829, 1
        %v832 = vor.u32 %v827, %v831
        %v834 = vshll.u32 %v480, 16
        %v836 = vrot.slane %v834, 1
        %v837 = vsel %vm565, %v832, %v836
        %v838 = vshrl.u32 %v480, 16
        %v840 = vor.u32 %v838, %v836
        %v842 = vshll.u32 %v562, 16
        %v844 = vrot.slane %v842, 1
        %v845 = vsel %vm565, %v840, %v844
        %v847 = vshrl.u32 %v481, 16
        %v849 = vshll.u32 %v481, 16
        %v851 = vrot.slane %v849, 1
        %v852 = vor.u32 %v847, %v851
        %v854 = vshll.u32 %v482, 16
        %v856 = vrot.slane %v854, 1
        %v857 = vsel %vm565, %v852, %v856
        %v858 = vshrl.u32 %v482, 16
        %v860 = vor.u32 %v858, %v856
        %v862 = vshll.u32 %v563, 16
        %v864 = vrot.slane %v862, 1
        %v865 = vsel %vm565, %v860, %v864
        %v867 = vshrl.u32 %v483, 16
        %v869 = vshll.u32 %v483, 16
        %v871 = vrot.slane %v869, 1
        %v872 = vor.u32 %v867, %v871
        %v874 = vshll.u32 %v484, 16
        %v876 = vrot.slane %v874, 1
        %v877 = vsel %vm565, %v872, %v876
        %v878 = vshrl.u32 %v484, 16
        %v880 = vor.u32 %v878, %v876
        %v882 = vshll.u32 %v564, 16
        %v884 = vrot.slane %v882, 1
        %v885 = vsel %vm565, %v880, %v884
        %vm918 = vcmask 1046528
        %v919 = vrot.slane %v453, 1
        %v920 = vrot.slane %v454, 1
        %v921 = vsel %vm918, %v919, %v920
        %v922 = vrot.slane %v549, 1
        %v923 = vsel %vm918, %v920, %v922
        %v924 = vrot.slane %v455, 1
        %v925 = vrot.slane %v456, 1
        %v926 = vsel %vm918, %v924, %v925
        %v927 = vrot.slane %v550, 1
        %v928 = vsel %vm918, %v925, %v927
        %v929 = vrot.slane %v457, 1
        %v930 = vrot.slane %v458, 1
        %v931 = vsel %vm918, %v929, %v930
        %v932 = vrot.slane %v551, 1
        %v933 = vsel %vm918, %v930, %v932
        %v934 = vrot.slane %v459, 1
        %v935 = vrot.slane %v460, 1
        %v936 = vsel %vm918, %v934, %v935
        %v937 = vrot.slane %v552, 1
        %v938 = vsel %vm918, %v935, %v937
        %v939 = vrot.slane %v461, 1
        %v940 = vrot.slane %v462, 1
        %v941 = vsel %vm918, %v939, %v940
        %v942 = vrot.slane %v553, 1
        %v943 = vsel %vm918, %v940, %v942
        %v944 = vrot.slane %v463, 1
        %v945 = vrot.slane %v464, 1
        %v946 = vsel %vm918, %v944, %v945
        %v947 = vrot.slane %v554, 1
        %v948 = vsel %vm918, %v945, %v947
        %v949 = vrot.slane %v465, 1
        %v950 = vrot.slane %v466, 1
        %v951 = vsel %vm918, %v949, %v950
        %v952 = vrot.slane %v555, 1
        %v953 = vsel %vm918, %v950, %v952
        %v954 = vrot.slane %v467, 1
        %v955 = vrot.slane %v468, 1
        %v956 = vsel %vm918, %v954, %v955
        %v957 = vrot.slane %v556, 1
        %v958 = vsel %vm918, %v955, %v957
        %v959 = vrot.slane %v469, 1
        %v960 = vrot.slane %v470, 1
        %v961 = vsel %vm918, %v959, %v960
        %v962 = vrot.slane %v557, 1
        %v963 = vsel %vm918, %v960, %v962
        %v964 = vrot.slane %v471, 1
        %v965 = vrot.slane %v472, 1
        %v966 = vsel %vm918, %v964, %v965
        %v967 = vrot.slane %v558, 1
        %v968 = vsel %vm918, %v965, %v967
        %v969 = vrot.slane %v473, 1
        %v970 = vrot.slane %v474, 1
        %v971 = vsel %vm918, %v969, %v970
        %v972 = vrot.slane %v559, 1
        %v973 = vsel %vm918, %v970, %v972
        %v974 = vrot.slane %v475, 1
        %v975 = vrot.slane %v476, 1
        %v976 = vsel %vm918, %v974, %v975
        %v977 = vrot.slane %v560, 1
        %v978 = vsel %vm918, %v975, %v977
        %v979 = vrot.slane %v477, 1
        %v980 = vrot.slane %v478, 1
        %v981 = vsel %vm918, %v979, %v980
        %v982 = vrot.slane %v561, 1
        %v983 = vsel %vm918, %v980, %v982
        %v984 = vrot.slane %v479, 1
        %v985 = vrot.slane %v480, 1
        %v986 = vsel %vm918, %v984, %v985
        %v987 = vrot.slane %v562, 1
        %v988 = vsel %vm918, %v985, %v987
        %v989 = vrot.slane %v481, 1
        %v990 = vrot.slane %v482, 1
        %v991 = vsel %vm918, %v989, %v990
        %v992 = vrot.slane %v563, 1
        %v993 = vsel %vm918, %v990, %v992
        %v994 = vrot.slane %v483, 1
        %v995 = vrot.slane %v484, 1
        %v996 = vsel %vm918, %v994, %v995
        %v997 = vrot.slane %v564, 1
        %v998 = vsel %vm918, %v995, %v997
        %v1031 = vld [vmem:[%s3] sm:$0xf]
        %v1032 = vld [vmem:[%s3 + $0x4] sm:$0xf]
        %v1033 = vld [vmem:[%s3 + $0x8] sm:$0xf]
        %v1034 = vld [vmem:[%s3 + $0xc] sm:$0xf]
        %v1035 = vld [vmem:[%s3 + $0x10] sm:$0xf]
        %v1036 = vld [vmem:[%s3 + $0x14] sm:$0xf]
        %v1037 = vld [vmem:[%s3 + $0x18] sm:$0xf]
        %v1038 = vld [vmem:[%s3 + $0x1c] sm:$0xf]
        %v1039 = vld [vmem:[%s3 + $0x20] sm:$0xf]
        %v1040 = vld [vmem:[%s3 + $0x24] sm:$0xf]
        %v1041 = vld [vmem:[%s3 + $0x28] sm:$0xf]
        %v1042 = vld [vmem:[%s3 + $0x2c] sm:$0xf]
        %v1043 = vld [vmem:[%s3 + $0x30] sm:$0xf]
        %v1044 = vld [vmem:[%s3 + $0x34] sm:$0xf]
        %v1045 = vld [vmem:[%s3 + $0x38] sm:$0xf]
        %v1046 = vld [vmem:[%s3 + $0x3c] sm:$0xf]
        %v1047 = vld [vmem:[%s3 + $0x40] sm:$0xf]
        %v1048 = vld [vmem:[%s3 + $0x44] sm:$0xf]
        %v1049 = vld [vmem:[%s3 + $0x48] sm:$0xf]
        %v1050 = vld [vmem:[%s3 + $0x4c] sm:$0xf]
        %v1051 = vld [vmem:[%s3 + $0x50] sm:$0xf]
        %v1052 = vld [vmem:[%s3 + $0x54] sm:$0xf]
        %v1053 = vld [vmem:[%s3 + $0x58] sm:$0xf]
        %v1054 = vld [vmem:[%s3 + $0x5c] sm:$0xf]
        %v1055 = vld [vmem:[%s3 + $0x60] sm:$0xf]
        %v1056 = vld [vmem:[%s3 + $0x64] sm:$0xf]
        %v1057 = vld [vmem:[%s3 + $0x68] sm:$0xf]
        %v1058 = vld [vmem:[%s3 + $0x6c] sm:$0xf]
        %v1059 = vld [vmem:[%s3 + $0x70] sm:$0xf]
        %v1060 = vld [vmem:[%s3 + $0x74] sm:$0xf]
        %v1061 = vld [vmem:[%s3 + $0x78] sm:$0xf]
        %v1062 = vld [vmem:[%s3 + $0x7c] sm:$0xf]
        %v1063 = vld [vmem:[%s3 + $0x80] sm:$0xf]
        %v1064 = vld [vmem:[%s3 + $0x84] sm:$0xf]
        %v1065 = vld [vmem:[%s3 + $0x88] sm:$0xf]
        %v1066 = vld [vmem:[%s3 + $0x8c] sm:$0xf]
        %v1067 = vld [vmem:[%s3 + $0x90] sm:$0xf]
        %v1068 = vld [vmem:[%s3 + $0x94] sm:$0xf]
        %v1069 = vld [vmem:[%s3 + $0x98] sm:$0xf]
        %v1070 = vld [vmem:[%s3 + $0x9c] sm:$0xf]
        %v1071 = vld [vmem:[%s3 + $0xa0] sm:$0xf]
        %v1072 = vld [vmem:[%s3 + $0xa4] sm:$0xf]
        %v1073 = vld [vmem:[%s3 + $0xa8] sm:$0xf]
        %v1074 = vld [vmem:[%s3 + $0xac] sm:$0xf]
        %v1075 = vld [vmem:[%s3 + $0xb0] sm:$0xf]
        %v1076 = vld [vmem:[%s3 + $0xb4] sm:$0xf]
        %v1077 = vld [vmem:[%s3 + $0xb8] sm:$0xf]
        %v1078 = vld [vmem:[%s3 + $0xbc] sm:$0xf]
        %v1083 = vunpack.c.l.b16 %v315
        %v1084 = vunpack.c.l.b16 %v316
        %v1085 = vunpack.c.l.b16 %v317
        %v1086 = vunpack.c.l.b16 %v318
        %v1087 = vpack.c.b16 %v1084, %v1083
        %v1088 = vpack.c.b16 %v1086, %v1085
        %v1092 = vunpack.c.l.b16 %v319
        %v1093 = vpack.c.b16 %v1092, %v1092
        %v1095 = vshrl.u32 %v1087, 16
        %v1097 = vshll.u32 %v1087, 16
        %v1099 = vrot.slane %v1097, 1
        %v1100 = vor.u32 %v1095, %v1099
        %v1102 = vshll.u32 %v1088, 16
        %v1104 = vrot.slane %v1102, 1
        %v1105 = vsel %vm565, %v1100, %v1104
        %v1106 = vshrl.u32 %v1088, 16
        %v1108 = vor.u32 %v1106, %v1104
        %v1110 = vshll.u32 %v1093, 16
        %v1112 = vrot.slane %v1110, 1
        %v1113 = vsel %vm565, %v1108, %v1112
        %v1116 = vrot.slane %v1087, 1
        %v1117 = vrot.slane %v1088, 1
        %v1118 = vsel %vm918, %v1116, %v1117
        %v1119 = vrot.slane %v1093, 1
        %v1120 = vsel %vm918, %v1117, %v1119
        %s1123 = scalar_lea.vmem %s3, 192
        %v1124 = vld [vmem:[%s1123] sm:$0xf]
        %v1125 = vld [vmem:[%s1123 + $0x4] sm:$0xf]
        %v1126 = vld [vmem:[%s1123 + $0x8] sm:$0xf]
        %v1127 = vld [vmem:[%s1123 + $0xc] sm:$0xf]
        %v1128 = vld [vmem:[%s1123 + $0x10] sm:$0xf]
        %v1129 = vld [vmem:[%s1123 + $0x14] sm:$0xf]
        %v1130 = vld [vmem:[%s1123 + $0x18] sm:$0xf]
        %v1131 = vld [vmem:[%s1123 + $0x1c] sm:$0xf]
        %v1132 = vld [vmem:[%s1123 + $0x20] sm:$0xf]
        %v1133 = vld [vmem:[%s1123 + $0x24] sm:$0xf]
        %v1134 = vld [vmem:[%s1123 + $0x28] sm:$0xf]
        %v1135 = vld [vmem:[%s1123 + $0x2c] sm:$0xf]
        %v1136 = vld [vmem:[%s1123 + $0x30] sm:$0xf]
        %v1137 = vld [vmem:[%s1123 + $0x34] sm:$0xf]
        %v1138 = vld [vmem:[%s1123 + $0x38] sm:$0xf]
        %v1139 = vld [vmem:[%s1123 + $0x3c] sm:$0xf]
        %v1140 = vld [vmem:[%s1123 + $0x40] sm:$0xf]
        %v1141 = vld [vmem:[%s1123 + $0x44] sm:$0xf]
        %v1142 = vld [vmem:[%s1123 + $0x48] sm:$0xf]
        %v1143 = vld [vmem:[%s1123 + $0x4c] sm:$0xf]
        %v1144 = vld [vmem:[%s1123 + $0x50] sm:$0xf]
        %v1145 = vld [vmem:[%s1123 + $0x54] sm:$0xf]
        %v1146 = vld [vmem:[%s1123 + $0x58] sm:$0xf]
        %v1147 = vld [vmem:[%s1123 + $0x5c] sm:$0xf]
        %v1148 = vld [vmem:[%s1123 + $0x60] sm:$0xf]
        %v1149 = vld [vmem:[%s1123 + $0x64] sm:$0xf]
        %v1150 = vld [vmem:[%s1123 + $0x68] sm:$0xf]
        %v1151 = vld [vmem:[%s1123 + $0x6c] sm:$0xf]
        %v1152 = vld [vmem:[%s1123 + $0x70] sm:$0xf]
        %v1153 = vld [vmem:[%s1123 + $0x74] sm:$0xf]
        %v1154 = vld [vmem:[%s1123 + $0x78] sm:$0xf]
        %v1155 = vld [vmem:[%s1123 + $0x7c] sm:$0xf]
        %v1156 = vld [vmem:[%s1123 + $0x80] sm:$0xf]
        %v1157 = vld [vmem:[%s1123 + $0x84] sm:$0xf]
        %v1158 = vld [vmem:[%s1123 + $0x88] sm:$0xf]
        %v1159 = vld [vmem:[%s1123 + $0x8c] sm:$0xf]
        %v1160 = vld [vmem:[%s1123 + $0x90] sm:$0xf]
        %v1161 = vld [vmem:[%s1123 + $0x94] sm:$0xf]
        %v1162 = vld [vmem:[%s1123 + $0x98] sm:$0xf]
        %v1163 = vld [vmem:[%s1123 + $0x9c] sm:$0xf]
        %v1164 = vld [vmem:[%s1123 + $0xa0] sm:$0xf]
        %v1165 = vld [vmem:[%s1123 + $0xa4] sm:$0xf]
        %v1166 = vld [vmem:[%s1123 + $0xa8] sm:$0xf]
        %v1167 = vld [vmem:[%s1123 + $0xac] sm:$0xf]
        %v1168 = vld [vmem:[%s1123 + $0xb0] sm:$0xf]
        %v1169 = vld [vmem:[%s1123 + $0xb4] sm:$0xf]
        %v1170 = vld [vmem:[%s1123 + $0xb8] sm:$0xf]
        %v1171 = vld [vmem:[%s1123 + $0xbc] sm:$0xf]
        %v1220 = vunpack.c.l.b16 %v1124
        %v1221 = vunpack.c.l.b16 %v1125
        %v1222 = vunpack.c.l.b16 %v1126
        %v1223 = vunpack.c.l.b16 %v1127
        %v1224 = vunpack.c.l.b16 %v1128
        %v1225 = vunpack.c.l.b16 %v1129
        %v1226 = vunpack.c.l.b16 %v1130
        %v1227 = vunpack.c.l.b16 %v1131
        %v1228 = vunpack.c.l.b16 %v1132
        %v1229 = vunpack.c.l.b16 %v1133
        %v1230 = vunpack.c.l.b16 %v1134
        %v1231 = vunpack.c.l.b16 %v1135
        %v1232 = vunpack.c.l.b16 %v1136
        %v1233 = vunpack.c.l.b16 %v1137
        %v1234 = vunpack.c.l.b16 %v1138
        %v1235 = vunpack.c.l.b16 %v1139
        %v1236 = vunpack.c.l.b16 %v1140
        %v1237 = vunpack.c.l.b16 %v1141
        %v1238 = vunpack.c.l.b16 %v1142
        %v1239 = vunpack.c.l.b16 %v1143
        %v1240 = vunpack.c.l.b16 %v1144
        %v1241 = vunpack.c.l.b16 %v1145
        %v1242 = vunpack.c.l.b16 %v1146
        %v1243 = vunpack.c.l.b16 %v1147
        %v1244 = vunpack.c.l.b16 %v1148
        %v1245 = vunpack.c.l.b16 %v1149
        %v1246 = vunpack.c.l.b16 %v1150
        %v1247 = vunpack.c.l.b16 %v1151
        %v1248 = vunpack.c.l.b16 %v1152
        %v1249 = vunpack.c.l.b16 %v1153
        %v1250 = vunpack.c.l.b16 %v1154
        %v1251 = vunpack.c.l.b16 %v1155
        %v1252 = vunpack.c.l.b16 %v1156
        %v1253 = vunpack.c.l.b16 %v1157
        %v1254 = vunpack.c.l.b16 %v1158
        %v1255 = vunpack.c.l.b16 %v1159
        %v1256 = vunpack.c.l.b16 %v1160
        %v1257 = vunpack.c.l.b16 %v1161
        %v1258 = vunpack.c.l.b16 %v1162
        %v1259 = vunpack.c.l.b16 %v1163
        %v1260 = vunpack.c.l.b16 %v1164
        %v1261 = vunpack.c.l.b16 %v1165
        %v1262 = vunpack.c.l.b16 %v1166
        %v1263 = vunpack.c.l.b16 %v1167
        %v1264 = vunpack.c.l.b16 %v1168
        %v1265 = vunpack.c.l.b16 %v1169
        %v1266 = vunpack.c.l.b16 %v1170
        %v1267 = vunpack.c.l.b16 %v1171
        %v1268 = vpack.c.b16 %v1221, %v1220
        %v1269 = vpack.c.b16 %v1223, %v1222
        %v1270 = vpack.c.b16 %v1225, %v1224
        %v1271 = vpack.c.b16 %v1227, %v1226
        %v1272 = vpack.c.b16 %v1229, %v1228
        %v1273 = vpack.c.b16 %v1231, %v1230
        %v1274 = vpack.c.b16 %v1233, %v1232
        %v1275 = vpack.c.b16 %v1235, %v1234
        %v1276 = vpack.c.b16 %v1237, %v1236
        %v1277 = vpack.c.b16 %v1239, %v1238
        %v1278 = vpack.c.b16 %v1241, %v1240
        %v1279 = vpack.c.b16 %v1243, %v1242
        %v1280 = vpack.c.b16 %v1245, %v1244
        %v1281 = vpack.c.b16 %v1247, %v1246
        %v1282 = vpack.c.b16 %v1249, %v1248
        %v1283 = vpack.c.b16 %v1251, %v1250
        %v1284 = vpack.c.b16 %v1253, %v1252
        %v1285 = vpack.c.b16 %v1255, %v1254
        %v1286 = vpack.c.b16 %v1257, %v1256
        %v1287 = vpack.c.b16 %v1259, %v1258
        %v1288 = vpack.c.b16 %v1261, %v1260
        %v1289 = vpack.c.b16 %v1263, %v1262
        %v1290 = vpack.c.b16 %v1265, %v1264
        %v1291 = vpack.c.b16 %v1267, %v1266
        %1316 = vmatprep.subr.bf16.mxu0 0
        %1317 = vmatpush1.bf16.msra.mxu0 %v1268
        %1318 = vmatprep.subr.bf16.mxu0 0
        %1319 = vmatpush1.bf16.msra.mxu0 %v1269
        %1320 = vmatprep.subr.bf16.mxu0 0
        %1321 = vmatpush1.bf16.msra.mxu0 %v1270
        %1322 = vmatprep.subr.bf16.mxu0 0
        %1323 = vmatpush1.bf16.msra.mxu0 %v1271
        %1324 = vmatprep.subr.bf16.mxu0 0
        %1325 = vmatpush1.bf16.msra.mxu0 %v1272
        %1326 = vmatprep.subr.bf16.mxu0 0
        %1327 = vmatpush1.bf16.msra.mxu0 %v1273
        %1328 = vmatprep.subr.bf16.mxu0 0
        %1329 = vmatpush1.bf16.msra.mxu0 %v1274
        %1330 = vmatprep.subr.bf16.mxu0 0
        %1331 = vmatpush1.bf16.msra.mxu0 %v1275
        %1332 = vmatprep.subr.bf16.mxu0 0
        %1333 = vmatpush1.bf16.msra.mxu0 %v1276
        %1334 = vmatprep.subr.bf16.mxu0 0
        %1335 = vmatpush1.bf16.msra.mxu0 %v1277
        %1336 = vmatprep.subr.bf16.mxu0 0
        %1337 = vmatpush1.bf16.msra.mxu0 %v1278
        %1338 = vmatprep.subr.bf16.mxu0 0
        %1339 = vmatpush1.bf16.msra.mxu0 %v1279
        %1340 = vmatprep.subr.bf16.mxu0 0
        %1341 = vmatpush1.bf16.msra.mxu0 %v1280
        %1342 = vmatprep.subr.bf16.mxu0 0
        %1343 = vmatpush1.bf16.msra.mxu0 %v1281
        %1344 = vmatprep.subr.bf16.mxu0 0
        %1345 = vmatpush1.bf16.msra.mxu0 %v1282
        %1346 = vmatprep.subr.bf16.mxu0 0
        %1347 = vmatpush1.bf16.msra.mxu0 %v1283
        %1348 = vmatprep.mubr.bf16.mxu0 %v597
        %1349 = vmatmul.mubr.bf16.gmra.mrb[0].mxu0 %v455
        %v1350 = vpop.f32.mrb[0].mxu0
        %v1351 = vadd.f32 0.0, %v1350
        %v1352 = vpop.f32.mrb[0].mxu0
        %v1353 = vpop.f32.mrb[0].mxu0
        %v1354 = vadd.f32 0.0, %v1353
        %v1355 = vpop.f32.mrb[0].mxu0
        %1356 = vmatprep.mubr.bf16.mxu0 %v605
        %1357 = vmatmul.mubr.bf16.gmra.mrb[0].mxu0 %v456
        %v1358 = vpop.f32.mrb[0].mxu0
        %v1359 = vadd.f32 0.0, %v1358
        %v1360 = vpop.f32.mrb[0].mxu0
        %v1361 = vpop.f32.mrb[0].mxu0
        %v1362 = vadd.f32 0.0, %v1361
        %v1363 = vpop.f32.mrb[0].mxu0
        %1364 = vmatprep.mubr.bf16.mxu0 %v617
        %1365 = vmatmul.mubr.bf16.gmra.mrb[0].mxu0 %v457
        %v1366 = vpop.f32.mrb[0].mxu0
        %v1367 = vadd.f32 0.0, %v1366
        %v1368 = vpop.f32.mrb[0].mxu0
        %v1369 = vpop.f32.mrb[0].mxu0
        %v1370 = vadd.f32 0.0, %v1369
        %v1371 = vpop.f32.mrb[0].mxu0
        %1372 = vmatprep.mubr.bf16.mxu0 %v625
        %1373 = vmatmul.mubr.bf16.gmra.mrb[0].mxu0 %v458
        %v1374 = vpop.f32.mrb[0].mxu0
        %v1375 = vadd.f32 0.0, %v1374
        %v1376 = vpop.f32.mrb[0].mxu0
        %v1377 = vpop.f32.mrb[0].mxu0
        %v1378 = vadd.f32 0.0, %v1377
        %v1379 = vpop.f32.mrb[0].mxu0
        %1380 = vmatprep.mubr.bf16.mxu0 %v637
        %1381 = vmatmul.mubr.bf16.gmra.mrb[0].mxu0 %v459
        %v1382 = vpop.f32.mrb[0].mxu0
        %v1383 = vadd.f32 0.0, %v1382
        %v1384 = vpop.f32.mrb[0].mxu0
        %v1385 = vpop.f32.mrb[0].mxu0
        %v1386 = vadd.f32 0.0, %v1385
        %v1387 = vpop.f32.mrb[0].mxu0
        %1388 = vmatprep.mubr.bf16.mxu0 %v645
        %1389 = vmatmul.mubr.bf16.gmra.mrb[0].mxu0 %v460
        %v1390 = vpop.f32.mrb[0].mxu0
        %v1391 = vadd.f32 0.0, %v1390
        %v1392 = vpop.f32.mrb[0].mxu0
        %v1393 = vpop.f32.mrb[0].mxu0
        %v1394 = vadd.f32 0.0, %v1393
        %v1395 = vpop.f32.mrb[0].mxu0
        %1396 = vmatprep.mubr.bf16.mxu0 %v657
        %1397 = vmatmul.mubr.bf16.gmra.mrb[0].mxu0 %v461
        %v1398 = vpop.f32.mrb[0].mxu0
        %v1399 = vadd.f32 0.0, %v1398
        %v1400 = vpop.f32.mrb[0].mxu0
        %v1401 = vpop.f32.mrb[0].mxu0
        %v1402 = vadd.f32 0.0, %v1401
        %v1403 = vpop.f32.mrb[0].mxu0
        %1404 = vmatprep.mubr.bf16.mxu0 %v665
        %1405 = vmatmul.mubr.bf16.gmra.mrb[0].mxu0 %v462
        %v1406 = vpop.f32.mrb[0].mxu0
        %v1407 = vadd.f32 0.0, %v1406
        %v1408 = vpop.f32.mrb[0].mxu0
        %v1409 = vpop.f32.mrb[0].mxu0
        %v1410 = vadd.f32 0.0, %v1409
        %v1411 = vpop.f32.mrb[0].mxu0
        %1412 = vmatprep.mubr.bf16.mxu0 %v677
        %1413 = vmatmul.mubr.bf16.gmra.mrb[0].mxu0 %v463
        %v1414 = vpop.f32.mrb[0].mxu0
        %v1415 = vadd.f32 0.0, %v1414
        %v1416 = vpop.f32.mrb[0].mxu0
        %v1417 = vpop.f32.mrb[0].mxu0
        %v1418 = vadd.f32 0.0, %v1417
        %v1419 = vpop.f32.mrb[0].mxu0
        %1420 = vmatprep.mubr.bf16.mxu0 %v685
        %1421 = vmatmul.mubr.bf16.gmra.mrb[0].mxu0 %v464
        %v1422 = vpop.f32.mrb[0].mxu0
        %v1423 = vadd.f32 0.0, %v1422
        %v1424 = vpop.f32.mrb[0].mxu0
        %v1425 = vpop.f32.mrb[0].mxu0
        %v1426 = vadd.f32 0.0, %v1425
        %v1427 = vpop.f32.mrb[0].mxu0
        %1428 = vmatprep.mubr.bf16.mxu0 %v697
        %1429 = vmatmul.mubr.bf16.gmra.mrb[0].mxu0 %v465
        %v1430 = vpop.f32.mrb[0].mxu0
        %v1431 = vadd.f32 0.0, %v1430
        %v1432 = vpop.f32.mrb[0].mxu0
        %v1433 = vpop.f32.mrb[0].mxu0
        %v1434 = vadd.f32 0.0, %v1433
        %v1435 = vpop.f32.mrb[0].mxu0
        %1436 = vmatprep.mubr.bf16.mxu0 %v705
        %1437 = vmatmul.mubr.bf16.gmra.mrb[0].mxu0 %v466
        %v1438 = vpop.f32.mrb[0].mxu0
        %v1439 = vadd.f32 0.0, %v1438
        %v1440 = vpop.f32.mrb[0].mxu0
        %v1441 = vpop.f32.mrb[0].mxu0
        %v1442 = vadd.f32 0.0, %v1441
        %v1443 = vpop.f32.mrb[0].mxu0
        %1444 = vmatprep.mubr.bf16.mxu0 %v717
        %1445 = vmatmul.mubr.bf16.gmra.mrb[0].mxu0 %v467
        %v1446 = vpop.f32.mrb[0].mxu0
        %v1447 = vadd.f32 0.0, %v1446
        %v1448 = vpop.f32.mrb[0].mxu0
        %v1449 = vpop.f32.mrb[0].mxu0
        %v1450 = vadd.f32 0.0, %v1449
        %v1451 = vpop.f32.mrb[0].mxu0
        %1452 = vmatprep.mubr.bf16.mxu0 %v725
        %1453 = vmatmul.mubr.bf16.gmra.mrb[0].mxu0 %v468
        %v1454 = vpop.f32.mrb[0].mxu0
        %v1455 = vadd.f32 0.0, %v1454
        %v1456 = vpop.f32.mrb[0].mxu0
        %v1457 = vpop.f32.mrb[0].mxu0
        %v1458 = vadd.f32 0.0, %v1457
        %v1459 = vpop.f32.mrb[0].mxu0
        %1460 = vmatprep.mubr.bf16.mxu0 %v737
        %1461 = vmatmul.mubr.bf16.gmra.mrb[0].mxu0 %v469
        %v1462 = vpop.f32.mrb[0].mxu0
        %v1463 = vadd.f32 0.0, %v1462
        %v1464 = vpop.f32.mrb[0].mxu0
        %v1465 = vpop.f32.mrb[0].mxu0
        %v1466 = vadd.f32 0.0, %v1465
        %v1467 = vpop.f32.mrb[0].mxu0
        %1468 = vmatprep.mubr.bf16.mxu0 %v745
        %1469 = vmatmul.mubr.bf16.gmra.mrb[0].mxu0 %v470
        %v1470 = vpop.f32.mrb[0].mxu0
        %v1471 = vadd.f32 0.0, %v1470
        %v1472 = vpop.f32.mrb[0].mxu0
        %v1473 = vpop.f32.mrb[0].mxu0
        %v1474 = vadd.f32 0.0, %v1473
        %v1475 = vpop.f32.mrb[0].mxu0
        %1476 = vmatprep.mubr.bf16.mxu0 %v757
        %1477 = vmatmul.mubr.bf16.gmra.mrb[0].mxu0 %v471
        %v1478 = vpop.f32.mrb[0].mxu0
        %v1479 = vadd.f32 0.0, %v1478
        %v1480 = vpop.f32.mrb[0].mxu0
        %v1481 = vpop.f32.mrb[0].mxu0
        %v1482 = vadd.f32 0.0, %v1481
        %v1483 = vpop.f32.mrb[0].mxu0
        %1484 = vmatprep.mubr.bf16.mxu0 %v765
        %1485 = vmatmul.mubr.bf16.gmra.mrb[0].mxu0 %v472
        %v1486 = vpop.f32.mrb[0].mxu0
        %v1487 = vadd.f32 0.0, %v1486
        %v1488 = vpop.f32.mrb[0].mxu0
        %v1489 = vpop.f32.mrb[0].mxu0
        %v1490 = vadd.f32 0.0, %v1489
        %v1491 = vpop.f32.mrb[0].mxu0
        %1492 = vmatprep.mubr.bf16.mxu0 %v777
        %1493 = vmatmul.mubr.bf16.gmra.mrb[0].mxu0 %v473
        %v1494 = vpop.f32.mrb[0].mxu0
        %v1495 = vadd.f32 0.0, %v1494
        %v1496 = vpop.f32.mrb[0].mxu0
        %v1497 = vpop.f32.mrb[0].mxu0
        %v1498 = vadd.f32 0.0, %v1497
        %v1499 = vpop.f32.mrb[0].mxu0
        %1500 = vmatprep.mubr.bf16.mxu0 %v785
        %1501 = vmatmul.mubr.bf16.gmra.mrb[0].mxu0 %v474
        %v1502 = vpop.f32.mrb[0].mxu0
        %v1503 = vadd.f32 0.0, %v1502
        %v1504 = vpop.f32.mrb[0].mxu0
        %v1505 = vpop.f32.mrb[0].mxu0
        %v1506 = vadd.f32 0.0, %v1505
        %v1507 = vpop.f32.mrb[0].mxu0
        %1508 = vmatprep.mubr.bf16.mxu0 %v797
        %1509 = vmatmul.mubr.bf16.gmra.mrb[0].mxu0 %v475
        %v1510 = vpop.f32.mrb[0].mxu0
        %v1511 = vadd.f32 0.0, %v1510
        %v1512 = vpop.f32.mrb[0].mxu0
        %v1513 = vpop.f32.mrb[0].mxu0
        %v1514 = vadd.f32 0.0, %v1513
        %v1515 = vpop.f32.mrb[0].mxu0
        %1516 = vmatprep.mubr.bf16.mxu0 %v805
        %1517 = vmatmul.mubr.bf16.gmra.mrb[0].mxu0 %v476
        %v1518 = vpop.f32.mrb[0].mxu0
        %v1519 = vadd.f32 0.0, %v1518
        %v1520 = vpop.f32.mrb[0].mxu0
        %v1521 = vpop.f32.mrb[0].mxu0
        %v1522 = vadd.f32 0.0, %v1521
        %v1523 = vpop.f32.mrb[0].mxu0
        %1524 = vmatprep.mubr.bf16.mxu0 %v817
        %1525 = vmatmul.mubr.bf16.gmra.mrb[0].mxu0 %v477
        %v1526 = vpop.f32.mrb[0].mxu0
        %v1527 = vadd.f32 0.0, %v1526
        %v1528 = vpop.f32.mrb[0].mxu0
        %v1529 = vpop.f32.mrb[0].mxu0
        %v1530 = vadd.f32 0.0, %v1529
        %v1531 = vpop.f32.mrb[0].mxu0
        %1532 = vmatprep.mubr.bf16.mxu0 %v825
        %1533 = vmatmul.mubr.bf16.gmra.mrb[0].mxu0 %v478
        %v1534 = vpop.f32.mrb[0].mxu0
        %v1535 = vadd.f32 0.0, %v1534
        %v1536 = vpop.f32.mrb[0].mxu0
        %v1537 = vpop.f32.mrb[0].mxu0
        %v1538 = vadd.f32 0.0, %v1537
        %v1539 = vpop.f32.mrb[0].mxu0
        %1540 = vmatprep.mubr.bf16.mxu0 %v837
        %1541 = vmatmul.mubr.bf16.gmra.mrb[0].mxu0 %v479
        %v1542 = vpop.f32.mrb[0].mxu0
        %v1543 = vadd.f32 0.0, %v1542
        %v1544 = vpop.f32.mrb[0].mxu0
        %v1545 = vpop.f32.mrb[0].mxu0
        %v1546 = vadd.f32 0.0, %v1545
        %v1547 = vpop.f32.mrb[0].mxu0
        %1548 = vmatprep.mubr.bf16.mxu0 %v845
        %1549 = vmatmul.mubr.bf16.gmra.mrb[0].mxu0 %v480
        %v1550 = vpop.f32.mrb[0].mxu0
        %v1551 = vadd.f32 0.0, %v1550
        %v1552 = vpop.f32.mrb[0].mxu0
        %v1553 = vpop.f32.mrb[0].mxu0
        %v1554 = vadd.f32 0.0, %v1553
        %v1555 = vpop.f32.mrb[0].mxu0
        %1556 = vmatprep.mubr.bf16.mxu0 %v857
        %1557 = vmatmul.mubr.bf16.gmra.mrb[0].mxu0 %v481
        %v1558 = vpop.f32.mrb[0].mxu0
        %v1559 = vadd.f32 0.0, %v1558
        %v1560 = vpop.f32.mrb[0].mxu0
        %v1561 = vpop.f32.mrb[0].mxu0
        %v1562 = vadd.f32 0.0, %v1561
        %v1563 = vpop.f32.mrb[0].mxu0
        %1564 = vmatprep.mubr.bf16.mxu0 %v865
        %1565 = vmatmul.mubr.bf16.gmra.mrb[0].mxu0 %v482
        %v1566 = vpop.f32.mrb[0].mxu0
        %v1567 = vadd.f32 0.0, %v1566
        %v1568 = vpop.f32.mrb[0].mxu0
        %v1569 = vpop.f32.mrb[0].mxu0
        %v1570 = vadd.f32 0.0, %v1569
        %v1571 = vpop.f32.mrb[0].mxu0
        %1572 = vmatprep.mubr.bf16.mxu0 %v877
        %1573 = vmatmul.mubr.bf16.gmra.mrb[0].mxu0 %v483
        %v1574 = vpop.f32.mrb[0].mxu0
        %v1575 = vadd.f32 0.0, %v1574
        %v1576 = vpop.f32.mrb[0].mxu0
        %v1577 = vpop.f32.mrb[0].mxu0
        %v1578 = vadd.f32 0.0, %v1577
        %v1579 = vpop.f32.mrb[0].mxu0
        %1580 = vmatprep.mubr.bf16.mxu0 %v885
        %1581 = vmatmul.mubr.bf16.gmra.mrb[0].mxu0 %v484
        %v1582 = vpop.f32.mrb[0].mxu0
        %v1583 = vadd.f32 0.0, %v1582
        %v1584 = vpop.f32.mrb[0].mxu0
        %v1585 = vpop.f32.mrb[0].mxu0
        %v1586 = vadd.f32 0.0, %v1585
        %v1587 = vpop.f32.mrb[0].mxu0
        %1588 = vmatprep.mubr.bf16.mxu0 %v1105
        %1589 = vmatmul.mubr.bf16.gmra.mrb[0].mxu0 %v1087
        %v1590 = vpop.f32.mrb[0].mxu0
        %v1591 = vadd.f32 0.0, %v1590
        %v1592 = vpop.f32.mrb[0].mxu0
        %v1593 = vpop.f32.mrb[0].mxu0
        %v1594 = vadd.f32 0.0, %v1593
        %v1595 = vpop.f32.mrb[0].mxu0
        %1596 = vmatprep.mubr.bf16.mxu0 %v1113
        %1597 = vmatmul.mubr.bf16.gmra.mrb[0].mxu0 %v1088
        %v1598 = vpop.f32.mrb[0].mxu0
        %v1599 = vadd.f32 0.0, %v1598
        %v1600 = vpop.f32.mrb[0].mxu0
        %v1601 = vpop.f32.mrb[0].mxu0
        %v1602 = vadd.f32 0.0, %v1601
        %v1603 = vpop.f32.mrb[0].mxu0
        %1604 = vdwg.mxu0
        %1605 = vmatprep.subr.bf16.mxu0 0
        %1606 = vmatpush1.bf16.msra.mxu0 %v1284
        %1607 = vmatprep.subr.bf16.mxu0 0
        %1608 = vmatpush1.bf16.msra.mxu0 %v1285
        %1609 = vmatprep.subr.bf16.mxu0 0
        %1610 = vmatpush1.bf16.msra.mxu0 %v1286
        %1611 = vmatprep.subr.bf16.mxu0 0
        %1612 = vmatpush1.bf16.msra.mxu0 %v1287
        %1613 = vmatprep.subr.bf16.mxu0 0
        %1614 = vmatpush1.bf16.msra.mxu0 %v1288
        %1615 = vmatprep.subr.bf16.mxu0 0
        %1616 = vmatpush1.bf16.msra.mxu0 %v1289
        %1617 = vmatprep.subr.bf16.mxu0 0
        %1618 = vmatpush1.bf16.msra.mxu0 %v1290
        %1619 = vmatprep.subr.bf16.mxu0 0
        %1620 = vmatpush1.bf16.msra.mxu0 %v1291
        %1621 = vmatprep.subr.bf16.mxu0 0
        %1622 = vmatpush1.bf16.msra.mxu0 0
        %1623 = vmatprep.subr.bf16.mxu0 0
        %1624 = vmatpush1.bf16.msra.mxu0 0
        %1625 = vmatprep.subr.bf16.mxu0 0
        %1626 = vmatpush1.bf16.msra.mxu0 0
        %1627 = vmatprep.subr.bf16.mxu0 0
        %1628 = vmatpush1.bf16.msra.mxu0 0
        %1629 = vmatprep.subr.bf16.mxu0 0
        %1630 = vmatpush1.bf16.msra.mxu0 0
        %1631 = vmatprep.subr.bf16.mxu0 0
        %1632 = vmatpush1.bf16.msra.mxu0 0
        %1633 = vmatprep.subr.bf16.mxu0 0
        %1634 = vmatpush1.bf16.msra.mxu0 0
        %1635 = vmatprep.subr.bf16.mxu0 0
        %1636 = vmatpush1.bf16.msra.mxu0 0
        %1637 = vmatprep.mubr.bf16.mxu0 0
        %1638 = vmatmul.mubr.bf16.gmra.mrb[0].mxu0 %v926
        %v1639 = vpop.f32.mrb[0].mxu0
        %v1640 = vadd.f32 %v1351, %v1639
        %v1641 = vpop.f32.mrb[0].mxu0
        %v1642 = vpop.f32.mrb[0].mxu0
        %v1643 = vadd.f32 %v1354, %v1642
        %v1644 = vpop.f32.mrb[0].mxu0
        %1645 = vmatprep.mubr.bf16.mxu0 0
        %1646 = vmatmul.mubr.bf16.gmra.mrb[0].mxu0 %v928
        %v1647 = vpop.f32.mrb[0].mxu0
        %v1648 = vadd.f32 %v1359, %v1647
        %v1649 = vpop.f32.mrb[0].mxu0
        %v1650 = vpop.f32.mrb[0].mxu0
        %v1651 = vadd.f32 %v1362, %v1650
        %v1652 = vpop.f32.mrb[0].mxu0
        %1653 = vmatprep.mubr.bf16.mxu0 0
        %1654 = vmatmul.mubr.bf16.gmra.mrb[0].mxu0 %v931
        %v1655 = vpop.f32.mrb[0].mxu0
        %v1656 = vadd.f32 %v1367, %v1655
        %v1657 = vpop.f32.mrb[0].mxu0
        %v1658 = vpop.f32.mrb[0].mxu0
        %v1659 = vadd.f32 %v1370, %v1658
        %v1660 = vpop.f32.mrb[0].mxu0
        %1661 = vmatprep.mubr.bf16.mxu0 0
        %1662 = vmatmul.mubr.bf16.gmra.mrb[0].mxu0 %v933
        %v1663 = vpop.f32.mrb[0].mxu0
        %v1664 = vadd.f32 %v1375, %v1663
        %v1665 = vpop.f32.mrb[0].mxu0
        %v1666 = vpop.f32.mrb[0].mxu0
        %v1667 = vadd.f32 %v1378, %v1666
        %v1668 = vpop.f32.mrb[0].mxu0
        %1669 = vmatprep.mubr.bf16.mxu0 0
        %1670 = vmatmul.mubr.bf16.gmra.mrb[0].mxu0 %v936
        %v1671 = vpop.f32.mrb[0].mxu0
        %v1672 = vadd.f32 %v1383, %v1671
        %v1673 = vpop.f32.mrb[0].mxu0
        %v1674 = vpop.f32.mrb[0].mxu0
        %v1675 = vadd.f32 %v1386, %v1674
        %v1676 = vpop.f32.mrb[0].mxu0
        %1677 = vmatprep.mubr.bf16.mxu0 0
        %1678 = vmatmul.mubr.bf16.gmra.mrb[0].mxu0 %v938
        %v1679 = vpop.f32.mrb[0].mxu0
        %v1680 = vadd.f32 %v1391, %v1679
        %v1681 = vpop.f32.mrb[0].mxu0
        %v1682 = vpop.f32.mrb[0].mxu0
        %v1683 = vadd.f32 %v1394, %v1682
        %v1684 = vpop.f32.mrb[0].mxu0
        %1685 = vmatprep.mubr.bf16.mxu0 0
        %1686 = vmatmul.mubr.bf16.gmra.mrb[0].mxu0 %v941
        %v1687 = vpop.f32.mrb[0].mxu0
        %v1688 = vadd.f32 %v1399, %v1687
        %v1689 = vpop.f32.mrb[0].mxu0
        %v1690 = vpop.f32.mrb[0].mxu0
        %v1691 = vadd.f32 %v1402, %v1690
        %v1692 = vpop.f32.mrb[0].mxu0
        %1693 = vmatprep.mubr.bf16.mxu0 0
        %1694 = vmatmul.mubr.bf16.gmra.mrb[0].mxu0 %v943
        %v1695 = vpop.f32.mrb[0].mxu0
        %v1696 = vadd.f32 %v1407, %v1695
        %v1697 = vpop.f32.mrb[0].mxu0
        %v1698 = vpop.f32.mrb[0].mxu0
        %v1699 = vadd.f32 %v1410, %v1698
        %v1700 = vpop.f32.mrb[0].mxu0
        %1701 = vmatprep.mubr.bf16.mxu0 0
        %1702 = vmatmul.mubr.bf16.gmra.mrb[0].mxu0 %v946
        %v1703 = vpop.f32.mrb[0].mxu0
        %v1704 = vadd.f32 %v1415, %v1703
        %v1705 = vpop.f32.mrb[0].mxu0
        %v1706 = vpop.f32.mrb[0].mxu0
        %v1707 = vadd.f32 %v1418, %v1706
        %v1708 = vpop.f32.mrb[0].mxu0
        %1709 = vmatprep.mubr.bf16.mxu0 0
        %1710 = vmatmul.mubr.bf16.gmra.mrb[0].mxu0 %v948
        %v1711 = vpop.f32.mrb[0].mxu0
        %v1712 = vadd.f32 %v1423, %v1711
        %v1713 = vpop.f32.mrb[0].mxu0
        %v1714 = vpop.f32.mrb[0].mxu0
        %v1715 = vadd.f32 %v1426, %v1714
        %v1716 = vpop.f32.mrb[0].mxu0
        %1717 = vmatprep.mubr.bf16.mxu0 0
        %1718 = vmatmul.mubr.bf16.gmra.mrb[0].mxu0 %v951
        %v1719 = vpop.f32.mrb[0].mxu0
        %v1720 = vadd.f32 %v1431, %v1719
        %v1721 = vpop.f32.mrb[0].mxu0
        %v1722 = vpop.f32.mrb[0].mxu0
        %v1723 = vadd.f32 %v1434, %v1722
        %v1724 = vpop.f32.mrb[0].mxu0
        %1725 = vmatprep.mubr.bf16.mxu0 0
        %1726 = vmatmul.mubr.bf16.gmra.mrb[0].mxu0 %v953
        %v1727 = vpop.f32.mrb[0].mxu0
        %v1728 = vadd.f32 %v1439, %v1727
        %v1729 = vpop.f32.mrb[0].mxu0
        %v1730 = vpop.f32.mrb[0].mxu0
        %v1731 = vadd.f32 %v1442, %v1730
        %v1732 = vpop.f32.mrb[0].mxu0
        %1733 = vmatprep.mubr.bf16.mxu0 0
        %1734 = vmatmul.mubr.bf16.gmra.mrb[0].mxu0 %v956
        %v1735 = vpop.f32.mrb[0].mxu0
        %v1736 = vadd.f32 %v1447, %v1735
        %v1737 = vpop.f32.mrb[0].mxu0
        %v1738 = vpop.f32.mrb[0].mxu0
        %v1739 = vadd.f32 %v1450, %v1738
        %v1740 = vpop.f32.mrb[0].mxu0
        %1741 = vmatprep.mubr.bf16.mxu0 0
        %1742 = vmatmul.mubr.bf16.gmra.mrb[0].mxu0 %v958
        %v1743 = vpop.f32.mrb[0].mxu0
        %v1744 = vadd.f32 %v1455, %v1743
        %v1745 = vpop.f32.mrb[0].mxu0
        %v1746 = vpop.f32.mrb[0].mxu0
        %v1747 = vadd.f32 %v1458, %v1746
        %v1748 = vpop.f32.mrb[0].mxu0
        %1749 = vmatprep.mubr.bf16.mxu0 0
        %1750 = vmatmul.mubr.bf16.gmra.mrb[0].mxu0 %v961
        %v1751 = vpop.f32.mrb[0].mxu0
        %v1752 = vadd.f32 %v1463, %v1751
        %v1753 = vpop.f32.mrb[0].mxu0
        %v1754 = vpop.f32.mrb[0].mxu0
        %v1755 = vadd.f32 %v1466, %v1754
        %v1756 = vpop.f32.mrb[0].mxu0
        %1757 = vmatprep.mubr.bf16.mxu0 0
        %1758 = vmatmul.mubr.bf16.gmra.mrb[0].mxu0 %v963
        %v1759 = vpop.f32.mrb[0].mxu0
        %v1760 = vadd.f32 %v1471, %v1759
        %v1761 = vpop.f32.mrb[0].mxu0
        %v1762 = vpop.f32.mrb[0].mxu0
        %v1763 = vadd.f32 %v1474, %v1762
        %v1764 = vpop.f32.mrb[0].mxu0
        %1765 = vmatprep.mubr.bf16.mxu0 0
        %1766 = vmatmul.mubr.bf16.gmra.mrb[0].mxu0 %v966
        %v1767 = vpop.f32.mrb[0].mxu0
        %v1768 = vadd.f32 %v1479, %v1767
        %v1769 = vpop.f32.mrb[0].mxu0
        %v1770 = vpop.f32.mrb[0].mxu0
        %v1771 = vadd.f32 %v1482, %v1770
        %v1772 = vpop.f32.mrb[0].mxu0
        %1773 = vmatprep.mubr.bf16.mxu0 0
        %1774 = vmatmul.mubr.bf16.gmra.mrb[0].mxu0 %v968
        %v1775 = vpop.f32.mrb[0].mxu0
        %v1776 = vadd.f32 %v1487, %v1775
        %v1777 = vpop.f32.mrb[0].mxu0
        %v1778 = vpop.f32.mrb[0].mxu0
        %v1779 = vadd.f32 %v1490, %v1778
        %v1780 = vpop.f32.mrb[0].mxu0
        %1781 = vmatprep.mubr.bf16.mxu0 0
        %1782 = vmatmul.mubr.bf16.gmra.mrb[0].mxu0 %v971
        %v1783 = vpop.f32.mrb[0].mxu0
        %v1784 = vadd.f32 %v1495, %v1783
        %v1785 = vpop.f32.mrb[0].mxu0
        %v1786 = vpop.f32.mrb[0].mxu0
        %v1787 = vadd.f32 %v1498, %v1786
        %v1788 = vpop.f32.mrb[0].mxu0
        %1789 = vmatprep.mubr.bf16.mxu0 0
        %1790 = vmatmul.mubr.bf16.gmra.mrb[0].mxu0 %v973
        %v1791 = vpop.f32.mrb[0].mxu0
        %v1792 = vadd.f32 %v1503, %v1791
        %v1793 = vpop.f32.mrb[0].mxu0
        %v1794 = vpop.f32.mrb[0].mxu0
        %v1795 = vadd.f32 %v1506, %v1794
        %v1796 = vpop.f32.mrb[0].mxu0
        %1797 = vmatprep.mubr.bf16.mxu0 0
        %1798 = vmatmul.mubr.bf16.gmra.mrb[0].mxu0 %v976
        %v1799 = vpop.f32.mrb[0].mxu0
        %v1800 = vadd.f32 %v1511, %v1799
        %v1801 = vpop.f32.mrb[0].mxu0
        %v1802 = vpop.f32.mrb[0].mxu0
        %v1803 = vadd.f32 %v1514, %v1802
        %v1804 = vpop.f32.mrb[0].mxu0
        %1805 = vmatprep.mubr.bf16.mxu0 0
        %1806 = vmatmul.mubr.bf16.gmra.mrb[0].mxu0 %v978
        %v1807 = vpop.f32.mrb[0].mxu0
        %v1808 = vadd.f32 %v1519, %v1807
        %v1809 = vpop.f32.mrb[0].mxu0
        %v1810 = vpop.f32.mrb[0].mxu0
        %v1811 = vadd.f32 %v1522, %v1810
        %v1812 = vpop.f32.mrb[0].mxu0
        %1813 = vmatprep.mubr.bf16.mxu0 0
        %1814 = vmatmul.mubr.bf16.gmra.mrb[0].mxu0 %v981
        %v1815 = vpop.f32.mrb[0].mxu0
        %v1816 = vadd.f32 %v1527, %v1815
        %v1817 = vpop.f32.mrb[0].mxu0
        %v1818 = vpop.f32.mrb[0].mxu0
        %v1819 = vadd.f32 %v1530, %v1818
        %v1820 = vpop.f32.mrb[0].mxu0
        %1821 = vmatprep.mubr.bf16.mxu0 0
        %1822 = vmatmul.mubr.bf16.gmra.mrb[0].mxu0 %v983
        %v1823 = vpop.f32.mrb[0].mxu0
        %v1824 = vadd.f32 %v1535, %v1823
        %v1825 = vpop.f32.mrb[0].mxu0
        %v1826 = vpop.f32.mrb[0].mxu0
        %v1827 = vadd.f32 %v1538, %v1826
        %v1828 = vpop.f32.mrb[0].mxu0
        %1829 = vmatprep.mubr.bf16.mxu0 0
        %1830 = vmatmul.mubr.bf16.gmra.mrb[0].mxu0 %v986
        %v1831 = vpop.f32.mrb[0].mxu0
        %v1832 = vadd.f32 %v1543, %v1831
        %v1833 = vpop.f32.mrb[0].mxu0
        %v1834 = vpop.f32.mrb[0].mxu0
        %v1835 = vadd.f32 %v1546, %v1834
        %v1836 = vpop.f32.mrb[0].mxu0
        %1837 = vmatprep.mubr.bf16.mxu0 0
        %1838 = vmatmul.mubr.bf16.gmra.mrb[0].mxu0 %v988
        %v1839 = vpop.f32.mrb[0].mxu0
        %v1840 = vadd.f32 %v1551, %v1839
        %v1841 = vpop.f32.mrb[0].mxu0
        %v1842 = vpop.f32.mrb[0].mxu0
        %v1843 = vadd.f32 %v1554, %v1842
        %v1844 = vpop.f32.mrb[0].mxu0
        %1845 = vmatprep.mubr.bf16.mxu0 0
        %1846 = vmatmul.mubr.bf16.gmra.mrb[0].mxu0 %v991
        %v1847 = vpop.f32.mrb[0].mxu0
        %v1848 = vadd.f32 %v1559, %v1847
        %v1849 = vpop.f32.mrb[0].mxu0
        %v1850 = vpop.f32.mrb[0].mxu0
        %v1851 = vadd.f32 %v1562, %v1850
        %v1852 = vpop.f32.mrb[0].mxu0
        %1853 = vmatprep.mubr.bf16.mxu0 0
        %1854 = vmatmul.mubr.bf16.gmra.mrb[0].mxu0 %v993
        %v1855 = vpop.f32.mrb[0].mxu0
        %v1856 = vadd.f32 %v1567, %v1855
        %v1857 = vpop.f32.mrb[0].mxu0
        %v1858 = vpop.f32.mrb[0].mxu0
        %v1859 = vadd.f32 %v1570, %v1858
        %v1860 = vpop.f32.mrb[0].mxu0
        %1861 = vmatprep.mubr.bf16.mxu0 0
        %1862 = vmatmul.mubr.bf16.gmra.mrb[0].mxu0 %v996
        %v1863 = vpop.f32.mrb[0].mxu0
        %v1864 = vadd.f32 %v1575, %v1863
        %v1865 = vpop.f32.mrb[0].mxu0
        %v1866 = vpop.f32.mrb[0].mxu0
        %v1867 = vadd.f32 %v1578, %v1866
        %v1868 = vpop.f32.mrb[0].mxu0
        %1869 = vmatprep.mubr.bf16.mxu0 0
        %1870 = vmatmul.mubr.bf16.gmra.mrb[0].mxu0 %v998
        %v1871 = vpop.f32.mrb[0].mxu0
        %v1872 = vadd.f32 %v1583, %v1871
        %v1873 = vpop.f32.mrb[0].mxu0
        %v1874 = vpop.f32.mrb[0].mxu0
        %v1875 = vadd.f32 %v1586, %v1874
        %v1876 = vpop.f32.mrb[0].mxu0
        %1877 = vmatprep.mubr.bf16.mxu0 0
        %1878 = vmatmul.mubr.bf16.gmra.mrb[0].mxu0 %v1118
        %v1879 = vpop.f32.mrb[0].mxu0
        %v1880 = vadd.f32 %v1591, %v1879
        %v1881 = vpop.f32.mrb[0].mxu0
        %v1882 = vpop.f32.mrb[0].mxu0
        %v1883 = vadd.f32 %v1594, %v1882
        %v1884 = vpop.f32.mrb[0].mxu0
        %1885 = vmatprep.mubr.bf16.mxu0 0
        %1886 = vmatmul.mubr.bf16.gmra.mrb[0].mxu0 %v1120
        %v1887 = vpop.f32.mrb[0].mxu0
        %v1888 = vadd.f32 %v1599, %v1887
        %v1889 = vpop.f32.mrb[0].mxu0
        %v1890 = vpop.f32.mrb[0].mxu0
        %v1891 = vadd.f32 %v1602, %v1890
        %v1892 = vpop.f32.mrb[0].mxu0
        %1893 = vdwg.mxu0
        %v1942 = vunpack.c.l.b16 %v1031
        %v1943 = vunpack.c.l.b16 %v1032
        %v1944 = vunpack.c.l.b16 %v1033
        %v1945 = vunpack.c.l.b16 %v1034
        %v1946 = vunpack.c.l.b16 %v1035
        %v1947 = vunpack.c.l.b16 %v1036
        %v1948 = vunpack.c.l.b16 %v1037
        %v1949 = vunpack.c.l.b16 %v1038
        %v1950 = vunpack.c.l.b16 %v1039
        %v1951 = vunpack.c.l.b16 %v1040
        %v1952 = vunpack.c.l.b16 %v1041
        %v1953 = vunpack.c.l.b16 %v1042
        %v1954 = vunpack.c.l.b16 %v1043
        %v1955 = vunpack.c.l.b16 %v1044
        %v1956 = vunpack.c.l.b16 %v1045
        %v1957 = vunpack.c.l.b16 %v1046
        %v1958 = vunpack.c.l.b16 %v1047
        %v1959 = vunpack.c.l.b16 %v1048
        %v1960 = vunpack.c.l.b16 %v1049
        %v1961 = vunpack.c.l.b16 %v1050
        %v1962 = vunpack.c.l.b16 %v1051
        %v1963 = vunpack.c.l.b16 %v1052
        %v1964 = vunpack.c.l.b16 %v1053
        %v1965 = vunpack.c.l.b16 %v1054
        %v1966 = vunpack.c.l.b16 %v1055
        %v1967 = vunpack.c.l.b16 %v1056
        %v1968 = vunpack.c.l.b16 %v1057
        %v1969 = vunpack.c.l.b16 %v1058
        %v1970 = vunpack.c.l.b16 %v1059
        %v1971 = vunpack.c.l.b16 %v1060
        %v1972 = vunpack.c.l.b16 %v1061
        %v1973 = vunpack.c.l.b16 %v1062
        %v1974 = vunpack.c.l.b16 %v1063
        %v1975 = vunpack.c.l.b16 %v1064
        %v1976 = vunpack.c.l.b16 %v1065
        %v1977 = vunpack.c.l.b16 %v1066
        %v1978 = vunpack.c.l.b16 %v1067
        %v1979 = vunpack.c.l.b16 %v1068
        %v1980 = vunpack.c.l.b16 %v1069
        %v1981 = vunpack.c.l.b16 %v1070
        %v1982 = vunpack.c.l.b16 %v1071
        %v1983 = vunpack.c.l.b16 %v1072
        %v1984 = vunpack.c.l.b16 %v1073
        %v1985 = vunpack.c.l.b16 %v1074
        %v1986 = vunpack.c.l.b16 %v1075
        %v1987 = vunpack.c.l.b16 %v1076
        %v1988 = vunpack.c.l.b16 %v1077
        %v1989 = vunpack.c.l.b16 %v1078
        %v1990 = vpack.c.b16 %v1943, %v1942
        %v1991 = vpack.c.b16 %v1945, %v1944
        %v1992 = vpack.c.b16 %v1947, %v1946
        %v1993 = vpack.c.b16 %v1949, %v1948
        %v1994 = vpack.c.b16 %v1951, %v1950
        %v1995 = vpack.c.b16 %v1953, %v1952
        %v1996 = vpack.c.b16 %v1955, %v1954
        %v1997 = vpack.c.b16 %v1957, %v1956
        %v1998 = vpack.c.b16 %v1959, %v1958
        %v1999 = vpack.c.b16 %v1961, %v1960
        %v2000 = vpack.c.b16 %v1963, %v1962
        %v2001 = vpack.c.b16 %v1965, %v1964
        %v2002 = vpack.c.b16 %v1967, %v1966
        %v2003 = vpack.c.b16 %v1969, %v1968
        %v2004 = vpack.c.b16 %v1971, %v1970
        %v2005 = vpack.c.b16 %v1973, %v1972
        %v2006 = vpack.c.b16 %v1975, %v1974
        %v2007 = vpack.c.b16 %v1977, %v1976
        %v2008 = vpack.c.b16 %v1979, %v1978
        %v2009 = vpack.c.b16 %v1981, %v1980
        %v2010 = vpack.c.b16 %v1983, %v1982
        %v2011 = vpack.c.b16 %v1985, %v1984
        %v2012 = vpack.c.b16 %v1987, %v1986
        %v2013 = vpack.c.b16 %v1989, %v1988
        %2038 = vmatprep.subr.bf16.mxu0 0
        %2039 = vmatpush1.bf16.msra.mxu0 %v1990
        %2040 = vmatprep.subr.bf16.mxu0 0
        %2041 = vmatpush1.bf16.msra.mxu0 %v1991
        %2042 = vmatprep.subr.bf16.mxu0 0
        %2043 = vmatpush1.bf16.msra.mxu0 %v1992
        %2044 = vmatprep.subr.bf16.mxu0 0
        %2045 = vmatpush1.bf16.msra.mxu0 %v1993
        %2046 = vmatprep.subr.bf16.mxu0 0
        %2047 = vmatpush1.bf16.msra.mxu0 %v1994
        %2048 = vmatprep.subr.bf16.mxu0 0
        %2049 = vmatpush1.bf16.msra.mxu0 %v1995
        %2050 = vmatprep.subr.bf16.mxu0 0
        %2051 = vmatpush1.bf16.msra.mxu0 %v1996
        %2052 = vmatprep.subr.bf16.mxu0 0
        %2053 = vmatpush1.bf16.msra.mxu0 %v1997
        %2054 = vmatprep.subr.bf16.mxu0 0
        %2055 = vmatpush1.bf16.msra.mxu0 %v1998
        %2056 = vmatprep.subr.bf16.mxu0 0
        %2057 = vmatpush1.bf16.msra.mxu0 %v1999
        %2058 = vmatprep.subr.bf16.mxu0 0
        %2059 = vmatpush1.bf16.msra.mxu0 %v2000
        %2060 = vmatprep.subr.bf16.mxu0 0
        %2061 = vmatpush1.bf16.msra.mxu0 %v2001
        %2062 = vmatprep.subr.bf16.mxu0 0
        %2063 = vmatpush1.bf16.msra.mxu0 %v2002
        %2064 = vmatprep.subr.bf16.mxu0 0
        %2065 = vmatpush1.bf16.msra.mxu0 %v2003
        %2066 = vmatprep.subr.bf16.mxu0 0
        %2067 = vmatpush1.bf16.msra.mxu0 %v2004
        %2068 = vmatprep.subr.bf16.mxu0 0
        %2069 = vmatpush1.bf16.msra.mxu0 %v2005
        %2070 = vmatprep.mubr.bf16.mxu0 %v577
        %2071 = vmatmul.mubr.bf16.gmra.mrb[0].mxu0 %v453
        %v2072 = vpop.f32.mrb[0].mxu0
        %v2073 = vadd.f32 %v1640, %v2072
        %v2074 = vpop.f32.mrb[0].mxu0
        %v2075 = vpop.f32.mrb[0].mxu0
        %v2076 = vadd.f32 %v1643, %v2075
        %v2077 = vpop.f32.mrb[0].mxu0
        %2078 = vmatprep.mubr.bf16.mxu0 %v585
        %2079 = vmatmul.mubr.bf16.gmra.mrb[0].mxu0 %v454
        %v2080 = vpop.f32.mrb[0].mxu0
        %v2081 = vadd.f32 %v1648, %v2080
        %v2082 = vpop.f32.mrb[0].mxu0
        %v2083 = vpop.f32.mrb[0].mxu0
        %v2084 = vadd.f32 %v1651, %v2083
        %v2085 = vpop.f32.mrb[0].mxu0
        %2086 = vmatprep.mubr.bf16.mxu0 %v597
        %2087 = vmatmul.mubr.bf16.gmra.mrb[0].mxu0 %v455
        %v2088 = vpop.f32.mrb[0].mxu0
        %v2089 = vadd.f32 %v1656, %v2088
        %v2090 = vpop.f32.mrb[0].mxu0
        %v2091 = vpop.f32.mrb[0].mxu0
        %v2092 = vadd.f32 %v1659, %v2091
        %v2093 = vpop.f32.mrb[0].mxu0
        %2094 = vmatprep.mubr.bf16.mxu0 %v605
        %2095 = vmatmul.mubr.bf16.gmra.mrb[0].mxu0 %v456
        %v2096 = vpop.f32.mrb[0].mxu0
        %v2097 = vadd.f32 %v1664, %v2096
        %v2098 = vpop.f32.mrb[0].mxu0
        %v2099 = vpop.f32.mrb[0].mxu0
        %v2100 = vadd.f32 %v1667, %v2099
        %v2101 = vpop.f32.mrb[0].mxu0
        %2102 = vmatprep.mubr.bf16.mxu0 %v617
        %2103 = vmatmul.mubr.bf16.gmra.mrb[0].mxu0 %v457
        %v2104 = vpop.f32.mrb[0].mxu0
        %v2105 = vadd.f32 %v1672, %v2104
        %v2106 = vpop.f32.mrb[0].mxu0
        %v2107 = vpop.f32.mrb[0].mxu0
        %v2108 = vadd.f32 %v1675, %v2107
        %v2109 = vpop.f32.mrb[0].mxu0
        %2110 = vmatprep.mubr.bf16.mxu0 %v625
        %2111 = vmatmul.mubr.bf16.gmra.mrb[0].mxu0 %v458
        %v2112 = vpop.f32.mrb[0].mxu0
        %v2113 = vadd.f32 %v1680, %v2112
        %v2114 = vpop.f32.mrb[0].mxu0
        %v2115 = vpop.f32.mrb[0].mxu0
        %v2116 = vadd.f32 %v1683, %v2115
        %v2117 = vpop.f32.mrb[0].mxu0
        %2118 = vmatprep.mubr.bf16.mxu0 %v637
        %2119 = vmatmul.mubr.bf16.gmra.mrb[0].mxu0 %v459
        %v2120 = vpop.f32.mrb[0].mxu0
        %v2121 = vadd.f32 %v1688, %v2120
        %v2122 = vpop.f32.mrb[0].mxu0
        %v2123 = vpop.f32.mrb[0].mxu0
        %v2124 = vadd.f32 %v1691, %v2123
        %v2125 = vpop.f32.mrb[0].mxu0
        %2126 = vmatprep.mubr.bf16.mxu0 %v645
        %2127 = vmatmul.mubr.bf16.gmra.mrb[0].mxu0 %v460
        %v2128 = vpop.f32.mrb[0].mxu0
        %v2129 = vadd.f32 %v1696, %v2128
        %v2130 = vpop.f32.mrb[0].mxu0
        %v2131 = vpop.f32.mrb[0].mxu0
        %v2132 = vadd.f32 %v1699, %v2131
        %v2133 = vpop.f32.mrb[0].mxu0
        %2134 = vmatprep.mubr.bf16.mxu0 %v657
        %2135 = vmatmul.mubr.bf16.gmra.mrb[0].mxu0 %v461
        %v2136 = vpop.f32.mrb[0].mxu0
        %v2137 = vadd.f32 %v1704, %v2136
        %v2138 = vpop.f32.mrb[0].mxu0
        %v2139 = vpop.f32.mrb[0].mxu0
        %v2140 = vadd.f32 %v1707, %v2139
        %v2141 = vpop.f32.mrb[0].mxu0
        %2142 = vmatprep.mubr.bf16.mxu0 %v665
        %2143 = vmatmul.mubr.bf16.gmra.mrb[0].mxu0 %v462
        %v2144 = vpop.f32.mrb[0].mxu0
        %v2145 = vadd.f32 %v1712, %v2144
        %v2146 = vpop.f32.mrb[0].mxu0
        %v2147 = vpop.f32.mrb[0].mxu0
        %v2148 = vadd.f32 %v1715, %v2147
        %v2149 = vpop.f32.mrb[0].mxu0
        %2150 = vmatprep.mubr.bf16.mxu0 %v677
        %2151 = vmatmul.mubr.bf16.gmra.mrb[0].mxu0 %v463
        %v2152 = vpop.f32.mrb[0].mxu0
        %v2153 = vadd.f32 %v1720, %v2152
        %v2154 = vpop.f32.mrb[0].mxu0
        %v2155 = vpop.f32.mrb[0].mxu0
        %v2156 = vadd.f32 %v1723, %v2155
        %v2157 = vpop.f32.mrb[0].mxu0
        %2158 = vmatprep.mubr.bf16.mxu0 %v685
        %2159 = vmatmul.mubr.bf16.gmra.mrb[0].mxu0 %v464
        %v2160 = vpop.f32.mrb[0].mxu0
        %v2161 = vadd.f32 %v1728, %v2160
        %v2162 = vpop.f32.mrb[0].mxu0
        %v2163 = vpop.f32.mrb[0].mxu0
        %v2164 = vadd.f32 %v1731, %v2163
        %v2165 = vpop.f32.mrb[0].mxu0
        %2166 = vmatprep.mubr.bf16.mxu0 %v697
        %2167 = vmatmul.mubr.bf16.gmra.mrb[0].mxu0 %v465
        %v2168 = vpop.f32.mrb[0].mxu0
        %v2169 = vadd.f32 %v1736, %v2168
        %v2170 = vpop.f32.mrb[0].mxu0
        %v2171 = vpop.f32.mrb[0].mxu0
        %v2172 = vadd.f32 %v1739, %v2171
        %v2173 = vpop.f32.mrb[0].mxu0
        %2174 = vmatprep.mubr.bf16.mxu0 %v705
        %2175 = vmatmul.mubr.bf16.gmra.mrb[0].mxu0 %v466
        %v2176 = vpop.f32.mrb[0].mxu0
        %v2177 = vadd.f32 %v1744, %v2176
        %v2178 = vpop.f32.mrb[0].mxu0
        %v2179 = vpop.f32.mrb[0].mxu0
        %v2180 = vadd.f32 %v1747, %v2179
        %v2181 = vpop.f32.mrb[0].mxu0
        %2182 = vmatprep.mubr.bf16.mxu0 %v717
        %2183 = vmatmul.mubr.bf16.gmra.mrb[0].mxu0 %v467
        %v2184 = vpop.f32.mrb[0].mxu0
        %v2185 = vadd.f32 %v1752, %v2184
        %v2186 = vpop.f32.mrb[0].mxu0
        %v2187 = vpop.f32.mrb[0].mxu0
        %v2188 = vadd.f32 %v1755, %v2187
        %v2189 = vpop.f32.mrb[0].mxu0
        %2190 = vmatprep.mubr.bf16.mxu0 %v725
        %2191 = vmatmul.mubr.bf16.gmra.mrb[0].mxu0 %v468
        %v2192 = vpop.f32.mrb[0].mxu0
        %v2193 = vadd.f32 %v1760, %v2192
        %v2194 = vpop.f32.mrb[0].mxu0
        %v2195 = vpop.f32.mrb[0].mxu0
        %v2196 = vadd.f32 %v1763, %v2195
        %v2197 = vpop.f32.mrb[0].mxu0
        %2198 = vmatprep.mubr.bf16.mxu0 %v737
        %2199 = vmatmul.mubr.bf16.gmra.mrb[0].mxu0 %v469
        %v2200 = vpop.f32.mrb[0].mxu0
        %v2201 = vadd.f32 %v1768, %v2200
        %v2202 = vpop.f32.mrb[0].mxu0
        %v2203 = vpop.f32.mrb[0].mxu0
        %v2204 = vadd.f32 %v1771, %v2203
        %v2205 = vpop.f32.mrb[0].mxu0
        %2206 = vmatprep.mubr.bf16.mxu0 %v745
        %2207 = vmatmul.mubr.bf16.gmra.mrb[0].mxu0 %v470
        %v2208 = vpop.f32.mrb[0].mxu0
        %v2209 = vadd.f32 %v1776, %v2208
        %v2210 = vpop.f32.mrb[0].mxu0
        %v2211 = vpop.f32.mrb[0].mxu0
        %v2212 = vadd.f32 %v1779, %v2211
        %v2213 = vpop.f32.mrb[0].mxu0
        %2214 = vmatprep.mubr.bf16.mxu0 %v757
        %2215 = vmatmul.mubr.bf16.gmra.mrb[0].mxu0 %v471
        %v2216 = vpop.f32.mrb[0].mxu0
        %v2217 = vadd.f32 %v1784, %v2216
        %v2218 = vpop.f32.mrb[0].mxu0
        %v2219 = vpop.f32.mrb[0].mxu0
        %v2220 = vadd.f32 %v1787, %v2219
        %v2221 = vpop.f32.mrb[0].mxu0
        %2222 = vmatprep.mubr.bf16.mxu0 %v765
        %2223 = vmatmul.mubr.bf16.gmra.mrb[0].mxu0 %v472
        %v2224 = vpop.f32.mrb[0].mxu0
        %v2225 = vadd.f32 %v1792, %v2224
        %v2226 = vpop.f32.mrb[0].mxu0
        %v2227 = vpop.f32.mrb[0].mxu0
        %v2228 = vadd.f32 %v1795, %v2227
        %v2229 = vpop.f32.mrb[0].mxu0
        %2230 = vmatprep.mubr.bf16.mxu0 %v777
        %2231 = vmatmul.mubr.bf16.gmra.mrb[0].mxu0 %v473
        %v2232 = vpop.f32.mrb[0].mxu0
        %v2233 = vadd.f32 %v1800, %v2232
        %v2234 = vpop.f32.mrb[0].mxu0
        %v2235 = vpop.f32.mrb[0].mxu0
        %v2236 = vadd.f32 %v1803, %v2235
        %v2237 = vpop.f32.mrb[0].mxu0
        %2238 = vmatprep.mubr.bf16.mxu0 %v785
        %2239 = vmatmul.mubr.bf16.gmra.mrb[0].mxu0 %v474
        %v2240 = vpop.f32.mrb[0].mxu0
        %v2241 = vadd.f32 %v1808, %v2240
        %v2242 = vpop.f32.mrb[0].mxu0
        %v2243 = vpop.f32.mrb[0].mxu0
        %v2244 = vadd.f32 %v1811, %v2243
        %v2245 = vpop.f32.mrb[0].mxu0
        %2246 = vmatprep.mubr.bf16.mxu0 %v797
        %2247 = vmatmul.mubr.bf16.gmra.mrb[0].mxu0 %v475
        %v2248 = vpop.f32.mrb[0].mxu0
        %v2249 = vadd.f32 %v1816, %v2248
        %v2250 = vpop.f32.mrb[0].mxu0
        %v2251 = vpop.f32.mrb[0].mxu0
        %v2252 = vadd.f32 %v1819, %v2251
        %v2253 = vpop.f32.mrb[0].mxu0
        %2254 = vmatprep.mubr.bf16.mxu0 %v805
        %2255 = vmatmul.mubr.bf16.gmra.mrb[0].mxu0 %v476
        %v2256 = vpop.f32.mrb[0].mxu0
        %v2257 = vadd.f32 %v1824, %v2256
        %v2258 = vpop.f32.mrb[0].mxu0
        %v2259 = vpop.f32.mrb[0].mxu0
        %v2260 = vadd.f32 %v1827, %v2259
        %v2261 = vpop.f32.mrb[0].mxu0
        %2262 = vmatprep.mubr.bf16.mxu0 %v817
        %2263 = vmatmul.mubr.bf16.gmra.mrb[0].mxu0 %v477
        %v2264 = vpop.f32.mrb[0].mxu0
        %v2265 = vadd.f32 %v1832, %v2264
        %v2266 = vpop.f32.mrb[0].mxu0
        %v2267 = vpop.f32.mrb[0].mxu0
        %v2268 = vadd.f32 %v1835, %v2267
        %v2269 = vpop.f32.mrb[0].mxu0
        %2270 = vmatprep.mubr.bf16.mxu0 %v825
        %2271 = vmatmul.mubr.bf16.gmra.mrb[0].mxu0 %v478
        %v2272 = vpop.f32.mrb[0].mxu0
        %v2273 = vadd.f32 %v1840, %v2272
        %v2274 = vpop.f32.mrb[0].mxu0
        %v2275 = vpop.f32.mrb[0].mxu0
        %v2276 = vadd.f32 %v1843, %v2275
        %v2277 = vpop.f32.mrb[0].mxu0
        %2278 = vmatprep.mubr.bf16.mxu0 %v837
        %2279 = vmatmul.mubr.bf16.gmra.mrb[0].mxu0 %v479
        %v2280 = vpop.f32.mrb[0].mxu0
        %v2281 = vadd.f32 %v1848, %v2280
        %v2282 = vpop.f32.mrb[0].mxu0
        %v2283 = vpop.f32.mrb[0].mxu0
        %v2284 = vadd.f32 %v1851, %v2283
        %v2285 = vpop.f32.mrb[0].mxu0
        %2286 = vmatprep.mubr.bf16.mxu0 %v845
        %2287 = vmatmul.mubr.bf16.gmra.mrb[0].mxu0 %v480
        %v2288 = vpop.f32.mrb[0].mxu0
        %v2289 = vadd.f32 %v1856, %v2288
        %v2290 = vpop.f32.mrb[0].mxu0
        %v2291 = vpop.f32.mrb[0].mxu0
        %v2292 = vadd.f32 %v1859, %v2291
        %v2293 = vpop.f32.mrb[0].mxu0
        %2294 = vmatprep.mubr.bf16.mxu0 %v857
        %2295 = vmatmul.mubr.bf16.gmra.mrb[0].mxu0 %v481
        %v2296 = vpop.f32.mrb[0].mxu0
        %v2297 = vadd.f32 %v1864, %v2296
        %v2298 = vpop.f32.mrb[0].mxu0
        %v2299 = vpop.f32.mrb[0].mxu0
        %v2300 = vadd.f32 %v1867, %v2299
        %v2301 = vpop.f32.mrb[0].mxu0
        %2302 = vmatprep.mubr.bf16.mxu0 %v865
        %2303 = vmatmul.mubr.bf16.gmra.mrb[0].mxu0 %v482
        %v2304 = vpop.f32.mrb[0].mxu0
        %v2305 = vadd.f32 %v1872, %v2304
        %v2306 = vpop.f32.mrb[0].mxu0
        %v2307 = vpop.f32.mrb[0].mxu0
        %v2308 = vadd.f32 %v1875, %v2307
        %v2309 = vpop.f32.mrb[0].mxu0
        %2310 = vmatprep.mubr.bf16.mxu0 %v877
        %2311 = vmatmul.mubr.bf16.gmra.mrb[0].mxu0 %v483
        %v2312 = vpop.f32.mrb[0].mxu0
        %v2313 = vadd.f32 %v1880, %v2312
        %v2314 = vpop.f32.mrb[0].mxu0
        %v2315 = vpop.f32.mrb[0].mxu0
        %v2316 = vadd.f32 %v1883, %v2315
        %v2317 = vpop.f32.mrb[0].mxu0
        %2318 = vmatprep.mubr.bf16.mxu0 %v885
        %2319 = vmatmul.mubr.bf16.gmra.mrb[0].mxu0 %v484
        %v2320 = vpop.f32.mrb[0].mxu0
        %v2321 = vadd.f32 %v1888, %v2320
        %v2322 = vpop.f32.mrb[0].mxu0
        %v2323 = vpop.f32.mrb[0].mxu0
        %v2324 = vadd.f32 %v1891, %v2323
        %v2325 = vpop.f32.mrb[0].mxu0
        %2326 = vdwg.mxu0
        %2327 = vmatprep.subr.bf16.mxu0 0
        %2328 = vmatpush1.bf16.msra.mxu0 %v2006
        %2329 = vmatprep.subr.bf16.mxu0 0
        %2330 = vmatpush1.bf16.msra.mxu0 %v2007
        %2331 = vmatprep.subr.bf16.mxu0 0
        %2332 = vmatpush1.bf16.msra.mxu0 %v2008
        %2333 = vmatprep.subr.bf16.mxu0 0
        %2334 = vmatpush1.bf16.msra.mxu0 %v2009
        %2335 = vmatprep.subr.bf16.mxu0 0
        %2336 = vmatpush1.bf16.msra.mxu0 %v2010
        %2337 = vmatprep.subr.bf16.mxu0 0
        %2338 = vmatpush1.bf16.msra.mxu0 %v2011
        %2339 = vmatprep.subr.bf16.mxu0 0
        %2340 = vmatpush1.bf16.msra.mxu0 %v2012
        %2341 = vmatprep.subr.bf16.mxu0 0
        %2342 = vmatpush1.bf16.msra.mxu0 %v2013
        %2343 = vmatprep.subr.bf16.mxu0 0
        %2344 = vmatpush1.bf16.msra.mxu0 0
        %2345 = vmatprep.subr.bf16.mxu0 0
        %2346 = vmatpush1.bf16.msra.mxu0 0
        %2347 = vmatprep.subr.bf16.mxu0 0
        %2348 = vmatpush1.bf16.msra.mxu0 0
        %2349 = vmatprep.subr.bf16.mxu0 0
        %2350 = vmatpush1.bf16.msra.mxu0 0
        %2351 = vmatprep.subr.bf16.mxu0 0
        %2352 = vmatpush1.bf16.msra.mxu0 0
        %2353 = vmatprep.subr.bf16.mxu0 0
        %2354 = vmatpush1.bf16.msra.mxu0 0
        %2355 = vmatprep.subr.bf16.mxu0 0
        %2356 = vmatpush1.bf16.msra.mxu0 0
        %2357 = vmatprep.subr.bf16.mxu0 0
        %2358 = vmatpush1.bf16.msra.mxu0 0
        %2359 = vmatprep.mubr.bf16.mxu0 0
        %2360 = vmatmul.mubr.bf16.gmra.mrb[0].mxu0 %v921
        %v2361 = vpop.f32.mrb[0].mxu0
        %v2362 = vadd.f32 %v2073, %v2361
        %v2363 = vpop.f32.mrb[0].mxu0
        %v2364 = vpop.f32.mrb[0].mxu0
        %v2365 = vadd.f32 %v2076, %v2364
        %v2366 = vpop.f32.mrb[0].mxu0
        %2367 = vmatprep.mubr.bf16.mxu0 0
        %2368 = vmatmul.mubr.bf16.gmra.mrb[0].mxu0 %v923
        %v2369 = vpop.f32.mrb[0].mxu0
        %v2370 = vadd.f32 %v2081, %v2369
        %v2371 = vpop.f32.mrb[0].mxu0
        %v2372 = vpop.f32.mrb[0].mxu0
        %v2373 = vadd.f32 %v2084, %v2372
        %v2374 = vpop.f32.mrb[0].mxu0
        %2375 = vmatprep.mubr.bf16.mxu0 0
        %2376 = vmatmul.mubr.bf16.gmra.mrb[0].mxu0 %v926
        %v2377 = vpop.f32.mrb[0].mxu0
        %v2378 = vadd.f32 %v2089, %v2377
        %v2379 = vpop.f32.mrb[0].mxu0
        %v2380 = vpop.f32.mrb[0].mxu0
        %v2381 = vadd.f32 %v2092, %v2380
        %v2382 = vpop.f32.mrb[0].mxu0
        %2383 = vmatprep.mubr.bf16.mxu0 0
        %2384 = vmatmul.mubr.bf16.gmra.mrb[0].mxu0 %v928
        %v2385 = vpop.f32.mrb[0].mxu0
        %v2386 = vadd.f32 %v2097, %v2385
        %v2387 = vpop.f32.mrb[0].mxu0
        %v2388 = vpop.f32.mrb[0].mxu0
        %v2389 = vadd.f32 %v2100, %v2388
        %v2390 = vpop.f32.mrb[0].mxu0
        %2391 = vmatprep.mubr.bf16.mxu0 0
        %2392 = vmatmul.mubr.bf16.gmra.mrb[0].mxu0 %v931
        %v2393 = vpop.f32.mrb[0].mxu0
        %v2394 = vadd.f32 %v2105, %v2393
        %v2395 = vpop.f32.mrb[0].mxu0
        %v2396 = vpop.f32.mrb[0].mxu0
        %v2397 = vadd.f32 %v2108, %v2396
        %v2398 = vpop.f32.mrb[0].mxu0
        %2399 = vmatprep.mubr.bf16.mxu0 0
        %2400 = vmatmul.mubr.bf16.gmra.mrb[0].mxu0 %v933
        %v2401 = vpop.f32.mrb[0].mxu0
        %v2402 = vadd.f32 %v2113, %v2401
        %v2403 = vpop.f32.mrb[0].mxu0
        %v2404 = vpop.f32.mrb[0].mxu0
        %v2405 = vadd.f32 %v2116, %v2404
        %v2406 = vpop.f32.mrb[0].mxu0
        %2407 = vmatprep.mubr.bf16.mxu0 0
        %2408 = vmatmul.mubr.bf16.gmra.mrb[0].mxu0 %v936
        %v2409 = vpop.f32.mrb[0].mxu0
        %v2410 = vadd.f32 %v2121, %v2409
        %v2411 = vpop.f32.mrb[0].mxu0
        %v2412 = vpop.f32.mrb[0].mxu0
        %v2413 = vadd.f32 %v2124, %v2412
        %v2414 = vpop.f32.mrb[0].mxu0
        %2415 = vmatprep.mubr.bf16.mxu0 0
        %2416 = vmatmul.mubr.bf16.gmra.mrb[0].mxu0 %v938
        %v2417 = vpop.f32.mrb[0].mxu0
        %v2418 = vadd.f32 %v2129, %v2417
        %v2419 = vpop.f32.mrb[0].mxu0
        %v2420 = vpop.f32.mrb[0].mxu0
        %v2421 = vadd.f32 %v2132, %v2420
        %v2422 = vpop.f32.mrb[0].mxu0
        %2423 = vmatprep.mubr.bf16.mxu0 0
        %2424 = vmatmul.mubr.bf16.gmra.mrb[0].mxu0 %v941
        %v2425 = vpop.f32.mrb[0].mxu0
        %v2426 = vadd.f32 %v2137, %v2425
        %v2427 = vpop.f32.mrb[0].mxu0
        %v2428 = vpop.f32.mrb[0].mxu0
        %v2429 = vadd.f32 %v2140, %v2428
        %v2430 = vpop.f32.mrb[0].mxu0
        %2431 = vmatprep.mubr.bf16.mxu0 0
        %2432 = vmatmul.mubr.bf16.gmra.mrb[0].mxu0 %v943
        %v2433 = vpop.f32.mrb[0].mxu0
        %v2434 = vadd.f32 %v2145, %v2433
        %v2435 = vpop.f32.mrb[0].mxu0
        %v2436 = vpop.f32.mrb[0].mxu0
        %v2437 = vadd.f32 %v2148, %v2436
        %v2438 = vpop.f32.mrb[0].mxu0
        %2439 = vmatprep.mubr.bf16.mxu0 0
        %2440 = vmatmul.mubr.bf16.gmra.mrb[0].mxu0 %v946
        %v2441 = vpop.f32.mrb[0].mxu0
        %v2442 = vadd.f32 %v2153, %v2441
        %v2443 = vpop.f32.mrb[0].mxu0
        %v2444 = vpop.f32.mrb[0].mxu0
        %v2445 = vadd.f32 %v2156, %v2444
        %v2446 = vpop.f32.mrb[0].mxu0
        %2447 = vmatprep.mubr.bf16.mxu0 0
        %2448 = vmatmul.mubr.bf16.gmra.mrb[0].mxu0 %v948
        %v2449 = vpop.f32.mrb[0].mxu0
        %v2450 = vadd.f32 %v2161, %v2449
        %v2451 = vpop.f32.mrb[0].mxu0
        %v2452 = vpop.f32.mrb[0].mxu0
        %v2453 = vadd.f32 %v2164, %v2452
        %v2454 = vpop.f32.mrb[0].mxu0
        %2455 = vmatprep.mubr.bf16.mxu0 0
        %2456 = vmatmul.mubr.bf16.gmra.mrb[0].mxu0 %v951
        %v2457 = vpop.f32.mrb[0].mxu0
        %v2458 = vadd.f32 %v2169, %v2457
        %v2459 = vpop.f32.mrb[0].mxu0
        %v2460 = vpop.f32.mrb[0].mxu0
        %v2461 = vadd.f32 %v2172, %v2460
        %v2462 = vpop.f32.mrb[0].mxu0
        %2463 = vmatprep.mubr.bf16.mxu0 0
        %2464 = vmatmul.mubr.bf16.gmra.mrb[0].mxu0 %v953
        %v2465 = vpop.f32.mrb[0].mxu0
        %v2466 = vadd.f32 %v2177, %v2465
        %v2467 = vpop.f32.mrb[0].mxu0
        %v2468 = vpop.f32.mrb[0].mxu0
        %v2469 = vadd.f32 %v2180, %v2468
        %v2470 = vpop.f32.mrb[0].mxu0
        %2471 = vmatprep.mubr.bf16.mxu0 0
        %2472 = vmatmul.mubr.bf16.gmra.mrb[0].mxu0 %v956
        %v2473 = vpop.f32.mrb[0].mxu0
        %v2474 = vadd.f32 %v2185, %v2473
        %v2475 = vpop.f32.mrb[0].mxu0
        %v2476 = vpop.f32.mrb[0].mxu0
        %v2477 = vadd.f32 %v2188, %v2476
        %v2478 = vpop.f32.mrb[0].mxu0
        %2479 = vmatprep.mubr.bf16.mxu0 0
        %2480 = vmatmul.mubr.bf16.gmra.mrb[0].mxu0 %v958
        %v2481 = vpop.f32.mrb[0].mxu0
        %v2482 = vadd.f32 %v2193, %v2481
        %v2483 = vpop.f32.mrb[0].mxu0
        %v2484 = vpop.f32.mrb[0].mxu0
        %v2485 = vadd.f32 %v2196, %v2484
        %v2486 = vpop.f32.mrb[0].mxu0
        %2487 = vmatprep.mubr.bf16.mxu0 0
        %2488 = vmatmul.mubr.bf16.gmra.mrb[0].mxu0 %v961
        %v2489 = vpop.f32.mrb[0].mxu0
        %v2490 = vadd.f32 %v2201, %v2489
        %v2491 = vpop.f32.mrb[0].mxu0
        %v2492 = vpop.f32.mrb[0].mxu0
        %v2493 = vadd.f32 %v2204, %v2492
        %v2494 = vpop.f32.mrb[0].mxu0
        %2495 = vmatprep.mubr.bf16.mxu0 0
        %2496 = vmatmul.mubr.bf16.gmra.mrb[0].mxu0 %v963
        %v2497 = vpop.f32.mrb[0].mxu0
        %v2498 = vadd.f32 %v2209, %v2497
        %v2499 = vpop.f32.mrb[0].mxu0
        %v2500 = vpop.f32.mrb[0].mxu0
        %v2501 = vadd.f32 %v2212, %v2500
        %v2502 = vpop.f32.mrb[0].mxu0
        %2503 = vmatprep.mubr.bf16.mxu0 0
        %2504 = vmatmul.mubr.bf16.gmra.mrb[0].mxu0 %v966
        %v2505 = vpop.f32.mrb[0].mxu0
        %v2506 = vadd.f32 %v2217, %v2505
        %v2507 = vpop.f32.mrb[0].mxu0
        %v2508 = vpop.f32.mrb[0].mxu0
        %v2509 = vadd.f32 %v2220, %v2508
        %v2510 = vpop.f32.mrb[0].mxu0
        %2511 = vmatprep.mubr.bf16.mxu0 0
        %2512 = vmatmul.mubr.bf16.gmra.mrb[0].mxu0 %v968
        %v2513 = vpop.f32.mrb[0].mxu0
        %v2514 = vadd.f32 %v2225, %v2513
        %v2515 = vpop.f32.mrb[0].mxu0
        %v2516 = vpop.f32.mrb[0].mxu0
        %v2517 = vadd.f32 %v2228, %v2516
        %v2518 = vpop.f32.mrb[0].mxu0
        %2519 = vmatprep.mubr.bf16.mxu0 0
        %2520 = vmatmul.mubr.bf16.gmra.mrb[0].mxu0 %v971
        %v2521 = vpop.f32.mrb[0].mxu0
        %v2522 = vadd.f32 %v2233, %v2521
        %v2523 = vpop.f32.mrb[0].mxu0
        %v2524 = vpop.f32.mrb[0].mxu0
        %v2525 = vadd.f32 %v2236, %v2524
        %v2526 = vpop.f32.mrb[0].mxu0
        %2527 = vmatprep.mubr.bf16.mxu0 0
        %2528 = vmatmul.mubr.bf16.gmra.mrb[0].mxu0 %v973
        %v2529 = vpop.f32.mrb[0].mxu0
        %v2530 = vadd.f32 %v2241, %v2529
        %v2531 = vpop.f32.mrb[0].mxu0
        %v2532 = vpop.f32.mrb[0].mxu0
        %v2533 = vadd.f32 %v2244, %v2532
        %v2534 = vpop.f32.mrb[0].mxu0
        %2535 = vmatprep.mubr.bf16.mxu0 0
        %2536 = vmatmul.mubr.bf16.gmra.mrb[0].mxu0 %v976
        %v2537 = vpop.f32.mrb[0].mxu0
        %v2538 = vadd.f32 %v2249, %v2537
        %v2539 = vpop.f32.mrb[0].mxu0
        %v2540 = vpop.f32.mrb[0].mxu0
        %v2541 = vadd.f32 %v2252, %v2540
        %v2542 = vpop.f32.mrb[0].mxu0
        %2543 = vmatprep.mubr.bf16.mxu0 0
        %2544 = vmatmul.mubr.bf16.gmra.mrb[0].mxu0 %v978
        %v2545 = vpop.f32.mrb[0].mxu0
        %v2546 = vadd.f32 %v2257, %v2545
        %v2547 = vpop.f32.mrb[0].mxu0
        %v2548 = vpop.f32.mrb[0].mxu0
        %v2549 = vadd.f32 %v2260, %v2548
        %v2550 = vpop.f32.mrb[0].mxu0
        %2551 = vmatprep.mubr.bf16.mxu0 0
        %2552 = vmatmul.mubr.bf16.gmra.mrb[0].mxu0 %v981
        %v2553 = vpop.f32.mrb[0].mxu0
        %v2554 = vadd.f32 %v2265, %v2553
        %v2555 = vpop.f32.mrb[0].mxu0
        %v2556 = vpop.f32.mrb[0].mxu0
        %v2557 = vadd.f32 %v2268, %v2556
        %v2558 = vpop.f32.mrb[0].mxu0
        %2559 = vmatprep.mubr.bf16.mxu0 0
        %2560 = vmatmul.mubr.bf16.gmra.mrb[0].mxu0 %v983
        %v2561 = vpop.f32.mrb[0].mxu0
        %v2562 = vadd.f32 %v2273, %v2561
        %v2563 = vpop.f32.mrb[0].mxu0
        %v2564 = vpop.f32.mrb[0].mxu0
        %v2565 = vadd.f32 %v2276, %v2564
        %v2566 = vpop.f32.mrb[0].mxu0
        %2567 = vmatprep.mubr.bf16.mxu0 0
        %2568 = vmatmul.mubr.bf16.gmra.mrb[0].mxu0 %v986
        %v2569 = vpop.f32.mrb[0].mxu0
        %v2570 = vadd.f32 %v2281, %v2569
        %v2571 = vpop.f32.mrb[0].mxu0
        %v2572 = vpop.f32.mrb[0].mxu0
        %v2573 = vadd.f32 %v2284, %v2572
        %v2574 = vpop.f32.mrb[0].mxu0
        %2575 = vmatprep.mubr.bf16.mxu0 0
        %2576 = vmatmul.mubr.bf16.gmra.mrb[0].mxu0 %v988
        %v2577 = vpop.f32.mrb[0].mxu0
        %v2578 = vadd.f32 %v2289, %v2577
        %v2579 = vpop.f32.mrb[0].mxu0
        %v2580 = vpop.f32.mrb[0].mxu0
        %v2581 = vadd.f32 %v2292, %v2580
        %v2582 = vpop.f32.mrb[0].mxu0
        %2583 = vmatprep.mubr.bf16.mxu0 0
        %2584 = vmatmul.mubr.bf16.gmra.mrb[0].mxu0 %v991
        %v2585 = vpop.f32.mrb[0].mxu0
        %v2586 = vadd.f32 %v2297, %v2585
        %v2587 = vpop.f32.mrb[0].mxu0
        %v2588 = vpop.f32.mrb[0].mxu0
        %v2589 = vadd.f32 %v2300, %v2588
        %v2590 = vpop.f32.mrb[0].mxu0
        %2591 = vmatprep.mubr.bf16.mxu0 0
        %2592 = vmatmul.mubr.bf16.gmra.mrb[0].mxu0 %v993
        %v2593 = vpop.f32.mrb[0].mxu0
        %v2594 = vadd.f32 %v2305, %v2593
        %v2595 = vpop.f32.mrb[0].mxu0
        %v2596 = vpop.f32.mrb[0].mxu0
        %v2597 = vadd.f32 %v2308, %v2596
        %v2598 = vpop.f32.mrb[0].mxu0
        %2599 = vmatprep.mubr.bf16.mxu0 0
        %2600 = vmatmul.mubr.bf16.gmra.mrb[0].mxu0 %v996
        %v2601 = vpop.f32.mrb[0].mxu0
        %v2602 = vadd.f32 %v2313, %v2601
        %v2603 = vpop.f32.mrb[0].mxu0
        %v2604 = vpop.f32.mrb[0].mxu0
        %v2605 = vadd.f32 %v2316, %v2604
        %v2606 = vpop.f32.mrb[0].mxu0
        %2607 = vmatprep.mubr.bf16.mxu0 0
        %2608 = vmatmul.mubr.bf16.gmra.mrb[0].mxu0 %v998
        %v2609 = vpop.f32.mrb[0].mxu0
        %v2610 = vadd.f32 %v2321, %v2609
        %v2611 = vpop.f32.mrb[0].mxu0
        %v2612 = vpop.f32.mrb[0].mxu0
        %v2613 = vadd.f32 %v2324, %v2612
        %v2614 = vpop.f32.mrb[0].mxu0
        %2615 = vdwg.mxu0
        %v2620 = vunpack.c.l.b16 %v320
        %v2621 = vunpack.c.l.b16 %v321
        %v2622 = vunpack.c.l.b16 %v322
        %v2623 = vunpack.c.l.b16 %v323
        %v2624 = vpack.c.b16 %v2621, %v2620
        %v2625 = vpack.c.b16 %v2623, %v2622
        %v2629 = vunpack.c.l.b16 %v324
        %v2630 = vpack.c.b16 %v2629, %v2629
        %v2632 = vshrl.u32 %v2624, 16
        %v2634 = vshll.u32 %v2624, 16
        %v2636 = vrot.slane %v2634, 1
        %v2637 = vor.u32 %v2632, %v2636
        %v2639 = vshll.u32 %v2625, 16
        %v2641 = vrot.slane %v2639, 1
        %v2642 = vsel %vm565, %v2637, %v2641
        %v2643 = vshrl.u32 %v2625, 16
        %v2645 = vor.u32 %v2643, %v2641
        %v2647 = vshll.u32 %v2630, 16
        %v2649 = vrot.slane %v2647, 1
        %v2650 = vsel %vm565, %v2645, %v2649
        %v2653 = vrot.slane %v2624, 1
        %v2654 = vrot.slane %v2625, 1
        %v2655 = vsel %vm918, %v2653, %v2654
        %v2656 = vrot.slane %v2630, 1
        %v2657 = vsel %vm918, %v2654, %v2656
        %s2660 = scalar_lea.vmem %s3, 384
        %v2661 = vld [vmem:[%s2660] sm:$0xf]
        %v2662 = vld [vmem:[%s2660 + $0x4] sm:$0xf]
        %v2663 = vld [vmem:[%s2660 + $0x8] sm:$0xf]
        %v2664 = vld [vmem:[%s2660 + $0xc] sm:$0xf]
        %v2665 = vld [vmem:[%s2660 + $0x10] sm:$0xf]
        %v2666 = vld [vmem:[%s2660 + $0x14] sm:$0xf]
        %v2667 = vld [vmem:[%s2660 + $0x18] sm:$0xf]
        %v2668 = vld [vmem:[%s2660 + $0x1c] sm:$0xf]
        %v2669 = vld [vmem:[%s2660 + $0x20] sm:$0xf]
        %v2670 = vld [vmem:[%s2660 + $0x24] sm:$0xf]
        %v2671 = vld [vmem:[%s2660 + $0x28] sm:$0xf]
        %v2672 = vld [vmem:[%s2660 + $0x2c] sm:$0xf]
        %v2673 = vld [vmem:[%s2660 + $0x30] sm:$0xf]
        %v2674 = vld [vmem:[%s2660 + $0x34] sm:$0xf]
        %v2675 = vld [vmem:[%s2660 + $0x38] sm:$0xf]
        %v2676 = vld [vmem:[%s2660 + $0x3c] sm:$0xf]
        %v2677 = vld [vmem:[%s2660 + $0x40] sm:$0xf]
        %v2678 = vld [vmem:[%s2660 + $0x44] sm:$0xf]
        %v2679 = vld [vmem:[%s2660 + $0x48] sm:$0xf]
        %v2680 = vld [vmem:[%s2660 + $0x4c] sm:$0xf]
        %v2681 = vld [vmem:[%s2660 + $0x50] sm:$0xf]
        %v2682 = vld [vmem:[%s2660 + $0x54] sm:$0xf]
        %v2683 = vld [vmem:[%s2660 + $0x58] sm:$0xf]
        %v2684 = vld [vmem:[%s2660 + $0x5c] sm:$0xf]
        %v2685 = vld [vmem:[%s2660 + $0x60] sm:$0xf]
        %v2686 = vld [vmem:[%s2660 + $0x64] sm:$0xf]
        %v2687 = vld [vmem:[%s2660 + $0x68] sm:$0xf]
        %v2688 = vld [vmem:[%s2660 + $0x6c] sm:$0xf]
        %v2689 = vld [vmem:[%s2660 + $0x70] sm:$0xf]
        %v2690 = vld [vmem:[%s2660 + $0x74] sm:$0xf]
        %v2691 = vld [vmem:[%s2660 + $0x78] sm:$0xf]
        %v2692 = vld [vmem:[%s2660 + $0x7c] sm:$0xf]
        %v2693 = vld [vmem:[%s2660 + $0x80] sm:$0xf]
        %v2694 = vld [vmem:[%s2660 + $0x84] sm:$0xf]
        %v2695 = vld [vmem:[%s2660 + $0x88] sm:$0xf]
        %v2696 = vld [vmem:[%s2660 + $0x8c] sm:$0xf]
        %v2697 = vld [vmem:[%s2660 + $0x90] sm:$0xf]
        %v2698 = vld [vmem:[%s2660 + $0x94] sm:$0xf]
        %v2699 = vld [vmem:[%s2660 + $0x98] sm:$0xf]
        %v2700 = vld [vmem:[%s2660 + $0x9c] sm:$0xf]
        %v2701 = vld [vmem:[%s2660 + $0xa0] sm:$0xf]
        %v2702 = vld [vmem:[%s2660 + $0xa4] sm:$0xf]
        %v2703 = vld [vmem:[%s2660 + $0xa8] sm:$0xf]
        %v2704 = vld [vmem:[%s2660 + $0xac] sm:$0xf]
        %v2705 = vld [vmem:[%s2660 + $0xb0] sm:$0xf]
        %v2706 = vld [vmem:[%s2660 + $0xb4] sm:$0xf]
        %v2707 = vld [vmem:[%s2660 + $0xb8] sm:$0xf]
        %v2708 = vld [vmem:[%s2660 + $0xbc] sm:$0xf]
        %v2757 = vunpack.c.l.b16 %v2661
        %v2758 = vunpack.c.l.b16 %v2662
        %v2759 = vunpack.c.l.b16 %v2663
        %v2760 = vunpack.c.l.b16 %v2664
        %v2761 = vunpack.c.l.b16 %v2665
        %v2762 = vunpack.c.l.b16 %v2666
        %v2763 = vunpack.c.l.b16 %v2667
        %v2764 = vunpack.c.l.b16 %v2668
        %v2765 = vunpack.c.l.b16 %v2669
        %v2766 = vunpack.c.l.b16 %v2670
        %v2767 = vunpack.c.l.b16 %v2671
        %v2768 = vunpack.c.l.b16 %v2672
        %v2769 = vunpack.c.l.b16 %v2673
        %v2770 = vunpack.c.l.b16 %v2674
        %v2771 = vunpack.c.l.b16 %v2675
        %v2772 = vunpack.c.l.b16 %v2676
        %v2773 = vunpack.c.l.b16 %v2677
        %v2774 = vunpack.c.l.b16 %v2678
        %v2775 = vunpack.c.l.b16 %v2679
        %v2776 = vunpack.c.l.b16 %v2680
        %v2777 = vunpack.c.l.b16 %v2681
        %v2778 = vunpack.c.l.b16 %v2682
        %v2779 = vunpack.c.l.b16 %v2683
        %v2780 = vunpack.c.l.b16 %v2684
        %v2781 = vunpack.c.l.b16 %v2685
        %v2782 = vunpack.c.l.b16 %v2686
        %v2783 = vunpack.c.l.b16 %v2687
        %v2784 = vunpack.c.l.b16 %v2688
        %v2785 = vunpack.c.l.b16 %v2689
        %v2786 = vunpack.c.l.b16 %v2690
        %v2787 = vunpack.c.l.b16 %v2691
        %v2788 = vunpack.c.l.b16 %v2692
        %v2789 = vunpack.c.l.b16 %v2693
        %v2790 = vunpack.c.l.b16 %v2694
        %v2791 = vunpack.c.l.b16 %v2695
        %v2792 = vunpack.c.l.b16 %v2696
        %v2793 = vunpack.c.l.b16 %v2697
        %v2794 = vunpack.c.l.b16 %v2698
        %v2795 = vunpack.c.l.b16 %v2699
        %v2796 = vunpack.c.l.b16 %v2700
        %v2797 = vunpack.c.l.b16 %v2701
        %v2798 = vunpack.c.l.b16 %v2702
        %v2799 = vunpack.c.l.b16 %v2703
        %v2800 = vunpack.c.l.b16 %v2704
        %v2801 = vunpack.c.l.b16 %v2705
        %v2802 = vunpack.c.l.b16 %v2706
        %v2803 = vunpack.c.l.b16 %v2707
        %v2804 = vunpack.c.l.b16 %v2708
        %v2805 = vpack.c.b16 %v2758, %v2757
        %v2806 = vpack.c.b16 %v2760, %v2759
        %v2807 = vpack.c.b16 %v2762, %v2761
        %v2808 = vpack.c.b16 %v2764, %v2763
        %v2809 = vpack.c.b16 %v2766, %v2765
        %v2810 = vpack.c.b16 %v2768, %v2767
        %v2811 = vpack.c.b16 %v2770, %v2769
        %v2812 = vpack.c.b16 %v2772, %v2771
        %v2813 = vpack.c.b16 %v2774, %v2773
        %v2814 = vpack.c.b16 %v2776, %v2775
        %v2815 = vpack.c.b16 %v2778, %v2777
        %v2816 = vpack.c.b16 %v2780, %v2779
        %v2817 = vpack.c.b16 %v2782, %v2781
        %v2818 = vpack.c.b16 %v2784, %v2783
        %v2819 = vpack.c.b16 %v2786, %v2785
        %v2820 = vpack.c.b16 %v2788, %v2787
        %v2821 = vpack.c.b16 %v2790, %v2789
        %v2822 = vpack.c.b16 %v2792, %v2791
        %v2823 = vpack.c.b16 %v2794, %v2793
        %v2824 = vpack.c.b16 %v2796, %v2795
        %v2825 = vpack.c.b16 %v2798, %v2797
        %v2826 = vpack.c.b16 %v2800, %v2799
        %v2827 = vpack.c.b16 %v2802, %v2801
        %v2828 = vpack.c.b16 %v2804, %v2803
        %2853 = vmatprep.subr.bf16.mxu0 0
        %2854 = vmatpush1.bf16.msra.mxu0 %v2805
        %2855 = vmatprep.subr.bf16.mxu0 0
        %2856 = vmatpush1.bf16.msra.mxu0 %v2806
        %2857 = vmatprep.subr.bf16.mxu0 0
        %2858 = vmatpush1.bf16.msra.mxu0 %v2807
        %2859 = vmatprep.subr.bf16.mxu0 0
        %2860 = vmatpush1.bf16.msra.mxu0 %v2808
        %2861 = vmatprep.subr.bf16.mxu0 0
        %2862 = vmatpush1.bf16.msra.mxu0 %v2809
        %2863 = vmatprep.subr.bf16.mxu0 0
        %2864 = vmatpush1.bf16.msra.mxu0 %v2810
        %2865 = vmatprep.subr.bf16.mxu0 0
        %2866 = vmatpush1.bf16.msra.mxu0 %v2811
        %2867 = vmatprep.subr.bf16.mxu0 0
        %2868 = vmatpush1.bf16.msra.mxu0 %v2812
        %2869 = vmatprep.subr.bf16.mxu0 0
        %2870 = vmatpush1.bf16.msra.mxu0 %v2813
        %2871 = vmatprep.subr.bf16.mxu0 0
        %2872 = vmatpush1.bf16.msra.mxu0 %v2814
        %2873 = vmatprep.subr.bf16.mxu0 0
        %2874 = vmatpush1.bf16.msra.mxu0 %v2815
        %2875 = vmatprep.subr.bf16.mxu0 0
        %2876 = vmatpush1.bf16.msra.mxu0 %v2816
        %2877 = vmatprep.subr.bf16.mxu0 0
        %2878 = vmatpush1.bf16.msra.mxu0 %v2817
        %2879 = vmatprep.subr.bf16.mxu0 0
        %2880 = vmatpush1.bf16.msra.mxu0 %v2818
        %2881 = vmatprep.subr.bf16.mxu0 0
        %2882 = vmatpush1.bf16.msra.mxu0 %v2819
        %2883 = vmatprep.subr.bf16.mxu0 0
        %2884 = vmatpush1.bf16.msra.mxu0 %v2820
        %2885 = vmatprep.mubr.bf16.mxu0 %v617
        %2886 = vmatmul.mubr.bf16.gmra.mrb[0].mxu0 %v457
        %v2887 = vpop.f32.mrb[0].mxu0
        %v2888 = vadd.f32 0.0, %v2887
        %v2889 = vpop.f32.mrb[0].mxu0
        %v2890 = vpop.f32.mrb[0].mxu0
        %v2891 = vadd.f32 0.0, %v2890
        %v2892 = vpop.f32.mrb[0].mxu0
        %2893 = vmatprep.mubr.bf16.mxu0 %v625
        %2894 = vmatmul.mubr.bf16.gmra.mrb[0].mxu0 %v458
        %v2895 = vpop.f32.mrb[0].mxu0
        %v2896 = vadd.f32 0.0, %v2895
        %v2897 = vpop.f32.mrb[0].mxu0
        %v2898 = vpop.f32.mrb[0].mxu0
        %v2899 = vadd.f32 0.0, %v2898
        %v2900 = vpop.f32.mrb[0].mxu0
        %2901 = vmatprep.mubr.bf16.mxu0 %v637
        %2902 = vmatmul.mubr.bf16.gmra.mrb[0].mxu0 %v459
        %v2903 = vpop.f32.mrb[0].mxu0
        %v2904 = vadd.f32 0.0, %v2903
        %v2905 = vpop.f32.mrb[0].mxu0
        %v2906 = vpop.f32.mrb[0].mxu0
        %v2907 = vadd.f32 0.0, %v2906
        %v2908 = vpop.f32.mrb[0].mxu0
        %2909 = vmatprep.mubr.bf16.mxu0 %v645
        %2910 = vmatmul.mubr.bf16.gmra.mrb[0].mxu0 %v460
        %v2911 = vpop.f32.mrb[0].mxu0
        %v2912 = vadd.f32 0.0, %v2911
        %v2913 = vpop.f32.mrb[0].mxu0
        %v2914 = vpop.f32.mrb[0].mxu0
        %v2915 = vadd.f32 0.0, %v2914
        %v2916 = vpop.f32.mrb[0].mxu0
        %2917 = vmatprep.mubr.bf16.mxu0 %v657
        %2918 = vmatmul.mubr.bf16.gmra.mrb[0].mxu0 %v461
        %v2919 = vpop.f32.mrb[0].mxu0
        %v2920 = vadd.f32 0.0, %v2919
        %v2921 = vpop.f32.mrb[0].mxu0
        %v2922 = vpop.f32.mrb[0].mxu0
        %v2923 = vadd.f32 0.0, %v2922
        %v2924 = vpop.f32.mrb[0].mxu0
        %2925 = vmatprep.mubr.bf16.mxu0 %v665
        %2926 = vmatmul.mubr.bf16.gmra.mrb[0].mxu0 %v462
        %v2927 = vpop.f32.mrb[0].mxu0
        %v2928 = vadd.f32 0.0, %v2927
        %v2929 = vpop.f32.mrb[0].mxu0
        %v2930 = vpop.f32.mrb[0].mxu0
        %v2931 = vadd.f32 0.0, %v2930
        %v2932 = vpop.f32.mrb[0].mxu0
        %2933 = vmatprep.mubr.bf16.mxu0 %v677
        %2934 = vmatmul.mubr.bf16.gmra.mrb[0].mxu0 %v463
        %v2935 = vpop.f32.mrb[0].mxu0
        %v2936 = vadd.f32 0.0, %v2935
        %v2937 = vpop.f32.mrb[0].mxu0
        %v2938 = vpop.f32.mrb[0].mxu0
        %v2939 = vadd.f32 0.0, %v2938
        %v2940 = vpop.f32.mrb[0].mxu0
        %2941 = vmatprep.mubr.bf16.mxu0 %v685
        %2942 = vmatmul.mubr.bf16.gmra.mrb[0].mxu0 %v464
        %v2943 = vpop.f32.mrb[0].mxu0
        %v2944 = vadd.f32 0.0, %v2943
        %v2945 = vpop.f32.mrb[0].mxu0
        %v2946 = vpop.f32.mrb[0].mxu0
        %v2947 = vadd.f32 0.0, %v2946
        %v2948 = vpop.f32.mrb[0].mxu0
        %2949 = vmatprep.mubr.bf16.mxu0 %v697
        %2950 = vmatmul.mubr.bf16.gmra.mrb[0].mxu0 %v465
        %v2951 = vpop.f32.mrb[0].mxu0
        %v2952 = vadd.f32 0.0, %v2951
        %v2953 = vpop.f32.mrb[0].mxu0
        %v2954 = vpop.f32.mrb[0].mxu0
        %v2955 = vadd.f32 0.0, %v2954
        %v2956 = vpop.f32.mrb[0].mxu0
        %2957 = vmatprep.mubr.bf16.mxu0 %v705
        %2958 = vmatmul.mubr.bf16.gmra.mrb[0].mxu0 %v466
        %v2959 = vpop.f32.mrb[0].mxu0
        %v2960 = vadd.f32 0.0, %v2959
        %v2961 = vpop.f32.mrb[0].mxu0
        %v2962 = vpop.f32.mrb[0].mxu0
        %v2963 = vadd.f32 0.0, %v2962
        %v2964 = vpop.f32.mrb[0].mxu0
        %2965 = vmatprep.mubr.bf16.mxu0 %v717
        %2966 = vmatmul.mubr.bf16.gmra.mrb[0].mxu0 %v467
        %v2967 = vpop.f32.mrb[0].mxu0
        %v2968 = vadd.f32 0.0, %v2967
        %v2969 = vpop.f32.mrb[0].mxu0
        %v2970 = vpop.f32.mrb[0].mxu0
        %v2971 = vadd.f32 0.0, %v2970
        %v2972 = vpop.f32.mrb[0].mxu0
        %2973 = vmatprep.mubr.bf16.mxu0 %v725
        %2974 = vmatmul.mubr.bf16.gmra.mrb[0].mxu0 %v468
        %v2975 = vpop.f32.mrb[0].mxu0
        %v2976 = vadd.f32 0.0, %v2975
        %v2977 = vpop.f32.mrb[0].mxu0
        %v2978 = vpop.f32.mrb[0].mxu0
        %v2979 = vadd.f32 0.0, %v2978
        %v2980 = vpop.f32.mrb[0].mxu0
        %2981 = vmatprep.mubr.bf16.mxu0 %v737
        %2982 = vmatmul.mubr.bf16.gmra.mrb[0].mxu0 %v469
        %v2983 = vpop.f32.mrb[0].mxu0
        %v2984 = vadd.f32 0.0, %v2983
        %v2985 = vpop.f32.mrb[0].mxu0
        %v2986 = vpop.f32.mrb[0].mxu0
        %v2987 = vadd.f32 0.0, %v2986
        %v2988 = vpop.f32.mrb[0].mxu0
        %2989 = vmatprep.mubr.bf16.mxu0 %v745
        %2990 = vmatmul.mubr.bf16.gmra.mrb[0].mxu0 %v470
        %v2991 = vpop.f32.mrb[0].mxu0
        %v2992 = vadd.f32 0.0, %v2991
        %v2993 = vpop.f32.mrb[0].mxu0
        %v2994 = vpop.f32.mrb[0].mxu0
        %v2995 = vadd.f32 0.0, %v2994
        %v2996 = vpop.f32.mrb[0].mxu0
        %2997 = vmatprep.mubr.bf16.mxu0 %v757
        %2998 = vmatmul.mubr.bf16.gmra.mrb[0].mxu0 %v471
        %v2999 = vpop.f32.mrb[0].mxu0
        %v3000 = vadd.f32 0.0, %v2999
        %v3001 = vpop.f32.mrb[0].mxu0
        %v3002 = vpop.f32.mrb[0].mxu0
        %v3003 = vadd.f32 0.0, %v3002
        %v3004 = vpop.f32.mrb[0].mxu0
        %3005 = vmatprep.mubr.bf16.mxu0 %v765
        %3006 = vmatmul.mubr.bf16.gmra.mrb[0].mxu0 %v472
        %v3007 = vpop.f32.mrb[0].mxu0
        %v3008 = vadd.f32 0.0, %v3007
        %v3009 = vpop.f32.mrb[0].mxu0
        %v3010 = vpop.f32.mrb[0].mxu0
        %v3011 = vadd.f32 0.0, %v3010
        %v3012 = vpop.f32.mrb[0].mxu0
        %3013 = vmatprep.mubr.bf16.mxu0 %v777
        %3014 = vmatmul.mubr.bf16.gmra.mrb[0].mxu0 %v473
        %v3015 = vpop.f32.mrb[0].mxu0
        %v3016 = vadd.f32 0.0, %v3015
        %v3017 = vpop.f32.mrb[0].mxu0
        %v3018 = vpop.f32.mrb[0].mxu0
        %v3019 = vadd.f32 0.0, %v3018
        %v3020 = vpop.f32.mrb[0].mxu0
        %3021 = vmatprep.mubr.bf16.mxu0 %v785
        %3022 = vmatmul.mubr.bf16.gmra.mrb[0].mxu0 %v474
        %v3023 = vpop.f32.mrb[0].mxu0
        %v3024 = vadd.f32 0.0, %v3023
        %v3025 = vpop.f32.mrb[0].mxu0
        %v3026 = vpop.f32.mrb[0].mxu0
        %v3027 = vadd.f32 0.0, %v3026
        %v3028 = vpop.f32.mrb[0].mxu0
        %3029 = vmatprep.mubr.bf16.mxu0 %v797
        %3030 = vmatmul.mubr.bf16.gmra.mrb[0].mxu0 %v475
        %v3031 = vpop.f32.mrb[0].mxu0
        %v3032 = vadd.f32 0.0, %v3031
        %v3033 = vpop.f32.mrb[0].mxu0
        %v3034 = vpop.f32.mrb[0].mxu0
        %v3035 = vadd.f32 0.0, %v3034
        %v3036 = vpop.f32.mrb[0].mxu0
        %3037 = vmatprep.mubr.bf16.mxu0 %v805
        %3038 = vmatmul.mubr.bf16.gmra.mrb[0].mxu0 %v476
        %v3039 = vpop.f32.mrb[0].mxu0
        %v3040 = vadd.f32 0.0, %v3039
        %v3041 = vpop.f32.mrb[0].mxu0
        %v3042 = vpop.f32.mrb[0].mxu0
        %v3043 = vadd.f32 0.0, %v3042
        %v3044 = vpop.f32.mrb[0].mxu0
        %3045 = vmatprep.mubr.bf16.mxu0 %v817
        %3046 = vmatmul.mubr.bf16.gmra.mrb[0].mxu0 %v477
        %v3047 = vpop.f32.mrb[0].mxu0
        %v3048 = vadd.f32 0.0, %v3047
        %v3049 = vpop.f32.mrb[0].mxu0
        %v3050 = vpop.f32.mrb[0].mxu0
        %v3051 = vadd.f32 0.0, %v3050
        %v3052 = vpop.f32.mrb[0].mxu0
        %3053 = vmatprep.mubr.bf16.mxu0 %v825
        %3054 = vmatmul.mubr.bf16.gmra.mrb[0].mxu0 %v478
        %v3055 = vpop.f32.mrb[0].mxu0
        %v3056 = vadd.f32 0.0, %v3055
        %v3057 = vpop.f32.mrb[0].mxu0
        %v3058 = vpop.f32.mrb[0].mxu0
        %v3059 = vadd.f32 0.0, %v3058
        %v3060 = vpop.f32.mrb[0].mxu0
        %3061 = vmatprep.mubr.bf16.mxu0 %v837
        %3062 = vmatmul.mubr.bf16.gmra.mrb[0].mxu0 %v479
        %v3063 = vpop.f32.mrb[0].mxu0
        %v3064 = vadd.f32 0.0, %v3063
        %v3065 = vpop.f32.mrb[0].mxu0
        %v3066 = vpop.f32.mrb[0].mxu0
        %v3067 = vadd.f32 0.0, %v3066
        %v3068 = vpop.f32.mrb[0].mxu0
        %3069 = vmatprep.mubr.bf16.mxu0 %v845
        %3070 = vmatmul.mubr.bf16.gmra.mrb[0].mxu0 %v480
        %v3071 = vpop.f32.mrb[0].mxu0
        %v3072 = vadd.f32 0.0, %v3071
        %v3073 = vpop.f32.mrb[0].mxu0
        %v3074 = vpop.f32.mrb[0].mxu0
        %v3075 = vadd.f32 0.0, %v3074
        %v3076 = vpop.f32.mrb[0].mxu0
        %3077 = vmatprep.mubr.bf16.mxu0 %v857
        %3078 = vmatmul.mubr.bf16.gmra.mrb[0].mxu0 %v481
        %v3079 = vpop.f32.mrb[0].mxu0
        %v3080 = vadd.f32 0.0, %v3079
        %v3081 = vpop.f32.mrb[0].mxu0
        %v3082 = vpop.f32.mrb[0].mxu0
        %v3083 = vadd.f32 0.0, %v3082
        %v3084 = vpop.f32.mrb[0].mxu0
        %3085 = vmatprep.mubr.bf16.mxu0 %v865
        %3086 = vmatmul.mubr.bf16.gmra.mrb[0].mxu0 %v482
        %v3087 = vpop.f32.mrb[0].mxu0
        %v3088 = vadd.f32 0.0, %v3087
        %v3089 = vpop.f32.mrb[0].mxu0
        %v3090 = vpop.f32.mrb[0].mxu0
        %v3091 = vadd.f32 0.0, %v3090
        %v3092 = vpop.f32.mrb[0].mxu0
        %3093 = vmatprep.mubr.bf16.mxu0 %v877
        %3094 = vmatmul.mubr.bf16.gmra.mrb[0].mxu0 %v483
        %v3095 = vpop.f32.mrb[0].mxu0
        %v3096 = vadd.f32 0.0, %v3095
        %v3097 = vpop.f32.mrb[0].mxu0
        %v3098 = vpop.f32.mrb[0].mxu0
        %v3099 = vadd.f32 0.0, %v3098
        %v3100 = vpop.f32.mrb[0].mxu0
        %3101 = vmatprep.mubr.bf16.mxu0 %v885
        %3102 = vmatmul.mubr.bf16.gmra.mrb[0].mxu0 %v484
        %v3103 = vpop.f32.mrb[0].mxu0
        %v3104 = vadd.f32 0.0, %v3103
        %v3105 = vpop.f32.mrb[0].mxu0
        %v3106 = vpop.f32.mrb[0].mxu0
        %v3107 = vadd.f32 0.0, %v3106
        %v3108 = vpop.f32.mrb[0].mxu0
        %3109 = vmatprep.mubr.bf16.mxu0 %v1105
        %3110 = vmatmul.mubr.bf16.gmra.mrb[0].mxu0 %v1087
        %v3111 = vpop.f32.mrb[0].mxu0
        %v3112 = vadd.f32 0.0, %v3111
        %v3113 = vpop.f32.mrb[0].mxu0
        %v3114 = vpop.f32.mrb[0].mxu0
        %v3115 = vadd.f32 0.0, %v3114
        %v3116 = vpop.f32.mrb[0].mxu0
        %3117 = vmatprep.mubr.bf16.mxu0 %v1113
        %3118 = vmatmul.mubr.bf16.gmra.mrb[0].mxu0 %v1088
        %v3119 = vpop.f32.mrb[0].mxu0
        %v3120 = vadd.f32 0.0, %v3119
        %v3121 = vpop.f32.mrb[0].mxu0
        %v3122 = vpop.f32.mrb[0].mxu0
        %v3123 = vadd.f32 0.0, %v3122
        %v3124 = vpop.f32.mrb[0].mxu0
        %3125 = vmatprep.mubr.bf16.mxu0 %v2642
        %3126 = vmatmul.mubr.bf16.gmra.mrb[0].mxu0 %v2624
        %v3127 = vpop.f32.mrb[0].mxu0
        %v3128 = vadd.f32 0.0, %v3127
        %v3129 = vpop.f32.mrb[0].mxu0
        %v3130 = vpop.f32.mrb[0].mxu0
        %v3131 = vadd.f32 0.0, %v3130
        %v3132 = vpop.f32.mrb[0].mxu0
        %3133 = vmatprep.mubr.bf16.mxu0 %v2650
        %3134 = vmatmul.mubr.bf16.gmra.mrb[0].mxu0 %v2625
        %v3135 = vpop.f32.mrb[0].mxu0
        %v3136 = vadd.f32 0.0, %v3135
        %v3137 = vpop.f32.mrb[0].mxu0
        %v3138 = vpop.f32.mrb[0].mxu0
        %v3139 = vadd.f32 0.0, %v3138
        %v3140 = vpop.f32.mrb[0].mxu0
        %3141 = vdwg.mxu0
        %3142 = vmatprep.subr.bf16.mxu0 0
        %3143 = vmatpush1.bf16.msra.mxu0 %v2821
        %3144 = vmatprep.subr.bf16.mxu0 0
        %3145 = vmatpush1.bf16.msra.mxu0 %v2822
        %3146 = vmatprep.subr.bf16.mxu0 0
        %3147 = vmatpush1.bf16.msra.mxu0 %v2823
        %3148 = vmatprep.subr.bf16.mxu0 0
        %3149 = vmatpush1.bf16.msra.mxu0 %v2824
        %3150 = vmatprep.subr.bf16.mxu0 0
        %3151 = vmatpush1.bf16.msra.mxu0 %v2825
        %3152 = vmatprep.subr.bf16.mxu0 0
        %3153 = vmatpush1.bf16.msra.mxu0 %v2826
        %3154 = vmatprep.subr.bf16.mxu0 0
        %3155 = vmatpush1.bf16.msra.mxu0 %v2827
        %3156 = vmatprep.subr.bf16.mxu0 0
        %3157 = vmatpush1.bf16.msra.mxu0 %v2828
        %3158 = vmatprep.subr.bf16.mxu0 0
        %3159 = vmatpush1.bf16.msra.mxu0 0
        %3160 = vmatprep.subr.bf16.mxu0 0
        %3161 = vmatpush1.bf16.msra.mxu0 0
        %3162 = vmatprep.subr.bf16.mxu0 0
        %3163 = vmatpush1.bf16.msra.mxu0 0
        %3164 = vmatprep.subr.bf16.mxu0 0
        %3165 = vmatpush1.bf16.msra.mxu0 0
        %3166 = vmatprep.subr.bf16.mxu0 0
        %3167 = vmatpush1.bf16.msra.mxu0 0
        %3168 = vmatprep.subr.bf16.mxu0 0
        %3169 = vmatpush1.bf16.msra.mxu0 0
        %3170 = vmatprep.subr.bf16.mxu0 0
        %3171 = vmatpush1.bf16.msra.mxu0 0
        %3172 = vmatprep.subr.bf16.mxu0 0
        %3173 = vmatpush1.bf16.msra.mxu0 0
        %3174 = vmatprep.mubr.bf16.mxu0 0
        %3175 = vmatmul.mubr.bf16.gmra.mrb[0].mxu0 %v931
        %v3176 = vpop.f32.mrb[0].mxu0
        %v3177 = vadd.f32 %v2888, %v3176
        %v3178 = vpop.f32.mrb[0].mxu0
        %v3179 = vpop.f32.mrb[0].mxu0
        %v3180 = vadd.f32 %v2891, %v3179
        %v3181 = vpop.f32.mrb[0].mxu0
        %3182 = vmatprep.mubr.bf16.mxu0 0
        %3183 = vmatmul.mubr.bf16.gmra.mrb[0].mxu0 %v933
        %v3184 = vpop.f32.mrb[0].mxu0
        %v3185 = vadd.f32 %v2896, %v3184
        %v3186 = vpop.f32.mrb[0].mxu0
        %v3187 = vpop.f32.mrb[0].mxu0
        %v3188 = vadd.f32 %v2899, %v3187
        %v3189 = vpop.f32.mrb[0].mxu0
        %3190 = vmatprep.mubr.bf16.mxu0 0
        %3191 = vmatmul.mubr.bf16.gmra.mrb[0].mxu0 %v936
        %v3192 = vpop.f32.mrb[0].mxu0
        %v3193 = vadd.f32 %v2904, %v3192
        %v3194 = vpop.f32.mrb[0].mxu0
        %v3195 = vpop.f32.mrb[0].mxu0
        %v3196 = vadd.f32 %v2907, %v3195
        %v3197 = vpop.f32.mrb[0].mxu0
        %3198 = vmatprep.mubr.bf16.mxu0 0
        %3199 = vmatmul.mubr.bf16.gmra.mrb[0].mxu0 %v938
        %v3200 = vpop.f32.mrb[0].mxu0
        %v3201 = vadd.f32 %v2912, %v3200
        %v3202 = vpop.f32.mrb[0].mxu0
        %v3203 = vpop.f32.mrb[0].mxu0
        %v3204 = vadd.f32 %v2915, %v3203
        %v3205 = vpop.f32.mrb[0].mxu0
        %3206 = vmatprep.mubr.bf16.mxu0 0
        %3207 = vmatmul.mubr.bf16.gmra.mrb[0].mxu0 %v941
        %v3208 = vpop.f32.mrb[0].mxu0
        %v3209 = vadd.f32 %v2920, %v3208
        %v3210 = vpop.f32.mrb[0].mxu0
        %v3211 = vpop.f32.mrb[0].mxu0
        %v3212 = vadd.f32 %v2923, %v3211
        %v3213 = vpop.f32.mrb[0].mxu0
        %3214 = vmatprep.mubr.bf16.mxu0 0
        %3215 = vmatmul.mubr.bf16.gmra.mrb[0].mxu0 %v943
        %v3216 = vpop.f32.mrb[0].mxu0
        %v3217 = vadd.f32 %v2928, %v3216
        %v3218 = vpop.f32.mrb[0].mxu0
        %v3219 = vpop.f32.mrb[0].mxu0
        %v3220 = vadd.f32 %v2931, %v3219
        %v3221 = vpop.f32.mrb[0].mxu0
        %3222 = vmatprep.mubr.bf16.mxu0 0
        %3223 = vmatmul.mubr.bf16.gmra.mrb[0].mxu0 %v946
        %v3224 = vpop.f32.mrb[0].mxu0
        %v3225 = vadd.f32 %v2936, %v3224
        %v3226 = vpop.f32.mrb[0].mxu0
        %v3227 = vpop.f32.mrb[0].mxu0
        %v3228 = vadd.f32 %v2939, %v3227
        %v3229 = vpop.f32.mrb[0].mxu0
        %3230 = vmatprep.mubr.bf16.mxu0 0
        %3231 = vmatmul.mubr.bf16.gmra.mrb[0].mxu0 %v948
        %v3232 = vpop.f32.mrb[0].mxu0
        %v3233 = vadd.f32 %v2944, %v3232
        %v3234 = vpop.f32.mrb[0].mxu0
        %v3235 = vpop.f32.mrb[0].mxu0
        %v3236 = vadd.f32 %v2947, %v3235
        %v3237 = vpop.f32.mrb[0].mxu0
        %3238 = vmatprep.mubr.bf16.mxu0 0
        %3239 = vmatmul.mubr.bf16.gmra.mrb[0].mxu0 %v951
        %v3240 = vpop.f32.mrb[0].mxu0
        %v3241 = vadd.f32 %v2952, %v3240
        %v3242 = vpop.f32.mrb[0].mxu0
        %v3243 = vpop.f32.mrb[0].mxu0
        %v3244 = vadd.f32 %v2955, %v3243
        %v3245 = vpop.f32.mrb[0].mxu0
        %3246 = vmatprep.mubr.bf16.mxu0 0
        %3247 = vmatmul.mubr.bf16.gmra.mrb[0].mxu0 %v953
        %v3248 = vpop.f32.mrb[0].mxu0
        %v3249 = vadd.f32 %v2960, %v3248
        %v3250 = vpop.f32.mrb[0].mxu0
        %v3251 = vpop.f32.mrb[0].mxu0
        %v3252 = vadd.f32 %v2963, %v3251
        %v3253 = vpop.f32.mrb[0].mxu0
        %3254 = vmatprep.mubr.bf16.mxu0 0
        %3255 = vmatmul.mubr.bf16.gmra.mrb[0].mxu0 %v956
        %v3256 = vpop.f32.mrb[0].mxu0
        %v3257 = vadd.f32 %v2968, %v3256
        %v3258 = vpop.f32.mrb[0].mxu0
        %v3259 = vpop.f32.mrb[0].mxu0
        %v3260 = vadd.f32 %v2971, %v3259
        %v3261 = vpop.f32.mrb[0].mxu0
        %3262 = vmatprep.mubr.bf16.mxu0 0
        %3263 = vmatmul.mubr.bf16.gmra.mrb[0].mxu0 %v958
        %v3264 = vpop.f32.mrb[0].mxu0
        %v3265 = vadd.f32 %v2976, %v3264
        %v3266 = vpop.f32.mrb[0].mxu0
        %v3267 = vpop.f32.mrb[0].mxu0
        %v3268 = vadd.f32 %v2979, %v3267
        %v3269 = vpop.f32.mrb[0].mxu0
        %3270 = vmatprep.mubr.bf16.mxu0 0
        %3271 = vmatmul.mubr.bf16.gmra.mrb[0].mxu0 %v961
        %v3272 = vpop.f32.mrb[0].mxu0
        %v3273 = vadd.f32 %v2984, %v3272
        %v3274 = vpop.f32.mrb[0].mxu0
        %v3275 = vpop.f32.mrb[0].mxu0
        %v3276 = vadd.f32 %v2987, %v3275
        %v3277 = vpop.f32.mrb[0].mxu0
        %3278 = vmatprep.mubr.bf16.mxu0 0
        %3279 = vmatmul.mubr.bf16.gmra.mrb[0].mxu0 %v963
        %v3280 = vpop.f32.mrb[0].mxu0
        %v3281 = vadd.f32 %v2992, %v3280
        %v3282 = vpop.f32.mrb[0].mxu0
        %v3283 = vpop.f32.mrb[0].mxu0
        %v3284 = vadd.f32 %v2995, %v3283
        %v3285 = vpop.f32.mrb[0].mxu0
        %3286 = vmatprep.mubr.bf16.mxu0 0
        %3287 = vmatmul.mubr.bf16.gmra.mrb[0].mxu0 %v966
        %v3288 = vpop.f32.mrb[0].mxu0
        %v3289 = vadd.f32 %v3000, %v3288
        %v3290 = vpop.f32.mrb[0].mxu0
        %v3291 = vpop.f32.mrb[0].mxu0
        %v3292 = vadd.f32 %v3003, %v3291
        %v3293 = vpop.f32.mrb[0].mxu0
        %3294 = vmatprep.mubr.bf16.mxu0 0
        %3295 = vmatmul.mubr.bf16.gmra.mrb[0].mxu0 %v968
        %v3296 = vpop.f32.mrb[0].mxu0
        %v3297 = vadd.f32 %v3008, %v3296
        %v3298 = vpop.f32.mrb[0].mxu0
        %v3299 = vpop.f32.mrb[0].mxu0
        %v3300 = vadd.f32 %v3011, %v3299
        %v3301 = vpop.f32.mrb[0].mxu0
        %3302 = vmatprep.mubr.bf16.mxu0 0
        %3303 = vmatmul.mubr.bf16.gmra.mrb[0].mxu0 %v971
        %v3304 = vpop.f32.mrb[0].mxu0
        %v3305 = vadd.f32 %v3016, %v3304
        %v3306 = vpop.f32.mrb[0].mxu0
        %v3307 = vpop.f32.mrb[0].mxu0
        %v3308 = vadd.f32 %v3019, %v3307
        %v3309 = vpop.f32.mrb[0].mxu0
        %3310 = vmatprep.mubr.bf16.mxu0 0
        %3311 = vmatmul.mubr.bf16.gmra.mrb[0].mxu0 %v973
        %v3312 = vpop.f32.mrb[0].mxu0
        %v3313 = vadd.f32 %v3024, %v3312
        %v3314 = vpop.f32.mrb[0].mxu0
        %v3315 = vpop.f32.mrb[0].mxu0
        %v3316 = vadd.f32 %v3027, %v3315
        %v3317 = vpop.f32.mrb[0].mxu0
        %3318 = vmatprep.mubr.bf16.mxu0 0
        %3319 = vmatmul.mubr.bf16.gmra.mrb[0].mxu0 %v976
        %v3320 = vpop.f32.mrb[0].mxu0
        %v3321 = vadd.f32 %v3032, %v3320
        %v3322 = vpop.f32.mrb[0].mxu0
        %v3323 = vpop.f32.mrb[0].mxu0
        %v3324 = vadd.f32 %v3035, %v3323
        %v3325 = vpop.f32.mrb[0].mxu0
        %3326 = vmatprep.mubr.bf16.mxu0 0
        %3327 = vmatmul.mubr.bf16.gmra.mrb[0].mxu0 %v978
        %v3328 = vpop.f32.mrb[0].mxu0
        %v3329 = vadd.f32 %v3040, %v3328
        %v3330 = vpop.f32.mrb[0].mxu0
        %v3331 = vpop.f32.mrb[0].mxu0
        %v3332 = vadd.f32 %v3043, %v3331
        %v3333 = vpop.f32.mrb[0].mxu0
        %3334 = vmatprep.mubr.bf16.mxu0 0
        %3335 = vmatmul.mubr.bf16.gmra.mrb[0].mxu0 %v981
        %v3336 = vpop.f32.mrb[0].mxu0
        %v3337 = vadd.f32 %v3048, %v3336
        %v3338 = vpop.f32.mrb[0].mxu0
        %v3339 = vpop.f32.mrb[0].mxu0
        %v3340 = vadd.f32 %v3051, %v3339
        %v3341 = vpop.f32.mrb[0].mxu0
        %3342 = vmatprep.mubr.bf16.mxu0 0
        %3343 = vmatmul.mubr.bf16.gmra.mrb[0].mxu0 %v983
        %v3344 = vpop.f32.mrb[0].mxu0
        %v3345 = vadd.f32 %v3056, %v3344
        %v3346 = vpop.f32.mrb[0].mxu0
        %v3347 = vpop.f32.mrb[0].mxu0
        %v3348 = vadd.f32 %v3059, %v3347
        %v3349 = vpop.f32.mrb[0].mxu0
        %3350 = vmatprep.mubr.bf16.mxu0 0
        %3351 = vmatmul.mubr.bf16.gmra.mrb[0].mxu0 %v986
        %v3352 = vpop.f32.mrb[0].mxu0
        %v3353 = vadd.f32 %v3064, %v3352
        %v3354 = vpop.f32.mrb[0].mxu0
        %v3355 = vpop.f32.mrb[0].mxu0
        %v3356 = vadd.f32 %v3067, %v3355
        %v3357 = vpop.f32.mrb[0].mxu0
        %3358 = vmatprep.mubr.bf16.mxu0 0
        %3359 = vmatmul.mubr.bf16.gmra.mrb[0].mxu0 %v988
        %v3360 = vpop.f32.mrb[0].mxu0
        %v3361 = vadd.f32 %v3072, %v3360
        %v3362 = vpop.f32.mrb[0].mxu0
        %v3363 = vpop.f32.mrb[0].mxu0
        %v3364 = vadd.f32 %v3075, %v3363
        %v3365 = vpop.f32.mrb[0].mxu0
        %3366 = vmatprep.mubr.bf16.mxu0 0
        %3367 = vmatmul.mubr.bf16.gmra.mrb[0].mxu0 %v991
        %v3368 = vpop.f32.mrb[0].mxu0
        %v3369 = vadd.f32 %v3080, %v3368
        %v3370 = vpop.f32.mrb[0].mxu0
        %v3371 = vpop.f32.mrb[0].mxu0
        %v3372 = vadd.f32 %v3083, %v3371
        %v3373 = vpop.f32.mrb[0].mxu0
        %3374 = vmatprep.mubr.bf16.mxu0 0
        %3375 = vmatmul.mubr.bf16.gmra.mrb[0].mxu0 %v993
        %v3376 = vpop.f32.mrb[0].mxu0
        %v3377 = vadd.f32 %v3088, %v3376
        %v3378 = vpop.f32.mrb[0].mxu0
        %v3379 = vpop.f32.mrb[0].mxu0
        %v3380 = vadd.f32 %v3091, %v3379
        %v3381 = vpop.f32.mrb[0].mxu0
        %3382 = vmatprep.mubr.bf16.mxu0 0
        %3383 = vmatmul.mubr.bf16.gmra.mrb[0].mxu0 %v996
        %v3384 = vpop.f32.mrb[0].mxu0
        %v3385 = vadd.f32 %v3096, %v3384
        %v3386 = vpop.f32.mrb[0].mxu0
        %v3387 = vpop.f32.mrb[0].mxu0
        %v3388 = vadd.f32 %v3099, %v3387
        %v3389 = vpop.f32.mrb[0].mxu0
        %3390 = vmatprep.mubr.bf16.mxu0 0
        %3391 = vmatmul.mubr.bf16.gmra.mrb[0].mxu0 %v998
        %v3392 = vpop.f32.mrb[0].mxu0
        %v3393 = vadd.f32 %v3104, %v3392
        %v3394 = vpop.f32.mrb[0].mxu0
        %v3395 = vpop.f32.mrb[0].mxu0
        %v3396 = vadd.f32 %v3107, %v3395
        %v3397 = vpop.f32.mrb[0].mxu0
        %3398 = vmatprep.mubr.bf16.mxu0 0
        %3399 = vmatmul.mubr.bf16.gmra.mrb[0].mxu0 %v1118
        %v3400 = vpop.f32.mrb[0].mxu0
        %v3401 = vadd.f32 %v3112, %v3400
        %v3402 = vpop.f32.mrb[0].mxu0
        %v3403 = vpop.f32.mrb[0].mxu0
        %v3404 = vadd.f32 %v3115, %v3403
        %v3405 = vpop.f32.mrb[0].mxu0
        %3406 = vmatprep.mubr.bf16.mxu0 0
        %3407 = vmatmul.mubr.bf16.gmra.mrb[0].mxu0 %v1120
        %v3408 = vpop.f32.mrb[0].mxu0
        %v3409 = vadd.f32 %v3120, %v3408
        %v3410 = vpop.f32.mrb[0].mxu0
        %v3411 = vpop.f32.mrb[0].mxu0
        %v3412 = vadd.f32 %v3123, %v3411
        %v3413 = vpop.f32.mrb[0].mxu0
        %3414 = vmatprep.mubr.bf16.mxu0 0
        %3415 = vmatmul.mubr.bf16.gmra.mrb[0].mxu0 %v2655
        %v3416 = vpop.f32.mrb[0].mxu0
        %v3417 = vadd.f32 %v3128, %v3416
        %v3418 = vpop.f32.mrb[0].mxu0
        %v3419 = vpop.f32.mrb[0].mxu0
        %v3420 = vadd.f32 %v3131, %v3419
        %v3421 = vpop.f32.mrb[0].mxu0
        %3422 = vmatprep.mubr.bf16.mxu0 0
        %3423 = vmatmul.mubr.bf16.gmra.mrb[0].mxu0 %v2657
        %v3424 = vpop.f32.mrb[0].mxu0
        %v3425 = vadd.f32 %v3136, %v3424
        %v3426 = vpop.f32.mrb[0].mxu0
        %v3427 = vpop.f32.mrb[0].mxu0
        %v3428 = vadd.f32 %v3139, %v3427
        %v3429 = vpop.f32.mrb[0].mxu0
        %3430 = vdwg.mxu0
        %v3431 = vadd.f32 %v2362, %v3177
        %v3432 = vadd.f32 %v2365, %v3180
        %v3433 = vadd.f32 %v2370, %v3185
        %v3434 = vadd.f32 %v2373, %v3188
        %v3435 = vadd.f32 %v2378, %v3193
        %v3436 = vadd.f32 %v2381, %v3196
        %v3437 = vadd.f32 %v2386, %v3201
        %v3438 = vadd.f32 %v2389, %v3204
        %v3439 = vadd.f32 %v2394, %v3209
        %v3440 = vadd.f32 %v2397, %v3212
        %v3441 = vadd.f32 %v2402, %v3217
        %v3442 = vadd.f32 %v2405, %v3220
        %v3443 = vadd.f32 %v2410, %v3225
        %v3444 = vadd.f32 %v2413, %v3228
        %v3445 = vadd.f32 %v2418, %v3233
        %v3446 = vadd.f32 %v2421, %v3236
        %v3447 = vadd.f32 %v2426, %v3241
        %v3448 = vadd.f32 %v2429, %v3244
        %v3449 = vadd.f32 %v2434, %v3249
        %v3450 = vadd.f32 %v2437, %v3252
        %v3451 = vadd.f32 %v2442, %v3257
        %v3452 = vadd.f32 %v2445, %v3260
        %v3453 = vadd.f32 %v2450, %v3265
        %v3454 = vadd.f32 %v2453, %v3268
        %v3455 = vadd.f32 %v2458, %v3273
        %v3456 = vadd.f32 %v2461, %v3276
        %v3457 = vadd.f32 %v2466, %v3281
        %v3458 = vadd.f32 %v2469, %v3284
        %v3459 = vadd.f32 %v2474, %v3289
        %v3460 = vadd.f32 %v2477, %v3292
        %v3461 = vadd.f32 %v2482, %v3297
        %v3462 = vadd.f32 %v2485, %v3300
        %v3463 = vadd.f32 %v2490, %v3305
        %v3464 = vadd.f32 %v2493, %v3308
        %v3465 = vadd.f32 %v2498, %v3313
        %v3466 = vadd.f32 %v2501, %v3316
        %v3467 = vadd.f32 %v2506, %v3321
        %v3468 = vadd.f32 %v2509, %v3324
        %v3469 = vadd.f32 %v2514, %v3329
        %v3470 = vadd.f32 %v2517, %v3332
        %v3471 = vadd.f32 %v2522, %v3337
        %v3472 = vadd.f32 %v2525, %v3340
        %v3473 = vadd.f32 %v2530, %v3345
        %v3474 = vadd.f32 %v2533, %v3348
        %v3475 = vadd.f32 %v2538, %v3353
        %v3476 = vadd.f32 %v2541, %v3356
        %v3477 = vadd.f32 %v2546, %v3361
        %v3478 = vadd.f32 %v2549, %v3364
        %v3479 = vadd.f32 %v2554, %v3369
        %v3480 = vadd.f32 %v2557, %v3372
        %v3481 = vadd.f32 %v2562, %v3377
        %v3482 = vadd.f32 %v2565, %v3380
        %v3483 = vadd.f32 %v2570, %v3385
        %v3484 = vadd.f32 %v2573, %v3388
        %v3485 = vadd.f32 %v2578, %v3393
        %v3486 = vadd.f32 %v2581, %v3396
        %v3487 = vadd.f32 %v2586, %v3401
        %v3488 = vadd.f32 %v2589, %v3404
        %v3489 = vadd.f32 %v2594, %v3409
        %v3490 = vadd.f32 %v2597, %v3412
        %v3491 = vadd.f32 %v2602, %v3417
        %v3492 = vadd.f32 %v2605, %v3420
        %v3493 = vadd.f32 %v2610, %v3425
        %v3494 = vadd.f32 %v2613, %v3428
        %v3495 = vpack.c.bf16 %v3432, %v3431
        %v3496 = vpack.c.bf16 %v3434, %v3433
        %v3497 = vpack.c.bf16 %v3436, %v3435
        %v3498 = vpack.c.bf16 %v3438, %v3437
        %v3499 = vpack.c.bf16 %v3440, %v3439
        %v3500 = vpack.c.bf16 %v3442, %v3441
        %v3501 = vpack.c.bf16 %v3444, %v3443
        %v3502 = vpack.c.bf16 %v3446, %v3445
        %v3503 = vpack.c.bf16 %v3448, %v3447
        %v3504 = vpack.c.bf16 %v3450, %v3449
        %v3505 = vpack.c.bf16 %v3452, %v3451
        %v3506 = vpack.c.bf16 %v3454, %v3453
        %v3507 = vpack.c.bf16 %v3456, %v3455
        %v3508 = vpack.c.bf16 %v3458, %v3457
        %v3509 = vpack.c.bf16 %v3460, %v3459
        %v3510 = vpack.c.bf16 %v3462, %v3461
        %v3511 = vpack.c.bf16 %v3464, %v3463
        %v3512 = vpack.c.bf16 %v3466, %v3465
        %v3513 = vpack.c.bf16 %v3468, %v3467
        %v3514 = vpack.c.bf16 %v3470, %v3469
        %v3515 = vpack.c.bf16 %v3472, %v3471
        %v3516 = vpack.c.bf16 %v3474, %v3473
        %v3517 = vpack.c.bf16 %v3476, %v3475
        %v3518 = vpack.c.bf16 %v3478, %v3477
        %v3519 = vpack.c.bf16 %v3480, %v3479
        %v3520 = vpack.c.bf16 %v3482, %v3481
        %v3521 = vpack.c.bf16 %v3484, %v3483
        %v3522 = vpack.c.bf16 %v3486, %v3485
        %v3523 = vpack.c.bf16 %v3488, %v3487
        %v3524 = vpack.c.bf16 %v3490, %v3489
        %v3525 = vpack.c.bf16 %v3492, %v3491
        %v3526 = vpack.c.bf16 %v3494, %v3493
        %v3559 = vunpack.c.l.b16 %v3495
        %v3560 = vunpack.c.h.b16 %v3495
        %v3561 = vunpack.c.l.b16 %v3496
        %v3562 = vunpack.c.h.b16 %v3496
        %v3563 = vunpack.c.l.b16 %v3497
        %v3564 = vunpack.c.h.b16 %v3497
        %v3565 = vunpack.c.l.b16 %v3498
        %v3566 = vunpack.c.h.b16 %v3498
        %v3567 = vunpack.c.l.b16 %v3499
        %v3568 = vunpack.c.h.b16 %v3499
        %v3569 = vunpack.c.l.b16 %v3500
        %v3570 = vunpack.c.h.b16 %v3500
        %v3571 = vunpack.c.l.b16 %v3501
        %v3572 = vunpack.c.h.b16 %v3501
        %v3573 = vunpack.c.l.b16 %v3502
        %v3574 = vunpack.c.h.b16 %v3502
        %v3575 = vunpack.c.l.b16 %v3503
        %v3576 = vunpack.c.h.b16 %v3503
        %v3577 = vunpack.c.l.b16 %v3504
        %v3578 = vunpack.c.h.b16 %v3504
        %v3579 = vunpack.c.l.b16 %v3505
        %v3580 = vunpack.c.h.b16 %v3505
        %v3581 = vunpack.c.l.b16 %v3506
        %v3582 = vunpack.c.h.b16 %v3506
        %v3583 = vunpack.c.l.b16 %v3507
        %v3584 = vunpack.c.h.b16 %v3507
        %v3585 = vunpack.c.l.b16 %v3508
        %v3586 = vunpack.c.h.b16 %v3508
        %v3587 = vunpack.c.l.b16 %v3509
        %v3588 = vunpack.c.h.b16 %v3509
        %v3589 = vunpack.c.l.b16 %v3510
        %v3590 = vunpack.c.h.b16 %v3510
        %v3591 = vunpack.c.l.b16 %v3511
        %v3592 = vunpack.c.h.b16 %v3511
        %v3593 = vunpack.c.l.b16 %v3512
        %v3594 = vunpack.c.h.b16 %v3512
        %v3595 = vunpack.c.l.b16 %v3513
        %v3596 = vunpack.c.h.b16 %v3513
        %v3597 = vunpack.c.l.b16 %v3514
        %v3598 = vunpack.c.h.b16 %v3514
        %v3599 = vunpack.c.l.b16 %v3515
        %v3600 = vunpack.c.h.b16 %v3515
        %v3601 = vunpack.c.l.b16 %v3516
        %v3602 = vunpack.c.h.b16 %v3516
        %v3603 = vunpack.c.l.b16 %v3517
        %v3604 = vunpack.c.h.b16 %v3517
        %v3605 = vunpack.c.l.b16 %v3518
        %v3606 = vunpack.c.h.b16 %v3518
        %v3607 = vunpack.c.l.b16 %v3519
        %v3608 = vunpack.c.h.b16 %v3519
        %v3609 = vunpack.c.l.b16 %v3520
        %v3610 = vunpack.c.h.b16 %v3520
        %v3611 = vunpack.c.l.b16 %v3521
        %v3612 = vunpack.c.h.b16 %v3521
        %v3613 = vunpack.c.l.b16 %v3522
        %v3614 = vunpack.c.h.b16 %v3522
        %v3615 = vunpack.c.l.b16 %v3523
        %v3616 = vunpack.c.h.b16 %v3523
        %v3617 = vunpack.c.l.b16 %v3524
        %v3618 = vunpack.c.h.b16 %v3524
        %v3619 = vunpack.c.l.b16 %v3525
        %v3620 = vunpack.c.h.b16 %v3525
        %v3621 = vunpack.c.l.b16 %v3526
        %v3622 = vunpack.c.h.b16 %v3526
        %v3623 = vpack.c.b16 %v3559, %v3559
        %v3624 = vpack.c.b16 %v3560, %v3560
        %v3625 = vpack.c.b16 %v3561, %v3561
        %v3626 = vpack.c.b16 %v3562, %v3562
        %v3627 = vpack.c.b16 %v3563, %v3563
        %v3628 = vpack.c.b16 %v3564, %v3564
        %v3629 = vpack.c.b16 %v3565, %v3565
        %v3630 = vpack.c.b16 %v3566, %v3566
        %v3631 = vpack.c.b16 %v3567, %v3567
        %v3632 = vpack.c.b16 %v3568, %v3568
        %v3633 = vpack.c.b16 %v3569, %v3569
        %v3634 = vpack.c.b16 %v3570, %v3570
        %v3635 = vpack.c.b16 %v3571, %v3571
        %v3636 = vpack.c.b16 %v3572, %v3572
        %v3637 = vpack.c.b16 %v3573, %v3573
        %v3638 = vpack.c.b16 %v3574, %v3574
        %v3639 = vpack.c.b16 %v3575, %v3575
        %v3640 = vpack.c.b16 %v3576, %v3576
        %v3641 = vpack.c.b16 %v3577, %v3577
        %v3642 = vpack.c.b16 %v3578, %v3578
        %v3643 = vpack.c.b16 %v3579, %v3579
        %v3644 = vpack.c.b16 %v3580, %v3580
        %v3645 = vpack.c.b16 %v3581, %v3581
        %v3646 = vpack.c.b16 %v3582, %v3582
        %v3647 = vpack.c.b16 %v3583, %v3583
        %v3648 = vpack.c.b16 %v3584, %v3584
        %v3649 = vpack.c.b16 %v3585, %v3585
        %v3650 = vpack.c.b16 %v3586, %v3586
        %v3651 = vpack.c.b16 %v3587, %v3587
        %v3652 = vpack.c.b16 %v3588, %v3588
        %v3653 = vpack.c.b16 %v3589, %v3589
        %v3654 = vpack.c.b16 %v3590, %v3590
        %v3655 = vpack.c.b16 %v3591, %v3591
        %v3656 = vpack.c.b16 %v3592, %v3592
        %v3657 = vpack.c.b16 %v3593, %v3593
        %v3658 = vpack.c.b16 %v3594, %v3594
        %v3659 = vpack.c.b16 %v3595, %v3595
        %v3660 = vpack.c.b16 %v3596, %v3596
        %v3661 = vpack.c.b16 %v3597, %v3597
        %v3662 = vpack.c.b16 %v3598, %v3598
        %v3663 = vpack.c.b16 %v3599, %v3599
        %v3664 = vpack.c.b16 %v3600, %v3600
        %v3665 = vpack.c.b16 %v3601, %v3601
        %v3666 = vpack.c.b16 %v3602, %v3602
        %v3667 = vpack.c.b16 %v3603, %v3603
        %v3668 = vpack.c.b16 %v3604, %v3604
        %v3669 = vpack.c.b16 %v3605, %v3605
        %v3670 = vpack.c.b16 %v3606, %v3606
        %v3671 = vpack.c.b16 %v3607, %v3607
        %v3672 = vpack.c.b16 %v3608, %v3608
        %v3673 = vpack.c.b16 %v3609, %v3609
        %v3674 = vpack.c.b16 %v3610, %v3610
        %v3675 = vpack.c.b16 %v3611, %v3611
        %v3676 = vpack.c.b16 %v3612, %v3612
        %v3677 = vpack.c.b16 %v3613, %v3613
        %v3678 = vpack.c.b16 %v3614, %v3614
        %v3679 = vpack.c.b16 %v3615, %v3615
        %v3680 = vpack.c.b16 %v3616, %v3616
        %v3681 = vpack.c.b16 %v3617, %v3617
        %v3682 = vpack.c.b16 %v3618, %v3618
        %v3683 = vpack.c.b16 %v3619, %v3619
        %v3684 = vpack.c.b16 %v3620, %v3620
        %v3685 = vpack.c.b16 %v3621, %v3621
        %v3686 = vpack.c.b16 %v3622, %v3622
        %3751 = vst [vmem:[%s221] sm:$0xf] %v3623
        %3752 = vst [vmem:[%s221 + $0x4] sm:$0xf] %v3624
        %3753 = vst [vmem:[%s221 + $0x8] sm:$0xf] %v3625
        %3754 = vst [vmem:[%s221 + $0xc] sm:$0xf] %v3626
        %3755 = vst [vmem:[%s221 + $0x10] sm:$0xf] %v3627
        %3756 = vst [vmem:[%s221 + $0x14] sm:$0xf] %v3628
        %3757 = vst [vmem:[%s221 + $0x18] sm:$0xf] %v3629
        %3758 = vst [vmem:[%s221 + $0x1c] sm:$0xf] %v3630
        %3759 = vst [vmem:[%s221 + $0x20] sm:$0xf] %v3631
        %3760 = vst [vmem:[%s221 + $0x24] sm:$0xf] %v3632
        %3761 = vst [vmem:[%s221 + $0x28] sm:$0xf] %v3633
        %3762 = vst [vmem:[%s221 + $0x2c] sm:$0xf] %v3634
        %3763 = vst [vmem:[%s221 + $0x30] sm:$0xf] %v3635
        %3764 = vst [vmem:[%s221 + $0x34] sm:$0xf] %v3636
        %3765 = vst [vmem:[%s221 + $0x38] sm:$0xf] %v3637
        %3766 = vst [vmem:[%s221 + $0x3c] sm:$0xf] %v3638
        %3767 = vst [vmem:[%s221 + $0x40] sm:$0xf] %v3639
        %3768 = vst [vmem:[%s221 + $0x44] sm:$0xf] %v3640
        %3769 = vst [vmem:[%s221 + $0x48] sm:$0xf] %v3641
        %3770 = vst [vmem:[%s221 + $0x4c] sm:$0xf] %v3642
        %3771 = vst [vmem:[%s221 + $0x50] sm:$0xf] %v3643
        %3772 = vst [vmem:[%s221 + $0x54] sm:$0xf] %v3644
        %3773 = vst [vmem:[%s221 + $0x58] sm:$0xf] %v3645
        %3774 = vst [vmem:[%s221 + $0x5c] sm:$0xf] %v3646
        %3775 = vst [vmem:[%s221 + $0x60] sm:$0xf] %v3647
        %3776 = vst [vmem:[%s221 + $0x64] sm:$0xf] %v3648
        %3777 = vst [vmem:[%s221 + $0x68] sm:$0xf] %v3649
        %3778 = vst [vmem:[%s221 + $0x6c] sm:$0xf] %v3650
        %3779 = vst [vmem:[%s221 + $0x70] sm:$0xf] %v3651
        %3780 = vst [vmem:[%s221 + $0x74] sm:$0xf] %v3652
        %3781 = vst [vmem:[%s221 + $0x78] sm:$0xf] %v3653
        %3782 = vst [vmem:[%s221 + $0x7c] sm:$0xf] %v3654
        %3783 = vst [vmem:[%s221 + $0x80] sm:$0xf] %v3655
        %3784 = vst [vmem:[%s221 + $0x84] sm:$0xf] %v3656
        %3785 = vst [vmem:[%s221 + $0x88] sm:$0xf] %v3657
        %3786 = vst [vmem:[%s221 + $0x8c] sm:$0xf] %v3658
        %3787 = vst [vmem:[%s221 + $0x90] sm:$0xf] %v3659
        %3788 = vst [vmem:[%s221 + $0x94] sm:$0xf] %v3660
        %3789 = vst [vmem:[%s221 + $0x98] sm:$0xf] %v3661
        %3790 = vst [vmem:[%s221 + $0x9c] sm:$0xf] %v3662
        %3791 = vst [vmem:[%s221 + $0xa0] sm:$0xf] %v3663
        %3792 = vst [vmem:[%s221 + $0xa4] sm:$0xf] %v3664
        %3793 = vst [vmem:[%s221 + $0xa8] sm:$0xf] %v3665
        %3794 = vst [vmem:[%s221 + $0xac] sm:$0xf] %v3666
        %3795 = vst [vmem:[%s221 + $0xb0] sm:$0xf] %v3667
        %3796 = vst [vmem:[%s221 + $0xb4] sm:$0xf] %v3668
        %3797 = vst [vmem:[%s221 + $0xb8] sm:$0xf] %v3669
        %3798 = vst [vmem:[%s221 + $0xbc] sm:$0xf] %v3670
        %3799 = vst [vmem:[%s221 + $0xc0] sm:$0xf] %v3671
        %3800 = vst [vmem:[%s221 + $0xc4] sm:$0xf] %v3672
        %3801 = vst [vmem:[%s221 + $0xc8] sm:$0xf] %v3673
        %3802 = vst [vmem:[%s221 + $0xcc] sm:$0xf] %v3674
        %3803 = vst [vmem:[%s221 + $0xd0] sm:$0xf] %v3675
        %3804 = vst [vmem:[%s221 + $0xd4] sm:$0xf] %v3676
        %3805 = vst [vmem:[%s221 + $0xd8] sm:$0xf] %v3677
        %3806 = vst [vmem:[%s221 + $0xdc] sm:$0xf] %v3678
        %3807 = vst [vmem:[%s221 + $0xe0] sm:$0xf] %v3679
        %3808 = vst [vmem:[%s221 + $0xe4] sm:$0xf] %v3680
        %3809 = vst [vmem:[%s221 + $0xe8] sm:$0xf] %v3681
        %3810 = vst [vmem:[%s221 + $0xec] sm:$0xf] %v3682
        %3811 = vst [vmem:[%s221 + $0xf0] sm:$0xf] %v3683
        %3812 = vst [vmem:[%s221 + $0xf4] sm:$0xf] %v3684
        %3813 = vst [vmem:[%s221 + $0xf8] sm:$0xf] %v3685
        %3814 = vst [vmem:[%s221 + $0xfc] sm:$0xf] %v3686
        %v3815 = vadd.f32 %v3431, %v3432
        %v3816 = vadd.f32 %v3815, %v3433
        %v3817 = vadd.f32 %v3816, %v3434
        %v3818 = vadd.f32 %v3817, %v3435
        %v3819 = vadd.f32 %v3818, %v3436
        %v3820 = vadd.f32 %v3819, %v3437
        %v3821 = vadd.f32 %v3820, %v3438
        %v3822 = vadd.f32 %v3821, %v3439
        %v3823 = vadd.f32 %v3822, %v3440
        %v3824 = vadd.f32 %v3823, %v3441
        %v3825 = vadd.f32 %v3824, %v3442
        %v3826 = vadd.f32 %v3825, %v3443
        %v3827 = vadd.f32 %v3826, %v3444
        %v3828 = vadd.f32 %v3827, %v3445
        %v3829 = vadd.f32 %v3828, %v3446
        %v3830 = vadd.f32 %v3829, %v3447
        %v3831 = vadd.f32 %v3830, %v3448
        %v3832 = vadd.f32 %v3831, %v3449
        %v3833 = vadd.f32 %v3832, %v3450
        %v3834 = vadd.f32 %v3833, %v3451
        %v3835 = vadd.f32 %v3834, %v3452
        %v3836 = vadd.f32 %v3835, %v3453
        %v3837 = vadd.f32 %v3836, %v3454
        %v3838 = vadd.f32 %v3837, %v3455
        %v3839 = vadd.f32 %v3838, %v3456
        %v3840 = vadd.f32 %v3839, %v3457
        %v3841 = vadd.f32 %v3840, %v3458
        %v3842 = vadd.f32 %v3841, %v3459
        %v3843 = vadd.f32 %v3842, %v3460
        %v3844 = vadd.f32 %v3843, %v3461
        %v3845 = vadd.f32 %v3844, %v3462
        %v3846 = vadd.f32 %v3845, %v3463
        %v3847 = vadd.f32 %v3846, %v3464
        %v3848 = vadd.f32 %v3847, %v3465
        %v3849 = vadd.f32 %v3848, %v3466
        %v3850 = vadd.f32 %v3849, %v3467
        %v3851 = vadd.f32 %v3850, %v3468
        %v3852 = vadd.f32 %v3851, %v3469
        %v3853 = vadd.f32 %v3852, %v3470
        %v3854 = vadd.f32 %v3853, %v3471
        %v3855 = vadd.f32 %v3854, %v3472
        %v3856 = vadd.f32 %v3855, %v3473
        %v3857 = vadd.f32 %v3856, %v3474
        %v3858 = vadd.f32 %v3857, %v3475
        %v3859 = vadd.f32 %v3858, %v3476
        %v3860 = vadd.f32 %v3859, %v3477
        %v3861 = vadd.f32 %v3860, %v3478
        %v3862 = vadd.f32 %v3861, %v3479
        %v3863 = vadd.f32 %v3862, %v3480
        %v3864 = vadd.f32 %v3863, %v3481
        %v3865 = vadd.f32 %v3864, %v3482
        %v3866 = vadd.f32 %v3865, %v3483
        %v3867 = vadd.f32 %v3866, %v3484
        %v3868 = vadd.f32 %v3867, %v3485
        %v3869 = vadd.f32 %v3868, %v3486
        %v3870 = vadd.f32 %v3869, %v3487
        %v3871 = vadd.f32 %v3870, %v3488
        %v3872 = vadd.f32 %v3871, %v3489
        %v3873 = vadd.f32 %v3872, %v3490
        %v3874 = vadd.f32 %v3873, %v3491
        %v3875 = vadd.f32 %v3874, %v3492
        %v3876 = vadd.f32 %v3875, %v3493
        %v3877 = vadd.f32 %v3876, %v3494
        %v3878 = vrot.slane %v3877, 4
        %v3879 = vadd.f32 %v3877, %v3878
        %v3880 = vrot.slane %v3879, 2
        %v3881 = vadd.f32 %v3879, %v3880
        %v3882 = vrot.slane %v3881, 1
        %v3883 = vadd.f32 %v3881, %v3882
        %3884 = vst [vmem:[%s228] sm:$0x1] %v3883
        %v3885 = vmul.f32 %v3431, %v3431
        %v3886 = vmul.f32 %v3432, %v3432
        %v3887 = vmul.f32 %v3433, %v3433
        %v3888 = vmul.f32 %v3434, %v3434
        %v3889 = vmul.f32 %v3435, %v3435
        %v3890 = vmul.f32 %v3436, %v3436
        %v3891 = vmul.f32 %v3437, %v3437
        %v3892 = vmul.f32 %v3438, %v3438
        %v3893 = vmul.f32 %v3439, %v3439
        %v3894 = vmul.f32 %v3440, %v3440
        %v3895 = vmul.f32 %v3441, %v3441
        %v3896 = vmul.f32 %v3442, %v3442
        %v3897 = vmul.f32 %v3443, %v3443
        %v3898 = vmul.f32 %v3444, %v3444
        %v3899 = vmul.f32 %v3445, %v3445
        %v3900 = vmul.f32 %v3446, %v3446
        %v3901 = vmul.f32 %v3447, %v3447
        %v3902 = vmul.f32 %v3448, %v3448
        %v3903 = vmul.f32 %v3449, %v3449
        %v3904 = vmul.f32 %v3450, %v3450
        %v3905 = vmul.f32 %v3451, %v3451
        %v3906 = vmul.f32 %v3452, %v3452
        %v3907 = vmul.f32 %v3453, %v3453
        %v3908 = vmul.f32 %v3454, %v3454
        %v3909 = vmul.f32 %v3455, %v3455
        %v3910 = vmul.f32 %v3456, %v3456
        %v3911 = vmul.f32 %v3457, %v3457
        %v3912 = vmul.f32 %v3458, %v3458
        %v3913 = vmul.f32 %v3459, %v3459
        %v3914 = vmul.f32 %v3460, %v3460
        %v3915 = vmul.f32 %v3461, %v3461
        %v3916 = vmul.f32 %v3462, %v3462
        %v3917 = vmul.f32 %v3463, %v3463
        %v3918 = vmul.f32 %v3464, %v3464
        %v3919 = vmul.f32 %v3465, %v3465
        %v3920 = vmul.f32 %v3466, %v3466
        %v3921 = vmul.f32 %v3467, %v3467
        %v3922 = vmul.f32 %v3468, %v3468
        %v3923 = vmul.f32 %v3469, %v3469
        %v3924 = vmul.f32 %v3470, %v3470
        %v3925 = vmul.f32 %v3471, %v3471
        %v3926 = vmul.f32 %v3472, %v3472
        %v3927 = vmul.f32 %v3473, %v3473
        %v3928 = vmul.f32 %v3474, %v3474
        %v3929 = vmul.f32 %v3475, %v3475
        %v3930 = vmul.f32 %v3476, %v3476
        %v3931 = vmul.f32 %v3477, %v3477
        %v3932 = vmul.f32 %v3478, %v3478
        %v3933 = vmul.f32 %v3479, %v3479
        %v3934 = vmul.f32 %v3480, %v3480
        %v3935 = vmul.f32 %v3481, %v3481
        %v3936 = vmul.f32 %v3482, %v3482
        %v3937 = vmul.f32 %v3483, %v3483
        %v3938 = vmul.f32 %v3484, %v3484
        %v3939 = vmul.f32 %v3485, %v3485
        %v3940 = vmul.f32 %v3486, %v3486
        %v3941 = vmul.f32 %v3487, %v3487
        %v3942 = vmul.f32 %v3488, %v3488
        %v3943 = vmul.f32 %v3489, %v3489
        %v3944 = vmul.f32 %v3490, %v3490
        %v3945 = vmul.f32 %v3491, %v3491
        %v3946 = vmul.f32 %v3492, %v3492
        %v3947 = vmul.f32 %v3493, %v3493
        %v3948 = vmul.f32 %v3494, %v3494
        %v3949 = vadd.f32 %v3885, %v3886
        %v3950 = vadd.f32 %v3949, %v3887
        %v3951 = vadd.f32 %v3950, %v3888
        %v3952 = vadd.f32 %v3951, %v3889
        %v3953 = vadd.f32 %v3952, %v3890
        %v3954 = vadd.f32 %v3953, %v3891
        %v3955 = vadd.f32 %v3954, %v3892
        %v3956 = vadd.f32 %v3955, %v3893
        %v3957 = vadd.f32 %v3956, %v3894
        %v3958 = vadd.f32 %v3957, %v3895
        %v3959 = vadd.f32 %v3958, %v3896
        %v3960 = vadd.f32 %v3959, %v3897
        %v3961 = vadd.f32 %v3960, %v3898
        %v3962 = vadd.f32 %v3961, %v3899
        %v3963 = vadd.f32 %v3962, %v3900
        %v3964 = vadd.f32 %v3963, %v3901
        %v3965 = vadd.f32 %v3964, %v3902
        %v3966 = vadd.f32 %v3965, %v3903
        %v3967 = vadd.f32 %v3966, %v3904
        %v3968 = vadd.f32 %v3967, %v3905
        %v3969 = vadd.f32 %v3968, %v3906
        %v3970 = vadd.f32 %v3969, %v3907
        %v3971 = vadd.f32 %v3970, %v3908
        %v3972 = vadd.f32 %v3971, %v3909
        %v3973 = vadd.f32 %v3972, %v3910
        %v3974 = vadd.f32 %v3973, %v3911
        %v3975 = vadd.f32 %v3974, %v3912
        %v3976 = vadd.f32 %v3975, %v3913
        %v3977 = vadd.f32 %v3976, %v3914
        %v3978 = vadd.f32 %v3977, %v3915
        %v3979 = vadd.f32 %v3978, %v3916
        %v3980 = vadd.f32 %v3979, %v3917
        %v3981 = vadd.f32 %v3980, %v3918
        %v3982 = vadd.f32 %v3981, %v3919
        %v3983 = vadd.f32 %v3982, %v3920
        %v3984 = vadd.f32 %v3983, %v3921
        %v3985 = vadd.f32 %v3984, %v3922
        %v3986 = vadd.f32 %v3985, %v3923
        %v3987 = vadd.f32 %v3986, %v3924
        %v3988 = vadd.f32 %v3987, %v3925
        %v3989 = vadd.f32 %v3988, %v3926
        %v3990 = vadd.f32 %v3989, %v3927
        %v3991 = vadd.f32 %v3990, %v3928
        %v3992 = vadd.f32 %v3991, %v3929
        %v3993 = vadd.f32 %v3992, %v3930
        %v3994 = vadd.f32 %v3993, %v3931
        %v3995 = vadd.f32 %v3994, %v3932
        %v3996 = vadd.f32 %v3995, %v3933
        %v3997 = vadd.f32 %v3996, %v3934
        %v3998 = vadd.f32 %v3997, %v3935
        %v3999 = vadd.f32 %v3998, %v3936
        %v4000 = vadd.f32 %v3999, %v3937
        %v4001 = vadd.f32 %v4000, %v3938
        %v4002 = vadd.f32 %v4001, %v3939
        %v4003 = vadd.f32 %v4002, %v3940
        %v4004 = vadd.f32 %v4003, %v3941
        %v4005 = vadd.f32 %v4004, %v3942
        %v4006 = vadd.f32 %v4005, %v3943
        %v4007 = vadd.f32 %v4006, %v3944
        %v4008 = vadd.f32 %v4007, %v3945
        %v4009 = vadd.f32 %v4008, %v3946
        %v4010 = vadd.f32 %v4009, %v3947
        %v4011 = vadd.f32 %v4010, %v3948
        %v4012 = vrot.slane %v4011, 4
        %v4013 = vadd.f32 %v4011, %v4012
        %v4014 = vrot.slane %v4013, 2
        %v4015 = vadd.f32 %v4013, %v4014
        %v4016 = vrot.slane %v4015, 1
        %v4017 = vadd.f32 %v4015, %v4016
        %4018 = vst [vmem:[%s228 + $0x1] sm:$0x1] %v4017
        %s4019 = sand.u32 %s120, 1
        %s4020 = scalar_lea.sflag [#allocation3], %s4019
        %s4021 = sand.u32 %s120, 1
        %s4022 = smul.addr %s4021, 256
        %s4023 = scalar_lea.vmem [#allocation2], %s4022
        %s4024 = sand.u32 %s146, 1
        %s4025 = scalar_lea.sflag [#allocation5], %s4024
        %s4026 = sand.u32 %s146, 1
        %s4027 = smul.addr %s4026, 2
        %s4028 = scalar_lea.vmem [#allocation4], %s4027
        // Predicated region
        $region37: #{tpu_custom_call.1} parent=35 // pred_check
          %p4029 = pneg %p130
        $region38: #{tpu_custom_call.1} parent=35 // pred_check_branch
          %4031 = sbr.rel (%p4029) target = $region40
        $region39: #{tpu_custom_call.1} parent=35 // pred_region
          %s4033 = ssub.s32 4096, 4096
          %4034 = vsyncadd %s4020, %s4033
          %s4035 = smul.addr %s23, 64
          %s4036 = smul.addr %s4035, 64
          %s4037 = scalar_lea.hbm %s4, %s4036
          %s4038 = sshll.u32 %s4023, 4
          %s4039 = int_to_ptr.vmem [resolvable:$true] %s4038
          %4044 = dma.vmem_to_hbm [thread:$0]  %s4039, 4096, %s4037, %s4020, 64, 64, 4
        $region40: #{tpu_custom_call.1} parent=35 // pred_fallthru
          _
        // Predicated region
        $region41: #{tpu_custom_call.1} parent=35 // pred_check
          %p4045 = pneg %p156
        $region42: #{tpu_custom_call.1} parent=35 // pred_check_branch
          %4047 = sbr.rel (%p4045) target = $region44
        $region43: #{tpu_custom_call.1} parent=35 // pred_region
          %s4049 = ssub.s32 32, 32
          %4050 = vsyncadd %s4025, %s4049
          %s4051 = smul.addr %s23, 32
          %s4052 = scalar_lea.hbm %s5, %s4051
          %s4054 = sshll.u32 %s4028, 4
          %s4055 = int_to_ptr.vmem [resolvable:$true] %s4054
          %4057 = dma.vmem_to_hbm [thread:$0]  %s4055, 32, %s4052, %s4025
        $region44: #{tpu_custom_call.1} parent=35 // pred_fallthru
          _
      $region36: #{tpu_custom_call.1} parent=5 // pred_fallthru
        _
      %p4058 = scmp.le.s32.totalorder 2, %s18
      // Predicated region
      $region45: #{tpu_custom_call.1} parent=5 // pred_check
        %p4059 = pneg %p4058
      $region46: #{tpu_custom_call.1} parent=5 // pred_check_branch
        %4061 = sbr.rel (%p4059) target = $region48
      $region47: #{tpu_custom_call.1} parent=5 // pred_region
        %s4062 = ssub.s32 %s18, 2
        // Predicated region
        $region49: #{tpu_custom_call.1} parent=47 // pred_check
          %p4063 = pneg %p136
        $region50: #{tpu_custom_call.1} parent=47 // pred_check_branch
          %4065 = sbr.rel (%p4063) target = $region52
        $region51: #{tpu_custom_call.1} parent=47 // pred_region
          %s4066 = sand.u32 %s121, 1
          %s4067 = scalar_lea.sflag [#allocation3], %s4066
          %s4068 = sand.u32 %s121, 1
          %s4069 = smul.addr %s4068, 256
          %s4070 = scalar_lea.vmem [#allocation2], %s4069
          %4071 = dma.done %s4067, 4096
        $region52: #{tpu_custom_call.1} parent=47 // pred_fallthru
          _
        // Predicated region
        $region53: #{tpu_custom_call.1} parent=47 // pred_check
          %p4072 = pneg %p162
        $region54: #{tpu_custom_call.1} parent=47 // pred_check_branch
          %4074 = sbr.rel (%p4072) target = $region56
        $region55: #{tpu_custom_call.1} parent=47 // pred_region
          %s4075 = sand.u32 %s147, 1
          %s4076 = scalar_lea.sflag [#allocation5], %s4075
          %s4077 = sand.u32 %s147, 1
          %s4078 = smul.addr %s4077, 2
          %s4079 = scalar_lea.vmem [#allocation4], %s4078
          %4080 = dma.done %s4076, 32
        $region56: #{tpu_custom_call.1} parent=47 // pred_fallthru
          _
      $region48: #{tpu_custom_call.1} parent=5 // pred_fallthru
        _
    $region6: #{tpu_custom_call.1} parent=1 // loop_footer
      %s22 = sadd.s32 1, %s18
    $region7: #{tpu_custom_call.1} parent=1 // loop_footer_branch
      %17 = sbr.rel target = $region3
    $region8: #{tpu_custom_call.1} parent=1 // loop_exit
      _
    %4081 = vsyncpa [#allocation3], 1
    %s4082 = scalar_lea.sflag [#allocation3], 1
    %4083 = vsyncpa %s4082, 1
    %4084 = vsyncpa [#allocation5], 1
    %s4085 = scalar_lea.sflag [#allocation5], 1
    %4086 = vsyncpa %s4085, 1

</llo_original>
